<compile_context>
chip_gen: v7x
topology: tpu7x:2x2x1
jax: 0.10.0
libtpu: 0.0.40
codegen_flags: <defaults>
</compile_context>

<pallas_src>
import functools
import math

import jax
import jax.numpy as jnp
import numpy as np
from jax import lax
from jax.experimental import pallas as pl
from jax.experimental.pallas import tpu as pltpu

EPS = 1e-8
LOG_2PI = math.log(2.0 * math.pi)
LANE = 128


def _round_up(x, m):
    return ((x + m - 1) // m) * m


# ----------------------------------------------------------------------------
# Fused GMM log-prob + Viterbi kernel (batch on lanes, 128 sequences / step)
# ----------------------------------------------------------------------------
def _hmm_kernel(obs_ref, wtop_ref, wbot_ref, d_ref, logt_ref,
                dec_ref, score_ref, psi_ref,
                *, num_states, num_components, s_pad8, seq_len, unroll):
    # obs_ref:  (T, F, Bt) f32        wtop/wbot_ref: (K*S8, F) f32
    # d_ref:    (K*S8, 1) f32         logt_ref: (S_next, S_prev) f32
    # dec_ref:  (T, Bt) i32           score_ref: (1, Bt) f32
    # psi_ref:  (T, S, Bt) i32 VMEM scratch
    S, K, S8, T = num_states, num_components, s_pad8, seq_len
    Bt = obs_ref.shape[-1]

    wtop = wtop_ref[...]            # -0.5 / var          (rows: comp-major, state-minor)
    wbot = wbot_ref[...]            # mu / var
    d = d_ref[...]                  # -0.5*(sum mu^2/var + sum logvar + F log2pi) + log w

    def gmm_logprob(t):
        x = obs_ref[t]                                           # (F, Bt)
        lp = (jnp.dot(wtop, x * x, preferred_element_type=jnp.float32)
              + jnp.dot(wbot, x, preferred_element_type=jnp.float32)
              + d)                                               # (K*S8, Bt)
        # log-sum-exp over mixture components (matches _log_sum_exp):
        # component k occupies sublane rows [k*S8, (k+1)*S8).
        m = lp[0:S8, :]
        for k in range(1, K):
            m = jnp.maximum(m, lp[k * S8:(k + 1) * S8, :])
        m = jnp.where(jnp.isinf(m), jnp.zeros_like(m), m)
        se = jnp.zeros_like(m)
        for k in range(K):
            se = se + jnp.exp(lp[k * S8:(k + 1) * S8, :] - m)
        return (jnp.log(jnp.maximum(se, EPS)) + m)[0:S, :]       # (S, Bt)

    # Hoisted loop invariants (JAX does not CSE broadcast_in_dim).
    a_full = jnp.broadcast_to(logt_ref[...][:, :, None], (S, S, Bt))  # (next, prev, b)
    iota_prev3 = lax.broadcasted_iota(jnp.int32, (S, S, Bt), 1)
    iota_state = lax.broadcasted_iota(jnp.int32, (S, Bt), 0)

    delta0 = gmm_logprob(0) - jnp.float32(math.log(S))           # (S, Bt)

    def fwd_body(t, delta):
        scores = a_full + delta[None, :, :]                      # (next, prev, b)
        best = jnp.max(scores, axis=1)                           # (next, b)
        # first-max tie-break (smallest prev index), like torch.max
        arg = jnp.min(jnp.where(scores >= best[:, None, :], iota_prev3, S),
                      axis=1).astype(jnp.int32)                  # (next, b)
        psi_ref[t, :, :] = arg
        return best + gmm_logprob(t)

    delta_last = lax.fori_loop(1, T, fwd_body, delta0, unroll=unroll)

    m_final = jnp.max(delta_last, axis=0, keepdims=True)         # (1, Bt)
    final_state = jnp.min(
        jnp.where(delta_last >= m_final, iota_state, S),
        axis=0, keepdims=True).astype(jnp.int32)                 # (1, Bt)

    score_ref[...] = m_final
    dec_ref[pl.ds(T - 1, 1), :] = final_state

    def bwd_body(i, cur):                                        # cur: (1, Bt) i32
        t = T - 2 - i
        psi_slab = psi_ref[t + 1, :, :]                          # (S, Bt)
        prev = jnp.sum(jnp.where(iota_state == cur, psi_slab, 0),
                       axis=0, keepdims=True).astype(jnp.int32)
        dec_ref[pl.ds(t, 1), :] = prev
        return prev

    lax.fori_loop(0, T - 1, bwd_body, final_state, unroll=unroll)


def mixture_gaussian_hmm_forward(params, observations, return_log_probs=False,
                                 *, batch_tile=128):
    """decoded_states (B, T) int32, sequence_log_probs (B,) f32 (or None)."""
    means = params["means"]
    log_vars = params["log_vars"]
    B, T, F = observations.shape
    S, K, _ = means.shape
    S8 = _round_up(S, 8)
    B_pad = _round_up(B, batch_tile)

    # Observations: batch on lanes -> (T, F, B_pad)
    obs_t = jnp.transpose(observations.astype(jnp.float32), (1, 2, 0))
    if B_pad != B:
        obs_t = jnp.pad(obs_t, ((0, 0), (0, 0), (0, B_pad - B)))

    # GMM weights packed with states/components on sublanes: row k*S8 + s.
    inv_var = jnp.exp(-log_vars)                                 # (S, K, F)
    pad_s = ((0, 0), (0, S8 - S), (0, 0))
    wtop = jnp.pad(jnp.transpose(-0.5 * inv_var, (1, 0, 2)), pad_s)
    wbot = jnp.pad(jnp.transpose(means * inv_var, (1, 0, 2)), pad_s)
    wtop = wtop.reshape(K * S8, F)
    wbot = wbot.reshape(K * S8, F)

    mix_w = jax.nn.softmax(params["mixture_weights_logits"], axis=-1)
    log_w = jnp.log(jnp.maximum(mix_w, EPS))                     # safe_log (S, K)
    c = (jnp.sum(means * means * inv_var, axis=-1)
         + jnp.sum(log_vars, axis=-1) + F * LOG_2PI)             # (S, K)
    d = jnp.transpose(-0.5 * c + log_w, (1, 0))                  # (K, S)
    d = jnp.pad(d, ((0, 0), (0, S8 - S))).reshape(K * S8, 1)

    trans = jax.nn.softmax(params["transition_logits"], axis=-1)
    log_t = jnp.log(jnp.maximum(trans, EPS))                     # (prev, next) safe_log
    log_t_nextprev = jnp.transpose(log_t, (1, 0))                # (next, prev)

    unroll = True if T <= 32 else 8

    # Explicit VMEM budget: double-buffered obs block + psi + dec + weights.
    bt = batch_tile
    vmem_need = (2 * T * F * bt * 4 + T * S * bt * 4 + 2 * T * bt * 4
                 + 4 * bt * 4 + (2 * K * S8 * F + K * S8 + S * S) * 4)
    vmem_limit = int(min(max(int(vmem_need * 1.5) + (4 << 20), 32 << 20), 64 << 20))

    kernel = functools.partial(_hmm_kernel, num_states=S, num_components=K,
                               s_pad8=S8, seq_len=T, unroll=unroll)
    dec, score = pl.pallas_call(
        kernel,
        out_shape=(
            jax.ShapeDtypeStruct((T, B_pad), jnp.int32),
            jax.ShapeDtypeStruct((1, B_pad), jnp.float32),
        ),
        grid=(B_pad // batch_tile,),
        in_specs=[
            pl.BlockSpec((T, F, batch_tile), lambda j: (0, 0, j)),
            pl.BlockSpec((K * S8, F), lambda j: (0, 0)),
            pl.BlockSpec((K * S8, F), lambda j: (0, 0)),
            pl.BlockSpec((K * S8, 1), lambda j: (0, 0)),
            pl.BlockSpec((S, S), lambda j: (0, 0)),
        ],
        out_specs=(
            pl.BlockSpec((T, batch_tile), lambda j: (0, j)),
            pl.BlockSpec((1, batch_tile), lambda j: (0, j)),
        ),
        scratch_shapes=[pltpu.VMEM((T, S, batch_tile), jnp.int32)],
        compiler_params=pltpu.CompilerParams(
            dimension_semantics=("parallel",),
            vmem_limit_bytes=vmem_limit),
    )(obs_t, wtop, wbot, d, log_t_nextprev)

    decoded = jnp.transpose(dec, (1, 0))[:B]                     # (B, T) int32
    scores = score[0, :B]                                        # (B,)
    if return_log_probs:
        return decoded, scores
    return decoded, None


# ----------------------------------------------------------------------------
# Parameter init (mirrors the PyTorch module defaults)
# ----------------------------------------------------------------------------
def init_params(key, num_states, feature_dim, num_components):
    k1, k2, k3 = jax.random.split(key, 3)
    gain = math.sqrt(2.0 / feature_dim)
    return {
        "transition_logits": 0.1 * jax.random.normal(
            k1, (num_states, num_states), jnp.float32),
        "mixture_weights_logits": 0.1 * jax.random.normal(
            k2, (num_states, num_components), jnp.float32),
        "means": gain * jax.random.normal(
            k3, (num_states, num_components, feature_dim), jnp.float32),
        "log_vars": jnp.zeros((num_states, num_components, feature_dim), jnp.float32),
    }


# ----------------------------------------------------------------------------
# Pure-JAX reference (mirrors the PyTorch forward) for validation
# ----------------------------------------------------------------------------
def reference_forward(params, obs):
    B, T, F = obs.shape
    S, K, _ = params["means"].shape
    mixw = jax.nn.softmax(params["mixture_weights_logits"], -1)
    logw = jnp.log(jnp.maximum(mixw, EPS))
    var = jnp.exp(params["log_vars"])
    diff = obs[:, :, None, None, :] - params["means"][None, None]
    lp_comp = -0.5 * (jnp.sum(diff ** 2 / var[None, None], -1)
                      + jnp.sum(params["log_vars"], -1)[None, None]
                      + F * LOG_2PI)
    lpw = lp_comp + logw[None, None]
    m = jnp.max(lpw, -1, keepdims=True)
    m = jnp.where(jnp.isinf(m), jnp.zeros_like(m), m)
    obs_lp = jnp.log(jnp.maximum(jnp.sum(jnp.exp(lpw - m), -1), EPS)) + m[..., 0]

    trans = jax.nn.softmax(params["transition_logits"], -1)
    log_a = jnp.log(jnp.maximum(trans, EPS))

    delta = obs_lp[:, 0, :] - math.log(S)
    psis = []
    for t in range(1, T):
        scores = delta[:, :, None] + log_a[None]                 # (B, prev, next)
        psis.append(jnp.argmax(scores, axis=1))
        delta = jnp.max(scores, axis=1) + obs_lp[:, t, :]
    final_scores = jnp.max(delta, -1)
    state = jnp.argmax(delta, -1)
    dec = [state]
    for t in range(T - 2, -1, -1):
        state = jnp.take_along_axis(psis[t], state[:, None], axis=1)[:, 0]
        dec.append(state)
    return jnp.stack(dec[::-1], axis=1), final_scores


if __name__ == "__main__":
    B, T, F = 2, 8, 16          # batch, seq_len, feature_dim
    S, K = 8, 3                 # num_states, num_components

    key = jax.random.PRNGKey(0)
    pkey, okey = jax.random.split(key)
    params = init_params(pkey, S, F, K)
    observations = jax.random.normal(okey, (B, T, F), jnp.float32)

    decoded, scores = mixture_gaussian_hmm_forward(
        params, observations, return_log_probs=True)
    decoded = jax.block_until_ready(decoded)
    scores = jax.block_until_ready(scores)

    ref_dec, ref_scores = reference_forward(params, observations)
    np.testing.assert_array_equal(np.asarray(decoded), np.asarray(ref_dec))
    np.testing.assert_allclose(np.asarray(scores), np.asarray(ref_scores),
                               rtol=1e-4, atol=1e-3)

    print("KERNEL_OK")
</pallas_src>

<mosaic_0001>
module attributes {stable_mosaic.version = 11 : i64} {
  func.func @_hmm_kernel(%arg0: i32, %arg1: memref<8x16x128xf32, #tpu.memory_space<vmem>>, %arg2: memref<24x16xf32, #tpu.memory_space<vmem>>, %arg3: memref<24x16xf32, #tpu.memory_space<vmem>>, %arg4: memref<24x1xf32, #tpu.memory_space<vmem>>, %arg5: memref<8x8xf32, #tpu.memory_space<vmem>>, %arg6: memref<8x128xi32, #tpu.memory_space<vmem>>, %arg7: memref<1x128xf32, #tpu.memory_space<vmem>>, %arg8: memref<8x8x128xi32, #tpu.memory_space<vmem>>) attributes {dimension_semantics = [#tpu.dimension_semantics<parallel>], iteration_bounds = array<i64: 1>, scalar_prefetch = 0 : i64, scratch_operands = 1 : i64, tpu.core_type = #tpu.core_type<tc>, window_params = [{transform_indices = @transform_0, window_bounds = array<i64: 8, 16, 128>}, {pipeline_mode = #tpu.pipeline_mode<synchronous>, transform_indices = @transform_1, window_bounds = array<i64: 24, 16>}, {pipeline_mode = #tpu.pipeline_mode<synchronous>, transform_indices = @transform_2, window_bounds = array<i64: 24, 16>}, {pipeline_mode = #tpu.pipeline_mode<synchronous>, transform_indices = @transform_3, window_bounds = array<i64: 24, 1>}, {pipeline_mode = #tpu.pipeline_mode<synchronous>, transform_indices = @transform_4, window_bounds = array<i64: 8, 8>}, {transform_indices = @transform_5, window_bounds = array<i64: 8, 128>}, {transform_indices = @transform_6, window_bounds = array<i64: 1, 128>}]} {
    %c0 = arith.constant 0 : index
    %c0_0 = arith.constant 0 : index
    %0 = vector.load %arg2[%c0, %c0_0] : memref<24x16xf32, #tpu.memory_space<vmem>>, vector<24x16xf32>
    %c0_1 = arith.constant 0 : index
    %c0_2 = arith.constant 0 : index
    %1 = vector.load %arg3[%c0_1, %c0_2] : memref<24x16xf32, #tpu.memory_space<vmem>>, vector<24x16xf32>
    %c0_3 = arith.constant 0 : index
    %c0_4 = arith.constant 0 : index
    %2 = vector.load %arg4[%c0_3, %c0_4] : memref<24x1xf32, #tpu.memory_space<vmem>>, vector<24x1xf32>
    %c0_5 = arith.constant 0 : index
    %c0_6 = arith.constant 0 : index
    %3 = vector.load %arg5[%c0_5, %c0_6] : memref<8x8xf32, #tpu.memory_space<vmem>>, vector<8x8xf32>
    %4 = vector.shape_cast %3 : vector<8x8xf32> to vector<8x8x1xf32>
    %5 = vector.shape_cast %4 : vector<8x8x1xf32> to vector<8x8x1xf32>
    %6 = vector.broadcast %5 : vector<8x8x1xf32> to vector<8x8x128xf32>
    %7 = tpu.iota {dimensions = array<i32: 1>} : vector<8x8x128xi32>
    %8 = tpu.iota {dimensions = array<i32: 0>} : vector<8x128xi32>
    %c0_7 = arith.constant 0 : index
    %c0_8 = arith.constant 0 : index
    %c0_9 = arith.constant 0 : index
    %9 = vector.load %arg1[%c0_7, %c0_8, %c0_9] : memref<8x16x128xf32, #tpu.memory_space<vmem>>, vector<1x16x128xf32>
    %10 = vector.shape_cast %9 : vector<1x16x128xf32> to vector<16x128xf32>
    %11 = arith.mulf %10, %10 : vector<16x128xf32>
    %cst = arith.constant dense<0.000000e+00> : vector<24x128xf32>
    %12 = tpu.matmul %0, %11, %cst {dimension_numbers = #tpu.dot_dimension_numbers<[1], [0], [0], [1], [0, 0, 1, 1], [], []>} : vector<24x16xf32>, vector<16x128xf32>, vector<24x128xf32> -> vector<24x128xf32>
    %cst_10 = arith.constant dense<0.000000e+00> : vector<24x128xf32>
    %13 = tpu.matmul %1, %10, %cst_10 {dimension_numbers = #tpu.dot_dimension_numbers<[1], [0], [0], [1], [0, 0, 1, 1], [], []>} : vector<24x16xf32>, vector<16x128xf32>, vector<24x128xf32> -> vector<24x128xf32>
    %14 = arith.addf %12, %13 : vector<24x128xf32>
    %15 = vector.broadcast %2 : vector<24x1xf32> to vector<24x128xf32>
    %16 = arith.addf %14, %15 : vector<24x128xf32>
    %17 = vector.extract_strided_slice %16 {offsets = [0, 0], sizes = [8, 128], strides = [1, 1]} : vector<24x128xf32> to vector<8x128xf32>
    %18 = vector.extract_strided_slice %16 {offsets = [8, 0], sizes = [8, 128], strides = [1, 1]} : vector<24x128xf32> to vector<8x128xf32>
    %19 = arith.maximumf %17, %18 : vector<8x128xf32>
    %20 = vector.extract_strided_slice %16 {offsets = [16, 0], sizes = [8, 128], strides = [1, 1]} : vector<24x128xf32> to vector<8x128xf32>
    %21 = arith.maximumf %19, %20 : vector<8x128xf32>
    %22 = math.absf %21 : vector<8x128xf32>
    %cst_11 = arith.constant 0x7F800000 : f32
    %23 = vector.broadcast %cst_11 : f32 to vector<8x128xf32>
    %24 = arith.cmpf oeq, %22, %23 : vector<8x128xf32>
    %cst_12 = arith.constant 0.000000e+00 : f32
    %25 = vector.broadcast %cst_12 : f32 to vector<8x128xf32>
    %26 = arith.select %24, %25, %21 : vector<8x128xi1>, vector<8x128xf32>
    %cst_13 = arith.constant 0.000000e+00 : f32
    %27 = vector.broadcast %cst_13 : f32 to vector<8x128xf32>
    %28 = vector.extract_strided_slice %16 {offsets = [0, 0], sizes = [8, 128], strides = [1, 1]} : vector<24x128xf32> to vector<8x128xf32>
    %29 = arith.subf %28, %26 : vector<8x128xf32>
    %30 = math.exp %29 : vector<8x128xf32>
    %31 = arith.addf %27, %30 : vector<8x128xf32>
    %32 = vector.extract_strided_slice %16 {offsets = [8, 0], sizes = [8, 128], strides = [1, 1]} : vector<24x128xf32> to vector<8x128xf32>
    %33 = arith.subf %32, %26 : vector<8x128xf32>
    %34 = math.exp %33 : vector<8x128xf32>
    %35 = arith.addf %31, %34 : vector<8x128xf32>
    %36 = vector.extract_strided_slice %16 {offsets = [16, 0], sizes = [8, 128], strides = [1, 1]} : vector<24x128xf32> to vector<8x128xf32>
    %37 = arith.subf %36, %26 : vector<8x128xf32>
    %38 = math.exp %37 : vector<8x128xf32>
    %39 = arith.addf %35, %38 : vector<8x128xf32>
    %cst_14 = arith.constant 9.99999993E-9 : f32
    %40 = vector.broadcast %cst_14 : f32 to vector<8x128xf32>
    %41 = arith.maximumf %39, %40 : vector<8x128xf32>
    %42 = math.log %41 : vector<8x128xf32>
    %43 = arith.addf %42, %26 : vector<8x128xf32>
    %cst_15 = arith.constant 2.07944155 : f32
    %44 = vector.broadcast %cst_15 : f32 to vector<8x128xf32>
    %45 = arith.subf %43, %44 : vector<8x128xf32>
    %c1_i32 = arith.constant 1 : i32
    %46 = vector.shape_cast %45 : vector<8x128xf32> to vector<1x8x128xf32>
    %47 = vector.broadcast %46 : vector<1x8x128xf32> to vector<8x8x128xf32>
    %48 = arith.addf %6, %47 : vector<8x8x128xf32>
    %cst_16 = arith.constant dense<0xFF800000> : vector<8x128xf32>
    %49 = vector.multi_reduction <maximumf>, %48, %cst_16 [1] : vector<8x8x128xf32> to vector<8x128xf32>
    %50 = vector.shape_cast %49 : vector<8x128xf32> to vector<8x1x128xf32>
    %51 = vector.broadcast %50 : vector<8x1x128xf32> to vector<8x8x128xf32>
    %52 = arith.cmpf oge, %48, %51 : vector<8x8x128xf32>
    %c8_i32 = arith.constant 8 : i32
    %53 = vector.broadcast %c8_i32 : i32 to vector<8x8x128xi32>
    %54 = arith.select %52, %7, %53 : vector<8x8x128xi1>, vector<8x8x128xi32>
    %cst_17 = arith.constant dense<2147483647> : vector<8x128xi32>
    %55 = vector.multi_reduction <minsi>, %54, %cst_17 [1] : vector<8x8x128xi32> to vector<8x128xi32>
    %56 = arith.index_cast %c1_i32 : i32 to index
    %c0_18 = arith.constant 0 : index
    %c0_19 = arith.constant 0 : index
    %57 = vector.load %arg8[%56, %c0_18, %c0_19] : memref<8x8x128xi32, #tpu.memory_space<vmem>>, vector<1x8x128xi32>
    %58 = vector.shape_cast %57 : vector<1x8x128xi32> to vector<8x128xi32>
    %59 = vector.shape_cast %55 : vector<8x128xi32> to vector<1x8x128xi32>
    tpu.vector_store %arg8[%56, %c0_18, %c0_19], %59 {strides = array<i32>} : memref<8x8x128xi32, #tpu.memory_space<vmem>>, vector<1x8x128xi32>,
    %60 = arith.index_cast %c1_i32 : i32 to index
    %c0_20 = arith.constant 0 : index
    %c0_21 = arith.constant 0 : index
    %61 = vector.load %arg1[%60, %c0_20, %c0_21] : memref<8x16x128xf32, #tpu.memory_space<vmem>>, vector<1x16x128xf32>
    %62 = vector.shape_cast %61 : vector<1x16x128xf32> to vector<16x128xf32>
    %63 = arith.mulf %62, %62 : vector<16x128xf32>
    %cst_22 = arith.constant dense<0.000000e+00> : vector<24x128xf32>
    %64 = tpu.matmul %0, %63, %cst_22 {dimension_numbers = #tpu.dot_dimension_numbers<[1], [0], [0], [1], [0, 0, 1, 1], [], []>} : vector<24x16xf32>, vector<16x128xf32>, vector<24x128xf32> -> vector<24x128xf32>
    %cst_23 = arith.constant dense<0.000000e+00> : vector<24x128xf32>
    %65 = tpu.matmul %1, %62, %cst_23 {dimension_numbers = #tpu.dot_dimension_numbers<[1], [0], [0], [1], [0, 0, 1, 1], [], []>} : vector<24x16xf32>, vector<16x128xf32>, vector<24x128xf32> -> vector<24x128xf32>
    %66 = arith.addf %64, %65 : vector<24x128xf32>
    %67 = vector.broadcast %2 : vector<24x1xf32> to vector<24x128xf32>
    %68 = arith.addf %66, %67 : vector<24x128xf32>
    %69 = vector.extract_strided_slice %68 {offsets = [0, 0], sizes = [8, 128], strides = [1, 1]} : vector<24x128xf32> to vector<8x128xf32>
    %70 = vector.extract_strided_slice %68 {offsets = [8, 0], sizes = [8, 128], strides = [1, 1]} : vector<24x128xf32> to vector<8x128xf32>
    %71 = arith.maximumf %69, %70 : vector<8x128xf32>
    %72 = vector.extract_strided_slice %68 {offsets = [16, 0], sizes = [8, 128], strides = [1, 1]} : vector<24x128xf32> to vector<8x128xf32>
    %73 = arith.maximumf %71, %72 : vector<8x128xf32>
    %74 = math.absf %73 : vector<8x128xf32>
    %cst_24 = arith.constant 0x7F800000 : f32
    %75 = vector.broadcast %cst_24 : f32 to vector<8x128xf32>
    %76 = arith.cmpf oeq, %74, %75 : vector<8x128xf32>
    %cst_25 = arith.constant 0.000000e+00 : f32
    %77 = vector.broadcast %cst_25 : f32 to vector<8x128xf32>
    %78 = arith.select %76, %77, %73 : vector<8x128xi1>, vector<8x128xf32>
    %cst_26 = arith.constant 0.000000e+00 : f32
    %79 = vector.broadcast %cst_26 : f32 to vector<8x128xf32>
    %80 = vector.extract_strided_slice %68 {offsets = [0, 0], sizes = [8, 128], strides = [1, 1]} : vector<24x128xf32> to vector<8x128xf32>
    %81 = arith.subf %80, %78 : vector<8x128xf32>
    %82 = math.exp %81 : vector<8x128xf32>
    %83 = arith.addf %79, %82 : vector<8x128xf32>
    %84 = vector.extract_strided_slice %68 {offsets = [8, 0], sizes = [8, 128], strides = [1, 1]} : vector<24x128xf32> to vector<8x128xf32>
    %85 = arith.subf %84, %78 : vector<8x128xf32>
    %86 = math.exp %85 : vector<8x128xf32>
    %87 = arith.addf %83, %86 : vector<8x128xf32>
    %88 = vector.extract_strided_slice %68 {offsets = [16, 0], sizes = [8, 128], strides = [1, 1]} : vector<24x128xf32> to vector<8x128xf32>
    %89 = arith.subf %88, %78 : vector<8x128xf32>
    %90 = math.exp %89 : vector<8x128xf32>
    %91 = arith.addf %87, %90 : vector<8x128xf32>
    %cst_27 = arith.constant 9.99999993E-9 : f32
    %92 = vector.broadcast %cst_27 : f32 to vector<8x128xf32>
    %93 = arith.maximumf %91, %92 : vector<8x128xf32>
    %94 = math.log %93 : vector<8x128xf32>
    %95 = arith.addf %94, %78 : vector<8x128xf32>
    %96 = arith.addf %49, %95 : vector<8x128xf32>
    %c2_i32 = arith.constant 2 : i32
    %97 = vector.shape_cast %96 : vector<8x128xf32> to vector<1x8x128xf32>
    %98 = vector.broadcast %97 : vector<1x8x128xf32> to vector<8x8x128xf32>
    %99 = arith.addf %6, %98 : vector<8x8x128xf32>
    %cst_28 = arith.constant dense<0xFF800000> : vector<8x128xf32>
    %100 = vector.multi_reduction <maximumf>, %99, %cst_28 [1] : vector<8x8x128xf32> to vector<8x128xf32>
    %101 = vector.shape_cast %100 : vector<8x128xf32> to vector<8x1x128xf32>
    %102 = vector.broadcast %101 : vector<8x1x128xf32> to vector<8x8x128xf32>
    %103 = arith.cmpf oge, %99, %102 : vector<8x8x128xf32>
    %c8_i32_29 = arith.constant 8 : i32
    %104 = vector.broadcast %c8_i32_29 : i32 to vector<8x8x128xi32>
    %105 = arith.select %103, %7, %104 : vector<8x8x128xi1>, vector<8x8x128xi32>
    %cst_30 = arith.constant dense<2147483647> : vector<8x128xi32>
    %106 = vector.multi_reduction <minsi>, %105, %cst_30 [1] : vector<8x8x128xi32> to vector<8x128xi32>
    %107 = arith.index_cast %c2_i32 : i32 to index
    %c0_31 = arith.constant 0 : index
    %c0_32 = arith.constant 0 : index
    %108 = vector.load %arg8[%107, %c0_31, %c0_32] : memref<8x8x128xi32, #tpu.memory_space<vmem>>, vector<1x8x128xi32>
    %109 = vector.shape_cast %108 : vector<1x8x128xi32> to vector<8x128xi32>
    %110 = vector.shape_cast %106 : vector<8x128xi32> to vector<1x8x128xi32>
    tpu.vector_store %arg8[%107, %c0_31, %c0_32], %110 {strides = array<i32>} : memref<8x8x128xi32, #tpu.memory_space<vmem>>, vector<1x8x128xi32>,
    %111 = arith.index_cast %c2_i32 : i32 to index
    %c0_33 = arith.constant 0 : index
    %c0_34 = arith.constant 0 : index
    %112 = vector.load %arg1[%111, %c0_33, %c0_34] : memref<8x16x128xf32, #tpu.memory_space<vmem>>, vector<1x16x128xf32>
    %113 = vector.shape_cast %112 : vector<1x16x128xf32> to vector<16x128xf32>
    %114 = arith.mulf %113, %113 : vector<16x128xf32>
    %cst_35 = arith.constant dense<0.000000e+00> : vector<24x128xf32>
    %115 = tpu.matmul %0, %114, %cst_35 {dimension_numbers = #tpu.dot_dimension_numbers<[1], [0], [0], [1], [0, 0, 1, 1], [], []>} : vector<24x16xf32>, vector<16x128xf32>, vector<24x128xf32> -> vector<24x128xf32>
    %cst_36 = arith.constant dense<0.000000e+00> : vector<24x128xf32>
    %116 = tpu.matmul %1, %113, %cst_36 {dimension_numbers = #tpu.dot_dimension_numbers<[1], [0], [0], [1], [0, 0, 1, 1], [], []>} : vector<24x16xf32>, vector<16x128xf32>, vector<24x128xf32> -> vector<24x128xf32>
    %117 = arith.addf %115, %116 : vector<24x128xf32>
    %118 = vector.broadcast %2 : vector<24x1xf32> to vector<24x128xf32>
    %119 = arith.addf %117, %118 : vector<24x128xf32>
    %120 = vector.extract_strided_slice %119 {offsets = [0, 0], sizes = [8, 128], strides = [1, 1]} : vector<24x128xf32> to vector<8x128xf32>
    %121 = vector.extract_strided_slice %119 {offsets = [8, 0], sizes = [8, 128], strides = [1, 1]} : vector<24x128xf32> to vector<8x128xf32>
    %122 = arith.maximumf %120, %121 : vector<8x128xf32>
    %123 = vector.extract_strided_slice %119 {offsets = [16, 0], sizes = [8, 128], strides = [1, 1]} : vector<24x128xf32> to vector<8x128xf32>
    %124 = arith.maximumf %122, %123 : vector<8x128xf32>
    %125 = math.absf %124 : vector<8x128xf32>
    %cst_37 = arith.constant 0x7F800000 : f32
    %126 = vector.broadcast %cst_37 : f32 to vector<8x128xf32>
    %127 = arith.cmpf oeq, %125, %126 : vector<8x128xf32>
    %cst_38 = arith.constant 0.000000e+00 : f32
    %128 = vector.broadcast %cst_38 : f32 to vector<8x128xf32>
    %129 = arith.select %127, %128, %124 : vector<8x128xi1>, vector<8x128xf32>
    %cst_39 = arith.constant 0.000000e+00 : f32
    %130 = vector.broadcast %cst_39 : f32 to vector<8x128xf32>
    %131 = vector.extract_strided_slice %119 {offsets = [0, 0], sizes = [8, 128], strides = [1, 1]} : vector<24x128xf32> to vector<8x128xf32>
    %132 = arith.subf %131, %129 : vector<8x128xf32>
    %133 = math.exp %132 : vector<8x128xf32>
    %134 = arith.addf %130, %133 : vector<8x128xf32>
    %135 = vector.extract_strided_slice %119 {offsets = [8, 0], sizes = [8, 128], strides = [1, 1]} : vector<24x128xf32> to vector<8x128xf32>
    %136 = arith.subf %135, %129 : vector<8x128xf32>
    %137 = math.exp %136 : vector<8x128xf32>
    %138 = arith.addf %134, %137 : vector<8x128xf32>
    %139 = vector.extract_strided_slice %119 {offsets = [16, 0], sizes = [8, 128], strides = [1, 1]} : vector<24x128xf32> to vector<8x128xf32>
    %140 = arith.subf %139, %129 : vector<8x128xf32>
    %141 = math.exp %140 : vector<8x128xf32>
    %142 = arith.addf %138, %141 : vector<8x128xf32>
    %cst_40 = arith.constant 9.99999993E-9 : f32
    %143 = vector.broadcast %cst_40 : f32 to vector<8x128xf32>
    %144 = arith.maximumf %142, %143 : vector<8x128xf32>
    %145 = math.log %144 : vector<8x128xf32>
    %146 = arith.addf %145, %129 : vector<8x128xf32>
    %147 = arith.addf %100, %146 : vector<8x128xf32>
    %c3_i32 = arith.constant 3 : i32
    %148 = vector.shape_cast %147 : vector<8x128xf32> to vector<1x8x128xf32>
    %149 = vector.broadcast %148 : vector<1x8x128xf32> to vector<8x8x128xf32>
    %150 = arith.addf %6, %149 : vector<8x8x128xf32>
    %cst_41 = arith.constant dense<0xFF800000> : vector<8x128xf32>
    %151 = vector.multi_reduction <maximumf>, %150, %cst_41 [1] : vector<8x8x128xf32> to vector<8x128xf32>
    %152 = vector.shape_cast %151 : vector<8x128xf32> to vector<8x1x128xf32>
    %153 = vector.broadcast %152 : vector<8x1x128xf32> to vector<8x8x128xf32>
    %154 = arith.cmpf oge, %150, %153 : vector<8x8x128xf32>
    %c8_i32_42 = arith.constant 8 : i32
    %155 = vector.broadcast %c8_i32_42 : i32 to vector<8x8x128xi32>
    %156 = arith.select %154, %7, %155 : vector<8x8x128xi1>, vector<8x8x128xi32>
    %cst_43 = arith.constant dense<2147483647> : vector<8x128xi32>
    %157 = vector.multi_reduction <minsi>, %156, %cst_43 [1] : vector<8x8x128xi32> to vector<8x128xi32>
    %158 = arith.index_cast %c3_i32 : i32 to index
    %c0_44 = arith.constant 0 : index
    %c0_45 = arith.constant 0 : index
    %159 = vector.load %arg8[%158, %c0_44, %c0_45] : memref<8x8x128xi32, #tpu.memory_space<vmem>>, vector<1x8x128xi32>
    %160 = vector.shape_cast %159 : vector<1x8x128xi32> to vector<8x128xi32>
    %161 = vector.shape_cast %157 : vector<8x128xi32> to vector<1x8x128xi32>
    tpu.vector_store %arg8[%158, %c0_44, %c0_45], %161 {strides = array<i32>} : memref<8x8x128xi32, #tpu.memory_space<vmem>>, vector<1x8x128xi32>,
    %162 = arith.index_cast %c3_i32 : i32 to index
    %c0_46 = arith.constant 0 : index
    %c0_47 = arith.constant 0 : index
    %163 = vector.load %arg1[%162, %c0_46, %c0_47] : memref<8x16x128xf32, #tpu.memory_space<vmem>>, vector<1x16x128xf32>
    %164 = vector.shape_cast %163 : vector<1x16x128xf32> to vector<16x128xf32>
    %165 = arith.mulf %164, %164 : vector<16x128xf32>
    %cst_48 = arith.constant dense<0.000000e+00> : vector<24x128xf32>
    %166 = tpu.matmul %0, %165, %cst_48 {dimension_numbers = #tpu.dot_dimension_numbers<[1], [0], [0], [1], [0, 0, 1, 1], [], []>} : vector<24x16xf32>, vector<16x128xf32>, vector<24x128xf32> -> vector<24x128xf32>
    %cst_49 = arith.constant dense<0.000000e+00> : vector<24x128xf32>
    %167 = tpu.matmul %1, %164, %cst_49 {dimension_numbers = #tpu.dot_dimension_numbers<[1], [0], [0], [1], [0, 0, 1, 1], [], []>} : vector<24x16xf32>, vector<16x128xf32>, vector<24x128xf32> -> vector<24x128xf32>
    %168 = arith.addf %166, %167 : vector<24x128xf32>
    %169 = vector.broadcast %2 : vector<24x1xf32> to vector<24x128xf32>
    %170 = arith.addf %168, %169 : vector<24x128xf32>
    %171 = vector.extract_strided_slice %170 {offsets = [0, 0], sizes = [8, 128], strides = [1, 1]} : vector<24x128xf32> to vector<8x128xf32>
    %172 = vector.extract_strided_slice %170 {offsets = [8, 0], sizes = [8, 128], strides = [1, 1]} : vector<24x128xf32> to vector<8x128xf32>
    %173 = arith.maximumf %171, %172 : vector<8x128xf32>
    %174 = vector.extract_strided_slice %170 {offsets = [16, 0], sizes = [8, 128], strides = [1, 1]} : vector<24x128xf32> to vector<8x128xf32>
    %175 = arith.maximumf %173, %174 : vector<8x128xf32>
    %176 = math.absf %175 : vector<8x128xf32>
    %cst_50 = arith.constant 0x7F800000 : f32
    %177 = vector.broadcast %cst_50 : f32 to vector<8x128xf32>
    %178 = arith.cmpf oeq, %176, %177 : vector<8x128xf32>
    %cst_51 = arith.constant 0.000000e+00 : f32
    %179 = vector.broadcast %cst_51 : f32 to vector<8x128xf32>
    %180 = arith.select %178, %179, %175 : vector<8x128xi1>, vector<8x128xf32>
    %cst_52 = arith.constant 0.000000e+00 : f32
    %181 = vector.broadcast %cst_52 : f32 to vector<8x128xf32>
    %182 = vector.extract_strided_slice %170 {offsets = [0, 0], sizes = [8, 128], strides = [1, 1]} : vector<24x128xf32> to vector<8x128xf32>
    %183 = arith.subf %182, %180 : vector<8x128xf32>
    %184 = math.exp %183 : vector<8x128xf32>
    %185 = arith.addf %181, %184 : vector<8x128xf32>
    %186 = vector.extract_strided_slice %170 {offsets = [8, 0], sizes = [8, 128], strides = [1, 1]} : vector<24x128xf32> to vector<8x128xf32>
    %187 = arith.subf %186, %180 : vector<8x128xf32>
    %188 = math.exp %187 : vector<8x128xf32>
    %189 = arith.addf %185, %188 : vector<8x128xf32>
    %190 = vector.extract_strided_slice %170 {offsets = [16, 0], sizes = [8, 128], strides = [1, 1]} : vector<24x128xf32> to vector<8x128xf32>
    %191 = arith.subf %190, %180 : vector<8x128xf32>
    %192 = math.exp %191 : vector<8x128xf32>
    %193 = arith.addf %189, %192 : vector<8x128xf32>
    %cst_53 = arith.constant 9.99999993E-9 : f32
    %194 = vector.broadcast %cst_53 : f32 to vector<8x128xf32>
    %195 = arith.maximumf %193, %194 : vector<8x128xf32>
    %196 = math.log %195 : vector<8x128xf32>
    %197 = arith.addf %196, %180 : vector<8x128xf32>
    %198 = arith.addf %151, %197 : vector<8x128xf32>
    %c4_i32 = arith.constant 4 : i32
    %199 = vector.shape_cast %198 : vector<8x128xf32> to vector<1x8x128xf32>
    %200 = vector.broadcast %199 : vector<1x8x128xf32> to vector<8x8x128xf32>
    %201 = arith.addf %6, %200 : vector<8x8x128xf32>
    %cst_54 = arith.constant dense<0xFF800000> : vector<8x128xf32>
    %202 = vector.multi_reduction <maximumf>, %201, %cst_54 [1] : vector<8x8x128xf32> to vector<8x128xf32>
    %203 = vector.shape_cast %202 : vector<8x128xf32> to vector<8x1x128xf32>
    %204 = vector.broadcast %203 : vector<8x1x128xf32> to vector<8x8x128xf32>
    %205 = arith.cmpf oge, %201, %204 : vector<8x8x128xf32>
    %c8_i32_55 = arith.constant 8 : i32
    %206 = vector.broadcast %c8_i32_55 : i32 to vector<8x8x128xi32>
    %207 = arith.select %205, %7, %206 : vector<8x8x128xi1>, vector<8x8x128xi32>
    %cst_56 = arith.constant dense<2147483647> : vector<8x128xi32>
    %208 = vector.multi_reduction <minsi>, %207, %cst_56 [1] : vector<8x8x128xi32> to vector<8x128xi32>
    %209 = arith.index_cast %c4_i32 : i32 to index
    %c0_57 = arith.constant 0 : index
    %c0_58 = arith.constant 0 : index
    %210 = vector.load %arg8[%209, %c0_57, %c0_58] : memref<8x8x128xi32, #tpu.memory_space<vmem>>, vector<1x8x128xi32>
    %211 = vector.shape_cast %210 : vector<1x8x128xi32> to vector<8x128xi32>
    %212 = vector.shape_cast %208 : vector<8x128xi32> to vector<1x8x128xi32>
    tpu.vector_store %arg8[%209, %c0_57, %c0_58], %212 {strides = array<i32>} : memref<8x8x128xi32, #tpu.memory_space<vmem>>, vector<1x8x128xi32>,
    %213 = arith.index_cast %c4_i32 : i32 to index
    %c0_59 = arith.constant 0 : index
    %c0_60 = arith.constant 0 : index
    %214 = vector.load %arg1[%213, %c0_59, %c0_60] : memref<8x16x128xf32, #tpu.memory_space<vmem>>, vector<1x16x128xf32>
    %215 = vector.shape_cast %214 : vector<1x16x128xf32> to vector<16x128xf32>
    %216 = arith.mulf %215, %215 : vector<16x128xf32>
    %cst_61 = arith.constant dense<0.000000e+00> : vector<24x128xf32>
    %217 = tpu.matmul %0, %216, %cst_61 {dimension_numbers = #tpu.dot_dimension_numbers<[1], [0], [0], [1], [0, 0, 1, 1], [], []>} : vector<24x16xf32>, vector<16x128xf32>, vector<24x128xf32> -> vector<24x128xf32>
    %cst_62 = arith.constant dense<0.000000e+00> : vector<24x128xf32>
    %218 = tpu.matmul %1, %215, %cst_62 {dimension_numbers = #tpu.dot_dimension_numbers<[1], [0], [0], [1], [0, 0, 1, 1], [], []>} : vector<24x16xf32>, vector<16x128xf32>, vector<24x128xf32> -> vector<24x128xf32>
    %219 = arith.addf %217, %218 : vector<24x128xf32>
    %220 = vector.broadcast %2 : vector<24x1xf32> to vector<24x128xf32>
    %221 = arith.addf %219, %220 : vector<24x128xf32>
    %222 = vector.extract_strided_slice %221 {offsets = [0, 0], sizes = [8, 128], strides = [1, 1]} : vector<24x128xf32> to vector<8x128xf32>
    %223 = vector.extract_strided_slice %221 {offsets = [8, 0], sizes = [8, 128], strides = [1, 1]} : vector<24x128xf32> to vector<8x128xf32>
    %224 = arith.maximumf %222, %223 : vector<8x128xf32>
    %225 = vector.extract_strided_slice %221 {offsets = [16, 0], sizes = [8, 128], strides = [1, 1]} : vector<24x128xf32> to vector<8x128xf32>
    %226 = arith.maximumf %224, %225 : vector<8x128xf32>
    %227 = math.absf %226 : vector<8x128xf32>
    %cst_63 = arith.constant 0x7F800000 : f32
    %228 = vector.broadcast %cst_63 : f32 to vector<8x128xf32>
    %229 = arith.cmpf oeq, %227, %228 : vector<8x128xf32>
    %cst_64 = arith.constant 0.000000e+00 : f32
    %230 = vector.broadcast %cst_64 : f32 to vector<8x128xf32>
    %231 = arith.select %229, %230, %226 : vector<8x128xi1>, vector<8x128xf32>
    %cst_65 = arith.constant 0.000000e+00 : f32
    %232 = vector.broadcast %cst_65 : f32 to vector<8x128xf32>
    %233 = vector.extract_strided_slice %221 {offsets = [0, 0], sizes = [8, 128], strides = [1, 1]} : vector<24x128xf32> to vector<8x128xf32>
    %234 = arith.subf %233, %231 : vector<8x128xf32>
    %235 = math.exp %234 : vector<8x128xf32>
    %236 = arith.addf %232, %235 : vector<8x128xf32>
    %237 = vector.extract_strided_slice %221 {offsets = [8, 0], sizes = [8, 128], strides = [1, 1]} : vector<24x128xf32> to vector<8x128xf32>
    %238 = arith.subf %237, %231 : vector<8x128xf32>
    %239 = math.exp %238 : vector<8x128xf32>
    %240 = arith.addf %236, %239 : vector<8x128xf32>
    %241 = vector.extract_strided_slice %221 {offsets = [16, 0], sizes = [8, 128], strides = [1, 1]} : vector<24x128xf32> to vector<8x128xf32>
    %242 = arith.subf %241, %231 : vector<8x128xf32>
    %243 = math.exp %242 : vector<8x128xf32>
    %244 = arith.addf %240, %243 : vector<8x128xf32>
    %cst_66 = arith.constant 9.99999993E-9 : f32
    %245 = vector.broadcast %cst_66 : f32 to vector<8x128xf32>
    %246 = arith.maximumf %244, %245 : vector<8x128xf32>
    %247 = math.log %246 : vector<8x128xf32>
    %248 = arith.addf %247, %231 : vector<8x128xf32>
    %249 = arith.addf %202, %248 : vector<8x128xf32>
    %c5_i32 = arith.constant 5 : i32
    %250 = vector.shape_cast %249 : vector<8x128xf32> to vector<1x8x128xf32>
    %251 = vector.broadcast %250 : vector<1x8x128xf32> to vector<8x8x128xf32>
    %252 = arith.addf %6, %251 : vector<8x8x128xf32>
    %cst_67 = arith.constant dense<0xFF800000> : vector<8x128xf32>
    %253 = vector.multi_reduction <maximumf>, %252, %cst_67 [1] : vector<8x8x128xf32> to vector<8x128xf32>
    %254 = vector.shape_cast %253 : vector<8x128xf32> to vector<8x1x128xf32>
    %255 = vector.broadcast %254 : vector<8x1x128xf32> to vector<8x8x128xf32>
    %256 = arith.cmpf oge, %252, %255 : vector<8x8x128xf32>
    %c8_i32_68 = arith.constant 8 : i32
    %257 = vector.broadcast %c8_i32_68 : i32 to vector<8x8x128xi32>
    %258 = arith.select %256, %7, %257 : vector<8x8x128xi1>, vector<8x8x128xi32>
    %cst_69 = arith.constant dense<2147483647> : vector<8x128xi32>
    %259 = vector.multi_reduction <minsi>, %258, %cst_69 [1] : vector<8x8x128xi32> to vector<8x128xi32>
    %260 = arith.index_cast %c5_i32 : i32 to index
    %c0_70 = arith.constant 0 : index
    %c0_71 = arith.constant 0 : index
    %261 = vector.load %arg8[%260, %c0_70, %c0_71] : memref<8x8x128xi32, #tpu.memory_space<vmem>>, vector<1x8x128xi32>
    %262 = vector.shape_cast %261 : vector<1x8x128xi32> to vector<8x128xi32>
    %263 = vector.shape_cast %259 : vector<8x128xi32> to vector<1x8x128xi32>
    tpu.vector_store %arg8[%260, %c0_70, %c0_71], %263 {strides = array<i32>} : memref<8x8x128xi32, #tpu.memory_space<vmem>>, vector<1x8x128xi32>,
    %264 = arith.index_cast %c5_i32 : i32 to index
    %c0_72 = arith.constant 0 : index
    %c0_73 = arith.constant 0 : index
    %265 = vector.load %arg1[%264, %c0_72, %c0_73] : memref<8x16x128xf32, #tpu.memory_space<vmem>>, vector<1x16x128xf32>
    %266 = vector.shape_cast %265 : vector<1x16x128xf32> to vector<16x128xf32>
    %267 = arith.mulf %266, %266 : vector<16x128xf32>
    %cst_74 = arith.constant dense<0.000000e+00> : vector<24x128xf32>
    %268 = tpu.matmul %0, %267, %cst_74 {dimension_numbers = #tpu.dot_dimension_numbers<[1], [0], [0], [1], [0, 0, 1, 1], [], []>} : vector<24x16xf32>, vector<16x128xf32>, vector<24x128xf32> -> vector<24x128xf32>
    %cst_75 = arith.constant dense<0.000000e+00> : vector<24x128xf32>
    %269 = tpu.matmul %1, %266, %cst_75 {dimension_numbers = #tpu.dot_dimension_numbers<[1], [0], [0], [1], [0, 0, 1, 1], [], []>} : vector<24x16xf32>, vector<16x128xf32>, vector<24x128xf32> -> vector<24x128xf32>
    %270 = arith.addf %268, %269 : vector<24x128xf32>
    %271 = vector.broadcast %2 : vector<24x1xf32> to vector<24x128xf32>
    %272 = arith.addf %270, %271 : vector<24x128xf32>
    %273 = vector.extract_strided_slice %272 {offsets = [0, 0], sizes = [8, 128], strides = [1, 1]} : vector<24x128xf32> to vector<8x128xf32>
    %274 = vector.extract_strided_slice %272 {offsets = [8, 0], sizes = [8, 128], strides = [1, 1]} : vector<24x128xf32> to vector<8x128xf32>
    %275 = arith.maximumf %273, %274 : vector<8x128xf32>
    %276 = vector.extract_strided_slice %272 {offsets = [16, 0], sizes = [8, 128], strides = [1, 1]} : vector<24x128xf32> to vector<8x128xf32>
    %277 = arith.maximumf %275, %276 : vector<8x128xf32>
    %278 = math.absf %277 : vector<8x128xf32>
    %cst_76 = arith.constant 0x7F800000 : f32
    %279 = vector.broadcast %cst_76 : f32 to vector<8x128xf32>
    %280 = arith.cmpf oeq, %278, %279 : vector<8x128xf32>
    %cst_77 = arith.constant 0.000000e+00 : f32
    %281 = vector.broadcast %cst_77 : f32 to vector<8x128xf32>
    %282 = arith.select %280, %281, %277 : vector<8x128xi1>, vector<8x128xf32>
    %cst_78 = arith.constant 0.000000e+00 : f32
    %283 = vector.broadcast %cst_78 : f32 to vector<8x128xf32>
    %284 = vector.extract_strided_slice %272 {offsets = [0, 0], sizes = [8, 128], strides = [1, 1]} : vector<24x128xf32> to vector<8x128xf32>
    %285 = arith.subf %284, %282 : vector<8x128xf32>
    %286 = math.exp %285 : vector<8x128xf32>
    %287 = arith.addf %283, %286 : vector<8x128xf32>
    %288 = vector.extract_strided_slice %272 {offsets = [8, 0], sizes = [8, 128], strides = [1, 1]} : vector<24x128xf32> to vector<8x128xf32>
    %289 = arith.subf %288, %282 : vector<8x128xf32>
    %290 = math.exp %289 : vector<8x128xf32>
    %291 = arith.addf %287, %290 : vector<8x128xf32>
    %292 = vector.extract_strided_slice %272 {offsets = [16, 0], sizes = [8, 128], strides = [1, 1]} : vector<24x128xf32> to vector<8x128xf32>
    %293 = arith.subf %292, %282 : vector<8x128xf32>
    %294 = math.exp %293 : vector<8x128xf32>
    %295 = arith.addf %291, %294 : vector<8x128xf32>
    %cst_79 = arith.constant 9.99999993E-9 : f32
    %296 = vector.broadcast %cst_79 : f32 to vector<8x128xf32>
    %297 = arith.maximumf %295, %296 : vector<8x128xf32>
    %298 = math.log %297 : vector<8x128xf32>
    %299 = arith.addf %298, %282 : vector<8x128xf32>
    %300 = arith.addf %253, %299 : vector<8x128xf32>
    %c6_i32 = arith.constant 6 : i32
    %301 = vector.shape_cast %300 : vector<8x128xf32> to vector<1x8x128xf32>
    %302 = vector.broadcast %301 : vector<1x8x128xf32> to vector<8x8x128xf32>
    %303 = arith.addf %6, %302 : vector<8x8x128xf32>
    %cst_80 = arith.constant dense<0xFF800000> : vector<8x128xf32>
    %304 = vector.multi_reduction <maximumf>, %303, %cst_80 [1] : vector<8x8x128xf32> to vector<8x128xf32>
    %305 = vector.shape_cast %304 : vector<8x128xf32> to vector<8x1x128xf32>
    %306 = vector.broadcast %305 : vector<8x1x128xf32> to vector<8x8x128xf32>
    %307 = arith.cmpf oge, %303, %306 : vector<8x8x128xf32>
    %c8_i32_81 = arith.constant 8 : i32
    %308 = vector.broadcast %c8_i32_81 : i32 to vector<8x8x128xi32>
    %309 = arith.select %307, %7, %308 : vector<8x8x128xi1>, vector<8x8x128xi32>
    %cst_82 = arith.constant dense<2147483647> : vector<8x128xi32>
    %310 = vector.multi_reduction <minsi>, %309, %cst_82 [1] : vector<8x8x128xi32> to vector<8x128xi32>
    %311 = arith.index_cast %c6_i32 : i32 to index
    %c0_83 = arith.constant 0 : index
    %c0_84 = arith.constant 0 : index
    %312 = vector.load %arg8[%311, %c0_83, %c0_84] : memref<8x8x128xi32, #tpu.memory_space<vmem>>, vector<1x8x128xi32>
    %313 = vector.shape_cast %312 : vector<1x8x128xi32> to vector<8x128xi32>
    %314 = vector.shape_cast %310 : vector<8x128xi32> to vector<1x8x128xi32>
    tpu.vector_store %arg8[%311, %c0_83, %c0_84], %314 {strides = array<i32>} : memref<8x8x128xi32, #tpu.memory_space<vmem>>, vector<1x8x128xi32>,
    %315 = arith.index_cast %c6_i32 : i32 to index
    %c0_85 = arith.constant 0 : index
    %c0_86 = arith.constant 0 : index
    %316 = vector.load %arg1[%315, %c0_85, %c0_86] : memref<8x16x128xf32, #tpu.memory_space<vmem>>, vector<1x16x128xf32>
    %317 = vector.shape_cast %316 : vector<1x16x128xf32> to vector<16x128xf32>
    %318 = arith.mulf %317, %317 : vector<16x128xf32>
    %cst_87 = arith.constant dense<0.000000e+00> : vector<24x128xf32>
    %319 = tpu.matmul %0, %318, %cst_87 {dimension_numbers = #tpu.dot_dimension_numbers<[1], [0], [0], [1], [0, 0, 1, 1], [], []>} : vector<24x16xf32>, vector<16x128xf32>, vector<24x128xf32> -> vector<24x128xf32>
    %cst_88 = arith.constant dense<0.000000e+00> : vector<24x128xf32>
    %320 = tpu.matmul %1, %317, %cst_88 {dimension_numbers = #tpu.dot_dimension_numbers<[1], [0], [0], [1], [0, 0, 1, 1], [], []>} : vector<24x16xf32>, vector<16x128xf32>, vector<24x128xf32> -> vector<24x128xf32>
    %321 = arith.addf %319, %320 : vector<24x128xf32>
    %322 = vector.broadcast %2 : vector<24x1xf32> to vector<24x128xf32>
    %323 = arith.addf %321, %322 : vector<24x128xf32>
    %324 = vector.extract_strided_slice %323 {offsets = [0, 0], sizes = [8, 128], strides = [1, 1]} : vector<24x128xf32> to vector<8x128xf32>
    %325 = vector.extract_strided_slice %323 {offsets = [8, 0], sizes = [8, 128], strides = [1, 1]} : vector<24x128xf32> to vector<8x128xf32>
    %326 = arith.maximumf %324, %325 : vector<8x128xf32>
    %327 = vector.extract_strided_slice %323 {offsets = [16, 0], sizes = [8, 128], strides = [1, 1]} : vector<24x128xf32> to vector<8x128xf32>
    %328 = arith.maximumf %326, %327 : vector<8x128xf32>
    %329 = math.absf %328 : vector<8x128xf32>
    %cst_89 = arith.constant 0x7F800000 : f32
    %330 = vector.broadcast %cst_89 : f32 to vector<8x128xf32>
    %331 = arith.cmpf oeq, %329, %330 : vector<8x128xf32>
    %cst_90 = arith.constant 0.000000e+00 : f32
    %332 = vector.broadcast %cst_90 : f32 to vector<8x128xf32>
    %333 = arith.select %331, %332, %328 : vector<8x128xi1>, vector<8x128xf32>
    %cst_91 = arith.constant 0.000000e+00 : f32
    %334 = vector.broadcast %cst_91 : f32 to vector<8x128xf32>
    %335 = vector.extract_strided_slice %323 {offsets = [0, 0], sizes = [8, 128], strides = [1, 1]} : vector<24x128xf32> to vector<8x128xf32>
    %336 = arith.subf %335, %333 : vector<8x128xf32>
    %337 = math.exp %336 : vector<8x128xf32>
    %338 = arith.addf %334, %337 : vector<8x128xf32>
    %339 = vector.extract_strided_slice %323 {offsets = [8, 0], sizes = [8, 128], strides = [1, 1]} : vector<24x128xf32> to vector<8x128xf32>
    %340 = arith.subf %339, %333 : vector<8x128xf32>
    %341 = math.exp %340 : vector<8x128xf32>
    %342 = arith.addf %338, %341 : vector<8x128xf32>
    %343 = vector.extract_strided_slice %323 {offsets = [16, 0], sizes = [8, 128], strides = [1, 1]} : vector<24x128xf32> to vector<8x128xf32>
    %344 = arith.subf %343, %333 : vector<8x128xf32>
    %345 = math.exp %344 : vector<8x128xf32>
    %346 = arith.addf %342, %345 : vector<8x128xf32>
    %cst_92 = arith.constant 9.99999993E-9 : f32
    %347 = vector.broadcast %cst_92 : f32 to vector<8x128xf32>
    %348 = arith.maximumf %346, %347 : vector<8x128xf32>
    %349 = math.log %348 : vector<8x128xf32>
    %350 = arith.addf %349, %333 : vector<8x128xf32>
    %351 = arith.addf %304, %350 : vector<8x128xf32>
    %c7_i32 = arith.constant 7 : i32
    %352 = vector.shape_cast %351 : vector<8x128xf32> to vector<1x8x128xf32>
    %353 = vector.broadcast %352 : vector<1x8x128xf32> to vector<8x8x128xf32>
    %354 = arith.addf %6, %353 : vector<8x8x128xf32>
    %cst_93 = arith.constant dense<0xFF800000> : vector<8x128xf32>
    %355 = vector.multi_reduction <maximumf>, %354, %cst_93 [1] : vector<8x8x128xf32> to vector<8x128xf32>
    %356 = vector.shape_cast %355 : vector<8x128xf32> to vector<8x1x128xf32>
    %357 = vector.broadcast %356 : vector<8x1x128xf32> to vector<8x8x128xf32>
    %358 = arith.cmpf oge, %354, %357 : vector<8x8x128xf32>
    %c8_i32_94 = arith.constant 8 : i32
    %359 = vector.broadcast %c8_i32_94 : i32 to vector<8x8x128xi32>
    %360 = arith.select %358, %7, %359 : vector<8x8x128xi1>, vector<8x8x128xi32>
    %cst_95 = arith.constant dense<2147483647> : vector<8x128xi32>
    %361 = vector.multi_reduction <minsi>, %360, %cst_95 [1] : vector<8x8x128xi32> to vector<8x128xi32>
    %362 = arith.index_cast %c7_i32 : i32 to index
    %c0_96 = arith.constant 0 : index
    %c0_97 = arith.constant 0 : index
    %363 = vector.load %arg8[%362, %c0_96, %c0_97] : memref<8x8x128xi32, #tpu.memory_space<vmem>>, vector<1x8x128xi32>
    %364 = vector.shape_cast %363 : vector<1x8x128xi32> to vector<8x128xi32>
    %365 = vector.shape_cast %361 : vector<8x128xi32> to vector<1x8x128xi32>
    tpu.vector_store %arg8[%362, %c0_96, %c0_97], %365 {strides = array<i32>} : memref<8x8x128xi32, #tpu.memory_space<vmem>>, vector<1x8x128xi32>,
    %366 = arith.index_cast %c7_i32 : i32 to index
    %c0_98 = arith.constant 0 : index
    %c0_99 = arith.constant 0 : index
    %367 = vector.load %arg1[%366, %c0_98, %c0_99] : memref<8x16x128xf32, #tpu.memory_space<vmem>>, vector<1x16x128xf32>
    %368 = vector.shape_cast %367 : vector<1x16x128xf32> to vector<16x128xf32>
    %369 = arith.mulf %368, %368 : vector<16x128xf32>
    %cst_100 = arith.constant dense<0.000000e+00> : vector<24x128xf32>
    %370 = tpu.matmul %0, %369, %cst_100 {dimension_numbers = #tpu.dot_dimension_numbers<[1], [0], [0], [1], [0, 0, 1, 1], [], []>} : vector<24x16xf32>, vector<16x128xf32>, vector<24x128xf32> -> vector<24x128xf32>
    %cst_101 = arith.constant dense<0.000000e+00> : vector<24x128xf32>
    %371 = tpu.matmul %1, %368, %cst_101 {dimension_numbers = #tpu.dot_dimension_numbers<[1], [0], [0], [1], [0, 0, 1, 1], [], []>} : vector<24x16xf32>, vector<16x128xf32>, vector<24x128xf32> -> vector<24x128xf32>
    %372 = arith.addf %370, %371 : vector<24x128xf32>
    %373 = vector.broadcast %2 : vector<24x1xf32> to vector<24x128xf32>
    %374 = arith.addf %372, %373 : vector<24x128xf32>
    %375 = vector.extract_strided_slice %374 {offsets = [0, 0], sizes = [8, 128], strides = [1, 1]} : vector<24x128xf32> to vector<8x128xf32>
    %376 = vector.extract_strided_slice %374 {offsets = [8, 0], sizes = [8, 128], strides = [1, 1]} : vector<24x128xf32> to vector<8x128xf32>
    %377 = arith.maximumf %375, %376 : vector<8x128xf32>
    %378 = vector.extract_strided_slice %374 {offsets = [16, 0], sizes = [8, 128], strides = [1, 1]} : vector<24x128xf32> to vector<8x128xf32>
    %379 = arith.maximumf %377, %378 : vector<8x128xf32>
    %380 = math.absf %379 : vector<8x128xf32>
    %cst_102 = arith.constant 0x7F800000 : f32
    %381 = vector.broadcast %cst_102 : f32 to vector<8x128xf32>
    %382 = arith.cmpf oeq, %380, %381 : vector<8x128xf32>
    %cst_103 = arith.constant 0.000000e+00 : f32
    %383 = vector.broadcast %cst_103 : f32 to vector<8x128xf32>
    %384 = arith.select %382, %383, %379 : vector<8x128xi1>, vector<8x128xf32>
    %cst_104 = arith.constant 0.000000e+00 : f32
    %385 = vector.broadcast %cst_104 : f32 to vector<8x128xf32>
    %386 = vector.extract_strided_slice %374 {offsets = [0, 0], sizes = [8, 128], strides = [1, 1]} : vector<24x128xf32> to vector<8x128xf32>
    %387 = arith.subf %386, %384 : vector<8x128xf32>
    %388 = math.exp %387 : vector<8x128xf32>
    %389 = arith.addf %385, %388 : vector<8x128xf32>
    %390 = vector.extract_strided_slice %374 {offsets = [8, 0], sizes = [8, 128], strides = [1, 1]} : vector<24x128xf32> to vector<8x128xf32>
    %391 = arith.subf %390, %384 : vector<8x128xf32>
    %392 = math.exp %391 : vector<8x128xf32>
    %393 = arith.addf %389, %392 : vector<8x128xf32>
    %394 = vector.extract_strided_slice %374 {offsets = [16, 0], sizes = [8, 128], strides = [1, 1]} : vector<24x128xf32> to vector<8x128xf32>
    %395 = arith.subf %394, %384 : vector<8x128xf32>
    %396 = math.exp %395 : vector<8x128xf32>
    %397 = arith.addf %393, %396 : vector<8x128xf32>
    %cst_105 = arith.constant 9.99999993E-9 : f32
    %398 = vector.broadcast %cst_105 : f32 to vector<8x128xf32>
    %399 = arith.maximumf %397, %398 : vector<8x128xf32>
    %400 = math.log %399 : vector<8x128xf32>
    %401 = arith.addf %400, %384 : vector<8x128xf32>
    %402 = arith.addf %355, %401 : vector<8x128xf32>
    %c7_i32_106 = arith.constant 7 : i32
    %cst_107 = arith.constant dense<0xFF800000> : vector<128xf32>
    %403 = vector.multi_reduction <maximumf>, %402, %cst_107 [0] : vector<8x128xf32> to vector<128xf32>
    %404 = vector.shape_cast %403 : vector<128xf32> to vector<1x128xf32>
    %405 = vector.broadcast %404 : vector<1x128xf32> to vector<8x128xf32>
    %406 = arith.cmpf oge, %402, %405 : vector<8x128xf32>
    %c8_i32_108 = arith.constant 8 : i32
    %407 = vector.broadcast %c8_i32_108 : i32 to vector<8x128xi32>
    %408 = arith.select %406, %8, %407 : vector<8x128xi1>, vector<8x128xi32>
    %cst_109 = arith.constant dense<2147483647> : vector<128xi32>
    %409 = vector.multi_reduction <minsi>, %408, %cst_109 [0] : vector<8x128xi32> to vector<128xi32>
    %410 = vector.shape_cast %409 : vector<128xi32> to vector<1x128xi32>
    %c0_110 = arith.constant 0 : index
    %c0_111 = arith.constant 0 : index
    %411 = vector.load %arg7[%c0_110, %c0_111] : memref<1x128xf32, #tpu.memory_space<vmem>>, vector<1x128xf32>
    tpu.vector_store %arg7[%c0_110, %c0_111], %404 {strides = array<i32>} : memref<1x128xf32, #tpu.memory_space<vmem>>, vector<1x128xf32>,
    %c7 = arith.constant 7 : index
    %c0_112 = arith.constant 0 : index
    %412 = vector.load %arg6[%c7, %c0_112] : memref<8x128xi32, #tpu.memory_space<vmem>>, vector<1x128xi32>
    tpu.vector_store %arg6[%c7, %c0_112], %410 {strides = array<i32>} : memref<8x128xi32, #tpu.memory_space<vmem>>, vector<1x128xi32>,
    %c0_i32 = arith.constant 0 : i32
    %c6_i32_113 = arith.constant 6 : i32
    %413 = arith.subi %c6_i32_113, %c0_i32 : i32
    %c1_i32_114 = arith.constant 1 : i32
    %414 = arith.addi %413, %c1_i32_114 : i32
    %415 = arith.index_cast %414 : i32 to index
    %c0_115 = arith.constant 0 : index
    %c0_116 = arith.constant 0 : index
    %416 = vector.load %arg8[%415, %c0_115, %c0_116] : memref<8x8x128xi32, #tpu.memory_space<vmem>>, vector<1x8x128xi32>
    %417 = vector.shape_cast %416 : vector<1x8x128xi32> to vector<8x128xi32>
    %418 = vector.broadcast %410 : vector<1x128xi32> to vector<8x128xi32>
    %419 = arith.cmpi eq, %8, %418 : vector<8x128xi32>
    %c0_i32_117 = arith.constant 0 : i32
    %420 = vector.broadcast %c0_i32_117 : i32 to vector<8x128xi32>
    %421 = arith.select %419, %417, %420 : vector<8x128xi1>, vector<8x128xi32>
    %cst_118 = arith.constant dense<0> : vector<128xi32>
    %422 = vector.multi_reduction <add>, %421, %cst_118 [0] : vector<8x128xi32> to vector<128xi32>
    %423 = vector.shape_cast %422 : vector<128xi32> to vector<1x128xi32>
    %424 = arith.index_cast %413 : i32 to index
    %c0_119 = arith.constant 0 : index
    %425 = vector.load %arg6[%424, %c0_119] : memref<8x128xi32, #tpu.memory_space<vmem>>, vector<1x128xi32>
    tpu.vector_store %arg6[%424, %c0_119], %423 {strides = array<i32>} : memref<8x128xi32, #tpu.memory_space<vmem>>, vector<1x128xi32>,
    %c1_i32_120 = arith.constant 1 : i32
    %c6_i32_121 = arith.constant 6 : i32
    %426 = arith.subi %c6_i32_121, %c1_i32_120 : i32
    %c1_i32_122 = arith.constant 1 : i32
    %427 = arith.addi %426, %c1_i32_122 : i32
    %428 = arith.index_cast %427 : i32 to index
    %c0_123 = arith.constant 0 : index
    %c0_124 = arith.constant 0 : index
    %429 = vector.load %arg8[%428, %c0_123, %c0_124] : memref<8x8x128xi32, #tpu.memory_space<vmem>>, vector<1x8x128xi32>
    %430 = vector.shape_cast %429 : vector<1x8x128xi32> to vector<8x128xi32>
    %431 = vector.broadcast %423 : vector<1x128xi32> to vector<8x128xi32>
    %432 = arith.cmpi eq, %8, %431 : vector<8x128xi32>
    %c0_i32_125 = arith.constant 0 : i32
    %433 = vector.broadcast %c0_i32_125 : i32 to vector<8x128xi32>
    %434 = arith.select %432, %430, %433 : vector<8x128xi1>, vector<8x128xi32>
    %cst_126 = arith.constant dense<0> : vector<128xi32>
    %435 = vector.multi_reduction <add>, %434, %cst_126 [0] : vector<8x128xi32> to vector<128xi32>
    %436 = vector.shape_cast %435 : vector<128xi32> to vector<1x128xi32>
    %437 = arith.index_cast %426 : i32 to index
    %c0_127 = arith.constant 0 : index
    %438 = vector.load %arg6[%437, %c0_127] : memref<8x128xi32, #tpu.memory_space<vmem>>, vector<1x128xi32>
    tpu.vector_store %arg6[%437, %c0_127], %436 {strides = array<i32>} : memref<8x128xi32, #tpu.memory_space<vmem>>, vector<1x128xi32>,
    %c2_i32_128 = arith.constant 2 : i32
    %c6_i32_129 = arith.constant 6 : i32
    %439 = arith.subi %c6_i32_129, %c2_i32_128 : i32
    %c1_i32_130 = arith.constant 1 : i32
    %440 = arith.addi %439, %c1_i32_130 : i32
    %441 = arith.index_cast %440 : i32 to index
    %c0_131 = arith.constant 0 : index
    %c0_132 = arith.constant 0 : index
    %442 = vector.load %arg8[%441, %c0_131, %c0_132] : memref<8x8x128xi32, #tpu.memory_space<vmem>>, vector<1x8x128xi32>
    %443 = vector.shape_cast %442 : vector<1x8x128xi32> to vector<8x128xi32>
    %444 = vector.broadcast %436 : vector<1x128xi32> to vector<8x128xi32>
    %445 = arith.cmpi eq, %8, %444 : vector<8x128xi32>
    %c0_i32_133 = arith.constant 0 : i32
    %446 = vector.broadcast %c0_i32_133 : i32 to vector<8x128xi32>
    %447 = arith.select %445, %443, %446 : vector<8x128xi1>, vector<8x128xi32>
    %cst_134 = arith.constant dense<0> : vector<128xi32>
    %448 = vector.multi_reduction <add>, %447, %cst_134 [0] : vector<8x128xi32> to vector<128xi32>
    %449 = vector.shape_cast %448 : vector<128xi32> to vector<1x128xi32>
    %450 = arith.index_cast %439 : i32 to index
    %c0_135 = arith.constant 0 : index
    %451 = vector.load %arg6[%450, %c0_135] : memref<8x128xi32, #tpu.memory_space<vmem>>, vector<1x128xi32>
    tpu.vector_store %arg6[%450, %c0_135], %449 {strides = array<i32>} : memref<8x128xi32, #tpu.memory_space<vmem>>, vector<1x128xi32>,
    %c3_i32_136 = arith.constant 3 : i32
    %c6_i32_137 = arith.constant 6 : i32
    %452 = arith.subi %c6_i32_137, %c3_i32_136 : i32
    %c1_i32_138 = arith.constant 1 : i32
    %453 = arith.addi %452, %c1_i32_138 : i32
    %454 = arith.index_cast %453 : i32 to index
    %c0_139 = arith.constant 0 : index
    %c0_140 = arith.constant 0 : index
    %455 = vector.load %arg8[%454, %c0_139, %c0_140] : memref<8x8x128xi32, #tpu.memory_space<vmem>>, vector<1x8x128xi32>
    %456 = vector.shape_cast %455 : vector<1x8x128xi32> to vector<8x128xi32>
    %457 = vector.broadcast %449 : vector<1x128xi32> to vector<8x128xi32>
    %458 = arith.cmpi eq, %8, %457 : vector<8x128xi32>
    %c0_i32_141 = arith.constant 0 : i32
    %459 = vector.broadcast %c0_i32_141 : i32 to vector<8x128xi32>
    %460 = arith.select %458, %456, %459 : vector<8x128xi1>, vector<8x128xi32>
    %cst_142 = arith.constant dense<0> : vector<128xi32>
    %461 = vector.multi_reduction <add>, %460, %cst_142 [0] : vector<8x128xi32> to vector<128xi32>
    %462 = vector.shape_cast %461 : vector<128xi32> to vector<1x128xi32>
    %463 = arith.index_cast %452 : i32 to index
    %c0_143 = arith.constant 0 : index
    %464 = vector.load %arg6[%463, %c0_143] : memref<8x128xi32, #tpu.memory_space<vmem>>, vector<1x128xi32>
    tpu.vector_store %arg6[%463, %c0_143], %462 {strides = array<i32>} : memref<8x128xi32, #tpu.memory_space<vmem>>, vector<1x128xi32>,
    %c4_i32_144 = arith.constant 4 : i32
    %c6_i32_145 = arith.constant 6 : i32
    %465 = arith.subi %c6_i32_145, %c4_i32_144 : i32
    %c1_i32_146 = arith.constant 1 : i32
    %466 = arith.addi %465, %c1_i32_146 : i32
    %467 = arith.index_cast %466 : i32 to index
    %c0_147 = arith.constant 0 : index
    %c0_148 = arith.constant 0 : index
    %468 = vector.load %arg8[%467, %c0_147, %c0_148] : memref<8x8x128xi32, #tpu.memory_space<vmem>>, vector<1x8x128xi32>
    %469 = vector.shape_cast %468 : vector<1x8x128xi32> to vector<8x128xi32>
    %470 = vector.broadcast %462 : vector<1x128xi32> to vector<8x128xi32>
    %471 = arith.cmpi eq, %8, %470 : vector<8x128xi32>
    %c0_i32_149 = arith.constant 0 : i32
    %472 = vector.broadcast %c0_i32_149 : i32 to vector<8x128xi32>
    %473 = arith.select %471, %469, %472 : vector<8x128xi1>, vector<8x128xi32>
    %cst_150 = arith.constant dense<0> : vector<128xi32>
    %474 = vector.multi_reduction <add>, %473, %cst_150 [0] : vector<8x128xi32> to vector<128xi32>
    %475 = vector.shape_cast %474 : vector<128xi32> to vector<1x128xi32>
    %476 = arith.index_cast %465 : i32 to index
    %c0_151 = arith.constant 0 : index
    %477 = vector.load %arg6[%476, %c0_151] : memref<8x128xi32, #tpu.memory_space<vmem>>, vector<1x128xi32>
    tpu.vector_store %arg6[%476, %c0_151], %475 {strides = array<i32>} : memref<8x128xi32, #tpu.memory_space<vmem>>, vector<1x128xi32>,
    %c5_i32_152 = arith.constant 5 : i32
    %c6_i32_153 = arith.constant 6 : i32
    %478 = arith.subi %c6_i32_153, %c5_i32_152 : i32
    %c1_i32_154 = arith.constant 1 : i32
    %479 = arith.addi %478, %c1_i32_154 : i32
    %480 = arith.index_cast %479 : i32 to index
    %c0_155 = arith.constant 0 : index
    %c0_156 = arith.constant 0 : index
    %481 = vector.load %arg8[%480, %c0_155, %c0_156] : memref<8x8x128xi32, #tpu.memory_space<vmem>>, vector<1x8x128xi32>
    %482 = vector.shape_cast %481 : vector<1x8x128xi32> to vector<8x128xi32>
    %483 = vector.broadcast %475 : vector<1x128xi32> to vector<8x128xi32>
    %484 = arith.cmpi eq, %8, %483 : vector<8x128xi32>
    %c0_i32_157 = arith.constant 0 : i32
    %485 = vector.broadcast %c0_i32_157 : i32 to vector<8x128xi32>
    %486 = arith.select %484, %482, %485 : vector<8x128xi1>, vector<8x128xi32>
    %cst_158 = arith.constant dense<0> : vector<128xi32>
    %487 = vector.multi_reduction <add>, %486, %cst_158 [0] : vector<8x128xi32> to vector<128xi32>
    %488 = vector.shape_cast %487 : vector<128xi32> to vector<1x128xi32>
    %489 = arith.index_cast %478 : i32 to index
    %c0_159 = arith.constant 0 : index
    %490 = vector.load %arg6[%489, %c0_159] : memref<8x128xi32, #tpu.memory_space<vmem>>, vector<1x128xi32>
    tpu.vector_store %arg6[%489, %c0_159], %488 {strides = array<i32>} : memref<8x128xi32, #tpu.memory_space<vmem>>, vector<1x128xi32>,
    %c6_i32_160 = arith.constant 6 : i32
    %c6_i32_161 = arith.constant 6 : i32
    %491 = arith.subi %c6_i32_161, %c6_i32_160 : i32
    %c1_i32_162 = arith.constant 1 : i32
    %492 = arith.addi %491, %c1_i32_162 : i32
    %493 = arith.index_cast %492 : i32 to index
    %c0_163 = arith.constant 0 : index
    %c0_164 = arith.constant 0 : index
    %494 = vector.load %arg8[%493, %c0_163, %c0_164] : memref<8x8x128xi32, #tpu.memory_space<vmem>>, vector<1x8x128xi32>
    %495 = vector.shape_cast %494 : vector<1x8x128xi32> to vector<8x128xi32>
    %496 = vector.broadcast %488 : vector<1x128xi32> to vector<8x128xi32>
    %497 = arith.cmpi eq, %8, %496 : vector<8x128xi32>
    %c0_i32_165 = arith.constant 0 : i32
    %498 = vector.broadcast %c0_i32_165 : i32 to vector<8x128xi32>
    %499 = arith.select %497, %495, %498 : vector<8x128xi1>, vector<8x128xi32>
    %cst_166 = arith.constant dense<0> : vector<128xi32>
    %500 = vector.multi_reduction <add>, %499, %cst_166 [0] : vector<8x128xi32> to vector<128xi32>
    %501 = vector.shape_cast %500 : vector<128xi32> to vector<1x128xi32>
    %502 = arith.index_cast %491 : i32 to index
    %c0_167 = arith.constant 0 : index
    %503 = vector.load %arg6[%502, %c0_167] : memref<8x128xi32, #tpu.memory_space<vmem>>, vector<1x128xi32>
    tpu.vector_store %arg6[%502, %c0_167], %501 {strides = array<i32>} : memref<8x128xi32, #tpu.memory_space<vmem>>, vector<1x128xi32>,
    %c7_i32_168 = arith.constant 7 : i32
    return
  }
  func.func @transform_0(%arg0: i32) -> (i32, i32, i32) {
    %c0_i32 = arith.constant 0 : i32
    %c0_i32_0 = arith.constant 0 : i32
    %c0_i32_1 = arith.constant 0 : i32
    return %c0_i32, %c0_i32_0, %arg0 : i32, i32, i32
  }
  func.func @transform_1(%arg0: i32) -> (i32, i32) {
    %c0_i32 = arith.constant 0 : i32
    %c0_i32_0 = arith.constant 0 : i32
    %c0_i32_1 = arith.constant 0 : i32
    return %c0_i32, %c0_i32_0 : i32, i32
  }
  func.func @transform_2(%arg0: i32) -> (i32, i32) {
    %c0_i32 = arith.constant 0 : i32
    %c0_i32_0 = arith.constant 0 : i32
    %c0_i32_1 = arith.constant 0 : i32
    return %c0_i32, %c0_i32_0 : i32, i32
  }
  func.func @transform_3(%arg0: i32) -> (i32, i32) {
    %c0_i32 = arith.constant 0 : i32
    %c0_i32_0 = arith.constant 0 : i32
    %c0_i32_1 = arith.constant 0 : i32
    return %c0_i32, %c0_i32_0 : i32, i32
  }
  func.func @transform_4(%arg0: i32) -> (i32, i32) {
    %c0_i32 = arith.constant 0 : i32
    %c0_i32_0 = arith.constant 0 : i32
    %c0_i32_1 = arith.constant 0 : i32
    return %c0_i32, %c0_i32_0 : i32, i32
  }
  func.func @transform_5(%arg0: i32) -> (i32, i32) {
    %c0_i32 = arith.constant 0 : i32
    %c0_i32_0 = arith.constant 0 : i32
    return %c0_i32, %arg0 : i32, i32
  }
  func.func @transform_6(%arg0: i32) -> (i32, i32) {
    %c0_i32 = arith.constant 0 : i32
    %c0_i32_0 = arith.constant 0 : i32
    return %c0_i32, %arg0 : i32, i32
  }
}

</mosaic_0001>

<llo_original>
// kernel: tpu_custom_call.1
$region0: #{tpu_custom_call.1}
  #allocation0 [shape = 'u32[]', space=smem, size = 0x4, offset = 0x4, fixed_abs, tag = 'smem constant byte address 0x4 - core index']
  #allocation1 [shape = 'u32[144,128]{1,0:T(1,128)}', space=vmem, size = 0x12000, scoped, tag = 'internal scratch']
  #allocation2 [shape = 's32[8,8,128]{2,1,0:T(8,128)}', space=vmem, size = 0x8000, scoped, tag = 'scratch operand']
  %s0 = inlined_call_operand.hbm [shape: f32[8,16,128], index: 0, kind: input, shape index: {}]
  %s1 = inlined_call_operand.vmem [shape: f32[24,16], index: 1, kind: input, shape index: {}]
  %s2 = inlined_call_operand.vmem [shape: f32[24,16], index: 2, kind: input, shape index: {}]
  %s3 = inlined_call_operand.vmem [shape: f32[24,1], index: 3, kind: input, shape index: {}]
  %s4 = inlined_call_operand.vmem [shape: f32[8,8], index: 4, kind: input, shape index: {}]
  %s5 = inlined_call_operand.hbm [shape: s32[8,128], index: 5, kind: output, shape index: {0}]
  %s6 = inlined_call_operand.hbm [shape: f32[1,128], index: 6, kind: output, shape index: {1}]
  %7 = xla_tuple %s5, %s6
  %s8 = sld [smem:[#allocation0]]
  $region42: #{tpu_custom_call.1} parent=0
    _
  %s10 = ssub.s32 1, %s8
  %s11 = scalar_select 0, %s10, %s8
  $region1: #{tpu_custom_call.1} parent=0
    #allocation3 [shape = 'u8[65536]{0}', space=vmem, size = 0x10000, scoped, tag = 'input window, operand 0, single buffered']
    #allocation4 [shape = 's32[1]{0}', space=sflag, size = 0x4, scoped, tag = 'scoped memory for tpu_custom_call.1']
    #allocation5 [shape = 's32[1]{0}', space=sflag, size = 0x4, scoped, tag = 'scoped memory for tpu_custom_call.1']
    #allocation6 [shape = 'u8[4096]{0}', space=vmem, size = 0x1000, scoped, tag = 'output window, operand 0, single buffered']
    #allocation7 [shape = 'u8[512]{0}', space=vmem, size = 0x400, scoped, tag = 'output window, operand 1, single buffered']
    #allocation8 [shape = 's32[1]{0}', space=sflag, size = 0x4, scoped, tag = 'scoped memory for tpu_custom_call.1']
    %12 = vsyncpa [#allocation4], 0
    %13 = vsyncpa [#allocation5], 0
    %14 = vsyncpa [#allocation8], 0
    // Predicated region
    $region2: #{tpu_custom_call.1} parent=1 // pred_check
      _
    $region3: #{tpu_custom_call.1} parent=1 // pred_check_branch
      %16 = sbr.rel (0) target = $region5
    $region4: #{tpu_custom_call.1} parent=1 // pred_region
      %s18 = ssub.s32 2048, 2048
      %19 = vsyncadd [#allocation4], %s18
      %s20 = sshll.u32 [#allocation3], 4
      %s21 = int_to_ptr.vmem [resolvable:$true] %s20
      %26 = dma.hbm_to_vmem [thread:$0]  %s0, 2048, %s21, [#allocation4], 128, 128, 8
    $region5: #{tpu_custom_call.1} parent=1 // pred_fallthru
      _
    // Predicated region
    $region6: #{tpu_custom_call.1} parent=1 // pred_check
      _
    $region7: #{tpu_custom_call.1} parent=1 // pred_check_branch
      %28 = sbr.rel (0) target = $region9
    $region8: #{tpu_custom_call.1} parent=1 // pred_region
      _
    $region9: #{tpu_custom_call.1} parent=1 // pred_fallthru
      _
    // Predicated region
    $region10: #{tpu_custom_call.1} parent=1 // pred_check
      _
    $region11: #{tpu_custom_call.1} parent=1 // pred_check_branch
      %30 = sbr.rel (0) target = $region13
    $region12: #{tpu_custom_call.1} parent=1 // pred_region
      _
    $region13: #{tpu_custom_call.1} parent=1 // pred_fallthru
      _
    // Predicated region
    $region14: #{tpu_custom_call.1} parent=1 // pred_check
      _
    $region15: #{tpu_custom_call.1} parent=1 // pred_check_branch
      %32 = sbr.rel (0) target = $region17
    $region16: #{tpu_custom_call.1} parent=1 // pred_region
      _
    $region17: #{tpu_custom_call.1} parent=1 // pred_fallthru
      _
    // Predicated region
    $region18: #{tpu_custom_call.1} parent=1 // pred_check
      _
    $region19: #{tpu_custom_call.1} parent=1 // pred_check_branch
      %34 = sbr.rel (0) target = $region21
    $region20: #{tpu_custom_call.1} parent=1 // pred_region
      _
    $region21: #{tpu_custom_call.1} parent=1 // pred_fallthru
      _
    // Predicated region
    $region22: #{tpu_custom_call.1} parent=1 // pred_check
      _
    $region23: #{tpu_custom_call.1} parent=1 // pred_check_branch
      %36 = sbr.rel (0) target = $region25
    $region24: #{tpu_custom_call.1} parent=1 // pred_region
      %37 = dma.done [#allocation4], 2048
    $region25: #{tpu_custom_call.1} parent=1 // pred_fallthru
      _
    %v38 = vld [vmem:[%s1] sm:$0xff]
    %v39 = vld [vmem:[%s1 + $0x8] sm:$0xff]
    %v40 = vld [vmem:[%s1 + $0x10] sm:$0xff]
    %v41 = vld [vmem:[%s2] sm:$0xff]
    %v42 = vld [vmem:[%s2 + $0x8] sm:$0xff]
    %v43 = vld [vmem:[%s2 + $0x10] sm:$0xff]
    %v44 = vld [vmem:[%s3] sm:$0xff]
    %v45 = vld [vmem:[%s3 + $0x8] sm:$0xff]
    %v46 = vld [vmem:[%s3 + $0x10] sm:$0xff]
    %v47 = vld [vmem:[%s4] sm:$0xff]
    %v48 = vlaneseq
    %v49 = vshrl.u32 %v48, 7
    %v50 = vsub.s32 0, %v49
    %v51 = vrot.slane %v47, %v50
    %53 = vbcast.lane.b32.xlu0 %v51, 256
    %v54 = vpop.permute.xlu0 %53
    %v55 = vlaneseq
    %v56 = vshrl.u32 %v55, 7
    %v57 = vsub.s32 1, %v56
    %v58 = vrot.slane %v47, %v57
    %60 = vbcast.lane.b32.xlu0 %v58, 256
    %v61 = vpop.permute.xlu0 %60
    %v62 = vlaneseq
    %v63 = vshrl.u32 %v62, 7
    %v64 = vsub.s32 2, %v63
    %v65 = vrot.slane %v47, %v64
    %67 = vbcast.lane.b32.xlu0 %v65, 256
    %v68 = vpop.permute.xlu0 %67
    %v69 = vlaneseq
    %v70 = vshrl.u32 %v69, 7
    %v71 = vsub.s32 3, %v70
    %v72 = vrot.slane %v47, %v71
    %74 = vbcast.lane.b32.xlu0 %v72, 256
    %v75 = vpop.permute.xlu0 %74
    %v76 = vlaneseq
    %v77 = vshrl.u32 %v76, 7
    %v78 = vsub.s32 4, %v77
    %v79 = vrot.slane %v47, %v78
    %81 = vbcast.lane.b32.xlu0 %v79, 256
    %v82 = vpop.permute.xlu0 %81
    %v83 = vlaneseq
    %v84 = vshrl.u32 %v83, 7
    %v85 = vsub.s32 5, %v84
    %v86 = vrot.slane %v47, %v85
    %88 = vbcast.lane.b32.xlu0 %v86, 256
    %v89 = vpop.permute.xlu0 %88
    %v90 = vlaneseq
    %v91 = vshrl.u32 %v90, 7
    %v92 = vsub.s32 6, %v91
    %v93 = vrot.slane %v47, %v92
    %95 = vbcast.lane.b32.xlu0 %v93, 256
    %v96 = vpop.permute.xlu0 %95
    %v97 = vlaneseq
    %v98 = vshrl.u32 %v97, 7
    %v99 = vsub.s32 7, %v98
    %v100 = vrot.slane %v47, %v99
    %102 = vbcast.lane.b32.xlu0 %v100, 256
    %v103 = vpop.permute.xlu0 %102
    %v104 = vlaneseq
    %v105 = vshrl.u32 %v104, 7
    %v106 = vld [vmem:[#allocation3] sm:$0xff]
    %v107 = vld [vmem:[#allocation3 + $0x8] sm:$0xff]
    %v108 = vmul.f32 %v106, %v106
    %v109 = vmul.f32 %v107, %v107
    %vm110 = vcmask 130048
    %v112 = vsel %vm110, %v41, 0
    %v115 = vsel %vm110, %v42, 0
    %v118 = vsel %vm110, %v43, 0
    %120 = vmatprep.subr.mxu0 0.0
    %121 = vmatpush1.msra.mxu0 %v106
    %122 = vmatprep.subr.mxu0 0.0
    %123 = vmatpush1.msra.mxu0 %v107
    %124 = vmatprep.subr.mxu0 0.0
    %125 = vmatpush1.msra.mxu0 0.0
    %126 = vmatprep.subr.mxu0 0.0
    %127 = vmatpush1.msra.mxu0 0.0
    %128 = vmatprep.subr.mxu0 0.0
    %129 = vmatpush1.msra.mxu0 0.0
    %130 = vmatprep.subr.mxu0 0.0
    %131 = vmatpush1.msra.mxu0 0.0
    %132 = vmatprep.subr.mxu0 0.0
    %133 = vmatpush1.msra.mxu0 0.0
    %134 = vmatprep.subr.mxu0 0.0
    %135 = vmatpush1.msra.mxu0 0.0
    %136 = vmatprep.subr.mxu0 0.0
    %137 = vmatpush1.msra.mxu0 0.0
    %138 = vmatprep.subr.mxu0 0.0
    %139 = vmatpush1.msra.mxu0 0.0
    %140 = vmatprep.subr.mxu0 0.0
    %141 = vmatpush1.msra.mxu0 0.0
    %142 = vmatprep.subr.mxu0 0.0
    %143 = vmatpush1.msra.mxu0 0.0
    %144 = vmatprep.subr.mxu0 0.0
    %145 = vmatpush1.msra.mxu0 0.0
    %146 = vmatprep.subr.mxu0 0.0
    %147 = vmatpush1.msra.mxu0 0.0
    %148 = vmatprep.subr.mxu0 0.0
    %149 = vmatpush1.msra.mxu0 0.0
    %150 = vmatprep.subr.mxu0 0.0
    %151 = vmatpush1.msra.mxu0 0.0
    %152 = vmatprep.subr.mxu0 0.0
    %153 = vmatpush1.msra.mxu0 0.0
    %154 = vmatprep.subr.mxu0 0.0
    %155 = vmatpush1.msra.mxu0 0.0
    %156 = vmatprep.subr.mxu0 0.0
    %157 = vmatpush1.msra.mxu0 0.0
    %158 = vmatprep.subr.mxu0 0.0
    %159 = vmatpush1.msra.mxu0 0.0
    %160 = vmatprep.subr.mxu0 0.0
    %161 = vmatpush1.msra.mxu0 0.0
    %162 = vmatprep.subr.mxu0 0.0
    %163 = vmatpush1.msra.mxu0 0.0
    %164 = vmatprep.subr.mxu0 0.0
    %165 = vmatpush1.msra.mxu0 0.0
    %166 = vmatprep.subr.mxu0 0.0
    %167 = vmatpush1.msra.mxu0 0.0
    %168 = vmatprep.subr.mxu0 0.0
    %169 = vmatpush1.msra.mxu0 0.0
    %170 = vmatprep.subr.mxu0 0.0
    %171 = vmatpush1.msra.mxu0 0.0
    %172 = vmatprep.subr.mxu0 0.0
    %173 = vmatpush1.msra.mxu0 0.0
    %174 = vmatprep.subr.mxu0 0.0
    %175 = vmatpush1.msra.mxu0 0.0
    %176 = vmatprep.subr.mxu0 0.0
    %177 = vmatpush1.msra.mxu0 0.0
    %178 = vmatprep.subr.mxu0 0.0
    %179 = vmatpush1.msra.mxu0 0.0
    %180 = vmatprep.subr.mxu0 0.0
    %181 = vmatpush1.msra.mxu0 0.0
    %182 = vmatprep.subr.mxu0 0.0
    %183 = vmatpush1.msra.mxu0 0.0
    %184 = vmatprep.mubr.f32.mxu0 0.0
    %185 = vmatmul.mubr.f32.gmra.mrb[0].mxu0 %v112
    %v186 = vpop.f32.mrb[0].mxu0
    %v187 = vadd.f32 0.0, %v186
    %v188 = vpop.f32.mrb[0].mxu0
    %189 = vmatprep.mubr.f32.mxu0 0.0
    %190 = vmatmul.mubr.f32.gmra.mrb[0].mxu0 %v115
    %v191 = vpop.f32.mrb[0].mxu0
    %v192 = vadd.f32 0.0, %v191
    %v193 = vpop.f32.mrb[0].mxu0
    %194 = vmatprep.mubr.f32.mxu0 0.0
    %195 = vmatmul.mubr.f32.gmra.mrb[0].mxu0 %v118
    %v196 = vpop.f32.mrb[0].mxu0
    %v197 = vadd.f32 0.0, %v196
    %v198 = vpop.f32.mrb[0].mxu0
    %199 = vdwg.mxu0
    %v201 = vsel %vm110, %v38, 0
    %v204 = vsel %vm110, %v39, 0
    %v207 = vsel %vm110, %v40, 0
    %209 = vmatprep.subr.mxu0 0.0
    %210 = vmatpush1.msra.mxu0 %v108
    %211 = vmatprep.subr.mxu0 0.0
    %212 = vmatpush1.msra.mxu0 %v109
    %213 = vmatprep.subr.mxu0 0.0
    %214 = vmatpush1.msra.mxu0 0.0
    %215 = vmatprep.subr.mxu0 0.0
    %216 = vmatpush1.msra.mxu0 0.0
    %217 = vmatprep.subr.mxu0 0.0
    %218 = vmatpush1.msra.mxu0 0.0
    %219 = vmatprep.subr.mxu0 0.0
    %220 = vmatpush1.msra.mxu0 0.0
    %221 = vmatprep.subr.mxu0 0.0
    %222 = vmatpush1.msra.mxu0 0.0
    %223 = vmatprep.subr.mxu0 0.0
    %224 = vmatpush1.msra.mxu0 0.0
    %225 = vmatprep.subr.mxu0 0.0
    %226 = vmatpush1.msra.mxu0 0.0
    %227 = vmatprep.subr.mxu0 0.0
    %228 = vmatpush1.msra.mxu0 0.0
    %229 = vmatprep.subr.mxu0 0.0
    %230 = vmatpush1.msra.mxu0 0.0
    %231 = vmatprep.subr.mxu0 0.0
    %232 = vmatpush1.msra.mxu0 0.0
    %233 = vmatprep.subr.mxu0 0.0
    %234 = vmatpush1.msra.mxu0 0.0
    %235 = vmatprep.subr.mxu0 0.0
    %236 = vmatpush1.msra.mxu0 0.0
    %237 = vmatprep.subr.mxu0 0.0
    %238 = vmatpush1.msra.mxu0 0.0
    %239 = vmatprep.subr.mxu0 0.0
    %240 = vmatpush1.msra.mxu0 0.0
    %241 = vmatprep.subr.mxu0 0.0
    %242 = vmatpush1.msra.mxu0 0.0
    %243 = vmatprep.subr.mxu0 0.0
    %244 = vmatpush1.msra.mxu0 0.0
    %245 = vmatprep.subr.mxu0 0.0
    %246 = vmatpush1.msra.mxu0 0.0
    %247 = vmatprep.subr.mxu0 0.0
    %248 = vmatpush1.msra.mxu0 0.0
    %249 = vmatprep.subr.mxu0 0.0
    %250 = vmatpush1.msra.mxu0 0.0
    %251 = vmatprep.subr.mxu0 0.0
    %252 = vmatpush1.msra.mxu0 0.0
    %253 = vmatprep.subr.mxu0 0.0
    %254 = vmatpush1.msra.mxu0 0.0
    %255 = vmatprep.subr.mxu0 0.0
    %256 = vmatpush1.msra.mxu0 0.0
    %257 = vmatprep.subr.mxu0 0.0
    %258 = vmatpush1.msra.mxu0 0.0
    %259 = vmatprep.subr.mxu0 0.0
    %260 = vmatpush1.msra.mxu0 0.0
    %261 = vmatprep.subr.mxu0 0.0
    %262 = vmatpush1.msra.mxu0 0.0
    %263 = vmatprep.subr.mxu0 0.0
    %264 = vmatpush1.msra.mxu0 0.0
    %265 = vmatprep.subr.mxu0 0.0
    %266 = vmatpush1.msra.mxu0 0.0
    %267 = vmatprep.subr.mxu0 0.0
    %268 = vmatpush1.msra.mxu0 0.0
    %269 = vmatprep.subr.mxu0 0.0
    %270 = vmatpush1.msra.mxu0 0.0
    %271 = vmatprep.subr.mxu0 0.0
    %272 = vmatpush1.msra.mxu0 0.0
    %273 = vmatprep.mubr.f32.mxu0 0.0
    %274 = vmatmul.mubr.f32.gmra.mrb[0].mxu0 %v201
    %v275 = vpop.f32.mrb[0].mxu0
    %v276 = vadd.f32 %v187, %v275
    %v277 = vpop.f32.mrb[0].mxu0
    %278 = vmatprep.mubr.f32.mxu0 0.0
    %279 = vmatmul.mubr.f32.gmra.mrb[0].mxu0 %v204
    %v280 = vpop.f32.mrb[0].mxu0
    %v281 = vadd.f32 %v192, %v280
    %v282 = vpop.f32.mrb[0].mxu0
    %283 = vmatprep.mubr.f32.mxu0 0.0
    %284 = vmatmul.mubr.f32.gmra.mrb[0].mxu0 %v207
    %v285 = vpop.f32.mrb[0].mxu0
    %v286 = vadd.f32 %v197, %v285
    %v287 = vpop.f32.mrb[0].mxu0
    %288 = vdwg.mxu0
    %290 = vset.pattern.permute.xlu0 0
    %291 = vperm.xlu0 %290, %v44
    %v292 = vpop.permute.xlu0 %291
    %295 = vset.pattern.permute.xlu0 0
    %296 = vperm.xlu0 %295, %v45
    %v297 = vpop.permute.xlu0 %296
    %300 = vset.pattern.permute.xlu0 0
    %301 = vperm.xlu0 %300, %v46
    %v302 = vpop.permute.xlu0 %301
    %v304 = vadd.f32 %v276, %v292
    %v305 = vadd.f32 %v281, %v297
    %v306 = vadd.f32 %v286, %v302
    %v307 = vmax.f32 %v304, %v305
    %v308 = vmax.f32 %v307, %v306
    %v309 = vand.u32 2147483647, %v308
    %vm310 = vcmp.eq.f32.partialorder %v309, inf
    %v311 = vsel %vm310, 0.0, %v308
    %v312 = vsub.f32 %v304, %v311
    %v313 = vmul.f32 %v312, 1.442695
    %v314 = vpow.pop %v313
    %v315 = vadd.f32 %v314, 0.0
    %v316 = vsub.f32 %v305, %v311
    %v317 = vmul.f32 %v316, 1.442695
    %v318 = vpow.pop %v317
    %v319 = vadd.f32 %v315, %v318
    %v320 = vsub.f32 %v306, %v311
    %v321 = vmul.f32 %v320, 1.442695
    %v322 = vpow.pop %v321
    %v323 = vadd.f32 %v319, %v322
    %v324 = vmax.f32 %v323, 1e-08
    %v325 = vlog2.pop %v324
    %v326 = vmul.f32 %v325, 0.6931472
    %v327 = vadd.f32 %v326, %v311
    %v328 = vsub.f32 %v327, 2.0794415
    %v329 = vadd.f32 %v54, %v328
    %v330 = vadd.f32 %v61, %v328
    %v331 = vadd.f32 %v68, %v328
    %v332 = vadd.f32 %v75, %v328
    %v333 = vadd.f32 %v82, %v328
    %v334 = vadd.f32 %v89, %v328
    %v335 = vadd.f32 %v96, %v328
    %v336 = vadd.f32 %v103, %v328
    %v337 = vrot.slane %v329, 4
    %v338 = vmax.f32 %v329, %v337
    %v339 = vrot.slane %v338, 2
    %v340 = vmax.f32 %v338, %v339
    %v341 = vrot.slane %v340, 1
    %v342 = vmax.f32 %v340, %v341
    %v343 = vrot.slane %v330, 4
    %v344 = vmax.f32 %v330, %v343
    %v345 = vrot.slane %v344, 2
    %v346 = vmax.f32 %v344, %v345
    %v347 = vrot.slane %v346, 1
    %v348 = vmax.f32 %v346, %v347
    %v349 = vrot.slane %v331, 4
    %v350 = vmax.f32 %v331, %v349
    %v351 = vrot.slane %v350, 2
    %v352 = vmax.f32 %v350, %v351
    %v353 = vrot.slane %v352, 1
    %v354 = vmax.f32 %v352, %v353
    %v355 = vrot.slane %v332, 4
    %v356 = vmax.f32 %v332, %v355
    %v357 = vrot.slane %v356, 2
    %v358 = vmax.f32 %v356, %v357
    %v359 = vrot.slane %v358, 1
    %v360 = vmax.f32 %v358, %v359
    %v361 = vrot.slane %v333, 4
    %v362 = vmax.f32 %v333, %v361
    %v363 = vrot.slane %v362, 2
    %v364 = vmax.f32 %v362, %v363
    %v365 = vrot.slane %v364, 1
    %v366 = vmax.f32 %v364, %v365
    %v367 = vrot.slane %v334, 4
    %v368 = vmax.f32 %v334, %v367
    %v369 = vrot.slane %v368, 2
    %v370 = vmax.f32 %v368, %v369
    %v371 = vrot.slane %v370, 1
    %v372 = vmax.f32 %v370, %v371
    %v373 = vrot.slane %v335, 4
    %v374 = vmax.f32 %v335, %v373
    %v375 = vrot.slane %v374, 2
    %v376 = vmax.f32 %v374, %v375
    %v377 = vrot.slane %v376, 1
    %v378 = vmax.f32 %v376, %v377
    %v379 = vrot.slane %v336, 4
    %v380 = vmax.f32 %v336, %v379
    %v381 = vrot.slane %v380, 2
    %v382 = vmax.f32 %v380, %v381
    %v383 = vrot.slane %v382, 1
    %v384 = vmax.f32 %v382, %v383
    %vm385 = vcmp.ge.f32.partialorder %v329, %v342
    %vm386 = vcmp.ge.f32.partialorder %v330, %v348
    %vm387 = vcmp.ge.f32.partialorder %v331, %v354
    %vm388 = vcmp.ge.f32.partialorder %v332, %v360
    %vm389 = vcmp.ge.f32.partialorder %v333, %v366
    %vm390 = vcmp.ge.f32.partialorder %v334, %v372
    %vm391 = vcmp.ge.f32.partialorder %v335, %v378
    %vm392 = vcmp.ge.f32.partialorder %v336, %v384
    %v393 = vsel %vm385, %v105, 8
    %v394 = vsel %vm386, %v105, 8
    %v395 = vsel %vm387, %v105, 8
    %v396 = vsel %vm388, %v105, 8
    %v397 = vsel %vm389, %v105, 8
    %v398 = vsel %vm390, %v105, 8
    %v399 = vsel %vm391, %v105, 8
    %v400 = vsel %vm392, %v105, 8
    %v401 = vrot.slane %v393, 4
    %vm402 = vcmp.lt.s32.totalorder %v393, %v401
    %v403 = vsel %vm402, %v393, %v401
    %v404 = vrot.slane %v403, 2
    %vm405 = vcmp.lt.s32.totalorder %v403, %v404
    %v406 = vsel %vm405, %v403, %v404
    %v407 = vrot.slane %v406, 1
    %vm408 = vcmp.lt.s32.totalorder %v406, %v407
    %v409 = vsel %vm408, %v406, %v407
    %v410 = vrot.slane %v394, 4
    %vm411 = vcmp.lt.s32.totalorder %v394, %v410
    %v412 = vsel %vm411, %v394, %v410
    %v413 = vrot.slane %v412, 2
    %vm414 = vcmp.lt.s32.totalorder %v412, %v413
    %v415 = vsel %vm414, %v412, %v413
    %v416 = vrot.slane %v415, 1
    %vm417 = vcmp.lt.s32.totalorder %v415, %v416
    %v418 = vsel %vm417, %v415, %v416
    %v419 = vrot.slane %v395, 4
    %vm420 = vcmp.lt.s32.totalorder %v395, %v419
    %v421 = vsel %vm420, %v395, %v419
    %v422 = vrot.slane %v421, 2
    %vm423 = vcmp.lt.s32.totalorder %v421, %v422
    %v424 = vsel %vm423, %v421, %v422
    %v425 = vrot.slane %v424, 1
    %vm426 = vcmp.lt.s32.totalorder %v424, %v425
    %v427 = vsel %vm426, %v424, %v425
    %v428 = vrot.slane %v396, 4
    %vm429 = vcmp.lt.s32.totalorder %v396, %v428
    %v430 = vsel %vm429, %v396, %v428
    %v431 = vrot.slane %v430, 2
    %vm432 = vcmp.lt.s32.totalorder %v430, %v431
    %v433 = vsel %vm432, %v430, %v431
    %v434 = vrot.slane %v433, 1
    %vm435 = vcmp.lt.s32.totalorder %v433, %v434
    %v436 = vsel %vm435, %v433, %v434
    %v437 = vrot.slane %v397, 4
    %vm438 = vcmp.lt.s32.totalorder %v397, %v437
    %v439 = vsel %vm438, %v397, %v437
    %v440 = vrot.slane %v439, 2
    %vm441 = vcmp.lt.s32.totalorder %v439, %v440
    %v442 = vsel %vm441, %v439, %v440
    %v443 = vrot.slane %v442, 1
    %vm444 = vcmp.lt.s32.totalorder %v442, %v443
    %v445 = vsel %vm444, %v442, %v443
    %v446 = vrot.slane %v398, 4
    %vm447 = vcmp.lt.s32.totalorder %v398, %v446
    %v448 = vsel %vm447, %v398, %v446
    %v449 = vrot.slane %v448, 2
    %vm450 = vcmp.lt.s32.totalorder %v448, %v449
    %v451 = vsel %vm450, %v448, %v449
    %v452 = vrot.slane %v451, 1
    %vm453 = vcmp.lt.s32.totalorder %v451, %v452
    %v454 = vsel %vm453, %v451, %v452
    %v455 = vrot.slane %v399, 4
    %vm456 = vcmp.lt.s32.totalorder %v399, %v455
    %v457 = vsel %vm456, %v399, %v455
    %v458 = vrot.slane %v457, 2
    %vm459 = vcmp.lt.s32.totalorder %v457, %v458
    %v460 = vsel %vm459, %v457, %v458
    %v461 = vrot.slane %v460, 1
    %vm462 = vcmp.lt.s32.totalorder %v460, %v461
    %v463 = vsel %vm462, %v460, %v461
    %v464 = vrot.slane %v400, 4
    %vm465 = vcmp.lt.s32.totalorder %v400, %v464
    %v466 = vsel %vm465, %v400, %v464
    %v467 = vrot.slane %v466, 2
    %vm468 = vcmp.lt.s32.totalorder %v466, %v467
    %v469 = vsel %vm468, %v466, %v467
    %v470 = vrot.slane %v469, 1
    %vm471 = vcmp.lt.s32.totalorder %v469, %v470
    %v472 = vsel %vm471, %v469, %v470
    %vm473 = vcmask 1041409
    %v474 = vsel %vm473, %v418, %v409
    %vm475 = vcmask 1042434
    %v476 = vsel %vm475, %v427, %v474
    %vm477 = vcmask 1043459
    %v478 = vsel %vm477, %v436, %v476
    %vm479 = vcmask 1044484
    %v480 = vsel %vm479, %v445, %v478
    %vm481 = vcmask 1045509
    %v482 = vsel %vm481, %v454, %v480
    %vm483 = vcmask 1046534
    %v484 = vsel %vm483, %v463, %v482
    %vm485 = vcmask 1047559
    %v486 = vsel %vm485, %v472, %v484
    %s487 = scalar_lea.vmem [#allocation2], 8
    %488 = vst [vmem:[%s487] sm:$0xff] %v486
    %s489 = scalar_lea.vmem [#allocation3], 16
    %v490 = vld [vmem:[%s489] sm:$0xff]
    %v491 = vld [vmem:[%s489 + $0x8] sm:$0xff]
    %v492 = vmul.f32 %v490, %v490
    %v493 = vmul.f32 %v491, %v491
    %494 = vmatprep.subr.mxu0 0.0
    %495 = vmatpush1.msra.mxu0 %v490
    %496 = vmatprep.subr.mxu0 0.0
    %497 = vmatpush1.msra.mxu0 %v491
    %498 = vmatprep.subr.mxu0 0.0
    %499 = vmatpush1.msra.mxu0 0.0
    %500 = vmatprep.subr.mxu0 0.0
    %501 = vmatpush1.msra.mxu0 0.0
    %502 = vmatprep.subr.mxu0 0.0
    %503 = vmatpush1.msra.mxu0 0.0
    %504 = vmatprep.subr.mxu0 0.0
    %505 = vmatpush1.msra.mxu0 0.0
    %506 = vmatprep.subr.mxu0 0.0
    %507 = vmatpush1.msra.mxu0 0.0
    %508 = vmatprep.subr.mxu0 0.0
    %509 = vmatpush1.msra.mxu0 0.0
    %510 = vmatprep.subr.mxu0 0.0
    %511 = vmatpush1.msra.mxu0 0.0
    %512 = vmatprep.subr.mxu0 0.0
    %513 = vmatpush1.msra.mxu0 0.0
    %514 = vmatprep.subr.mxu0 0.0
    %515 = vmatpush1.msra.mxu0 0.0
    %516 = vmatprep.subr.mxu0 0.0
    %517 = vmatpush1.msra.mxu0 0.0
    %518 = vmatprep.subr.mxu0 0.0
    %519 = vmatpush1.msra.mxu0 0.0
    %520 = vmatprep.subr.mxu0 0.0
    %521 = vmatpush1.msra.mxu0 0.0
    %522 = vmatprep.subr.mxu0 0.0
    %523 = vmatpush1.msra.mxu0 0.0
    %524 = vmatprep.subr.mxu0 0.0
    %525 = vmatpush1.msra.mxu0 0.0
    %526 = vmatprep.subr.mxu0 0.0
    %527 = vmatpush1.msra.mxu0 0.0
    %528 = vmatprep.subr.mxu0 0.0
    %529 = vmatpush1.msra.mxu0 0.0
    %530 = vmatprep.subr.mxu0 0.0
    %531 = vmatpush1.msra.mxu0 0.0
    %532 = vmatprep.subr.mxu0 0.0
    %533 = vmatpush1.msra.mxu0 0.0
    %534 = vmatprep.subr.mxu0 0.0
    %535 = vmatpush1.msra.mxu0 0.0
    %536 = vmatprep.subr.mxu0 0.0
    %537 = vmatpush1.msra.mxu0 0.0
    %538 = vmatprep.subr.mxu0 0.0
    %539 = vmatpush1.msra.mxu0 0.0
    %540 = vmatprep.subr.mxu0 0.0
    %541 = vmatpush1.msra.mxu0 0.0
    %542 = vmatprep.subr.mxu0 0.0
    %543 = vmatpush1.msra.mxu0 0.0
    %544 = vmatprep.subr.mxu0 0.0
    %545 = vmatpush1.msra.mxu0 0.0
    %546 = vmatprep.subr.mxu0 0.0
    %547 = vmatpush1.msra.mxu0 0.0
    %548 = vmatprep.subr.mxu0 0.0
    %549 = vmatpush1.msra.mxu0 0.0
    %550 = vmatprep.subr.mxu0 0.0
    %551 = vmatpush1.msra.mxu0 0.0
    %552 = vmatprep.subr.mxu0 0.0
    %553 = vmatpush1.msra.mxu0 0.0
    %554 = vmatprep.subr.mxu0 0.0
    %555 = vmatpush1.msra.mxu0 0.0
    %556 = vmatprep.subr.mxu0 0.0
    %557 = vmatpush1.msra.mxu0 0.0
    %558 = vmatprep.mubr.f32.mxu0 0.0
    %559 = vmatmul.mubr.f32.gmra.mrb[0].mxu0 %v112
    %v560 = vpop.f32.mrb[0].mxu0
    %v561 = vadd.f32 0.0, %v560
    %v562 = vpop.f32.mrb[0].mxu0
    %563 = vmatprep.mubr.f32.mxu0 0.0
    %564 = vmatmul.mubr.f32.gmra.mrb[0].mxu0 %v115
    %v565 = vpop.f32.mrb[0].mxu0
    %v566 = vadd.f32 0.0, %v565
    %v567 = vpop.f32.mrb[0].mxu0
    %568 = vmatprep.mubr.f32.mxu0 0.0
    %569 = vmatmul.mubr.f32.gmra.mrb[0].mxu0 %v118
    %v570 = vpop.f32.mrb[0].mxu0
    %v571 = vadd.f32 0.0, %v570
    %v572 = vpop.f32.mrb[0].mxu0
    %573 = vdwg.mxu0
    %574 = vmatprep.subr.mxu0 0.0
    %575 = vmatpush1.msra.mxu0 %v492
    %576 = vmatprep.subr.mxu0 0.0
    %577 = vmatpush1.msra.mxu0 %v493
    %578 = vmatprep.subr.mxu0 0.0
    %579 = vmatpush1.msra.mxu0 0.0
    %580 = vmatprep.subr.mxu0 0.0
    %581 = vmatpush1.msra.mxu0 0.0
    %582 = vmatprep.subr.mxu0 0.0
    %583 = vmatpush1.msra.mxu0 0.0
    %584 = vmatprep.subr.mxu0 0.0
    %585 = vmatpush1.msra.mxu0 0.0
    %586 = vmatprep.subr.mxu0 0.0
    %587 = vmatpush1.msra.mxu0 0.0
    %588 = vmatprep.subr.mxu0 0.0
    %589 = vmatpush1.msra.mxu0 0.0
    %590 = vmatprep.subr.mxu0 0.0
    %591 = vmatpush1.msra.mxu0 0.0
    %592 = vmatprep.subr.mxu0 0.0
    %593 = vmatpush1.msra.mxu0 0.0
    %594 = vmatprep.subr.mxu0 0.0
    %595 = vmatpush1.msra.mxu0 0.0
    %596 = vmatprep.subr.mxu0 0.0
    %597 = vmatpush1.msra.mxu0 0.0
    %598 = vmatprep.subr.mxu0 0.0
    %599 = vmatpush1.msra.mxu0 0.0
    %600 = vmatprep.subr.mxu0 0.0
    %601 = vmatpush1.msra.mxu0 0.0
    %602 = vmatprep.subr.mxu0 0.0
    %603 = vmatpush1.msra.mxu0 0.0
    %604 = vmatprep.subr.mxu0 0.0
    %605 = vmatpush1.msra.mxu0 0.0
    %606 = vmatprep.subr.mxu0 0.0
    %607 = vmatpush1.msra.mxu0 0.0
    %608 = vmatprep.subr.mxu0 0.0
    %609 = vmatpush1.msra.mxu0 0.0
    %610 = vmatprep.subr.mxu0 0.0
    %611 = vmatpush1.msra.mxu0 0.0
    %612 = vmatprep.subr.mxu0 0.0
    %613 = vmatpush1.msra.mxu0 0.0
    %614 = vmatprep.subr.mxu0 0.0
    %615 = vmatpush1.msra.mxu0 0.0
    %616 = vmatprep.subr.mxu0 0.0
    %617 = vmatpush1.msra.mxu0 0.0
    %618 = vmatprep.subr.mxu0 0.0
    %619 = vmatpush1.msra.mxu0 0.0
    %620 = vmatprep.subr.mxu0 0.0
    %621 = vmatpush1.msra.mxu0 0.0
    %622 = vmatprep.subr.mxu0 0.0
    %623 = vmatpush1.msra.mxu0 0.0
    %624 = vmatprep.subr.mxu0 0.0
    %625 = vmatpush1.msra.mxu0 0.0
    %626 = vmatprep.subr.mxu0 0.0
    %627 = vmatpush1.msra.mxu0 0.0
    %628 = vmatprep.subr.mxu0 0.0
    %629 = vmatpush1.msra.mxu0 0.0
    %630 = vmatprep.subr.mxu0 0.0
    %631 = vmatpush1.msra.mxu0 0.0
    %632 = vmatprep.subr.mxu0 0.0
    %633 = vmatpush1.msra.mxu0 0.0
    %634 = vmatprep.subr.mxu0 0.0
    %635 = vmatpush1.msra.mxu0 0.0
    %636 = vmatprep.subr.mxu0 0.0
    %637 = vmatpush1.msra.mxu0 0.0
    %638 = vmatprep.mubr.f32.mxu0 0.0
    %639 = vmatmul.mubr.f32.gmra.mrb[0].mxu0 %v201
    %v640 = vpop.f32.mrb[0].mxu0
    %v641 = vadd.f32 %v561, %v640
    %v642 = vpop.f32.mrb[0].mxu0
    %643 = vmatprep.mubr.f32.mxu0 0.0
    %644 = vmatmul.mubr.f32.gmra.mrb[0].mxu0 %v204
    %v645 = vpop.f32.mrb[0].mxu0
    %v646 = vadd.f32 %v566, %v645
    %v647 = vpop.f32.mrb[0].mxu0
    %648 = vmatprep.mubr.f32.mxu0 0.0
    %649 = vmatmul.mubr.f32.gmra.mrb[0].mxu0 %v207
    %v650 = vpop.f32.mrb[0].mxu0
    %v651 = vadd.f32 %v571, %v650
    %v652 = vpop.f32.mrb[0].mxu0
    %653 = vdwg.mxu0
    %v654 = vadd.f32 %v641, %v292
    %v655 = vadd.f32 %v646, %v297
    %v656 = vadd.f32 %v651, %v302
    %v657 = vmax.f32 %v654, %v655
    %v658 = vmax.f32 %v657, %v656
    %v659 = vand.u32 2147483647, %v658
    %vm660 = vcmp.eq.f32.partialorder %v659, inf
    %v661 = vsel %vm660, 0.0, %v658
    %v662 = vsub.f32 %v654, %v661
    %v663 = vmul.f32 %v662, 1.442695
    %v664 = vpow.pop %v663
    %v665 = vadd.f32 %v664, 0.0
    %v666 = vsub.f32 %v655, %v661
    %v667 = vmul.f32 %v666, 1.442695
    %v668 = vpow.pop %v667
    %v669 = vadd.f32 %v665, %v668
    %v670 = vsub.f32 %v656, %v661
    %v671 = vmul.f32 %v670, 1.442695
    %v672 = vpow.pop %v671
    %v673 = vadd.f32 %v669, %v672
    %v674 = vmax.f32 %v673, 1e-08
    %v675 = vlog2.pop %v674
    %v676 = vmul.f32 %v675, 0.6931472
    %v677 = vadd.f32 %v676, %v661
    %v679 = vrot.slane %v677, 1
    %v680 = vrot.slane %v677, 2
    %v681 = vrot.slane %v677, 3
    %v682 = vrot.slane %v677, 4
    %v683 = vrot.slane %v677, 5
    %v684 = vrot.slane %v677, 6
    %v685 = vrot.slane %v677, 7
    %v694 = vadd.f32 %v342, %v677
    %v695 = vadd.f32 %v348, %v679
    %v696 = vadd.f32 %v354, %v680
    %v697 = vadd.f32 %v360, %v681
    %v698 = vadd.f32 %v366, %v682
    %v699 = vadd.f32 %v372, %v683
    %v700 = vadd.f32 %v378, %v684
    %v701 = vadd.f32 %v384, %v685
    %v710 = vrot.slane %v695, 7
    %v711 = vsel %vm473, %v710, %v694
    %v712 = vrot.slane %v696, 6
    %v713 = vsel %vm475, %v712, %v711
    %v714 = vrot.slane %v697, 5
    %v715 = vsel %vm477, %v714, %v713
    %v716 = vrot.slane %v698, 4
    %v717 = vsel %vm479, %v716, %v715
    %v718 = vrot.slane %v699, 3
    %v719 = vsel %vm481, %v718, %v717
    %v720 = vrot.slane %v700, 2
    %v721 = vsel %vm483, %v720, %v719
    %v722 = vrot.slane %v701, 1
    %v723 = vsel %vm485, %v722, %v721
    %v725 = vadd.f32 %v54, %v723
    %v726 = vadd.f32 %v61, %v723
    %v727 = vadd.f32 %v68, %v723
    %v728 = vadd.f32 %v75, %v723
    %v729 = vadd.f32 %v82, %v723
    %v730 = vadd.f32 %v89, %v723
    %v731 = vadd.f32 %v96, %v723
    %v732 = vadd.f32 %v103, %v723
    %v733 = vrot.slane %v725, 4
    %v734 = vmax.f32 %v725, %v733
    %v735 = vrot.slane %v734, 2
    %v736 = vmax.f32 %v734, %v735
    %v737 = vrot.slane %v736, 1
    %v738 = vmax.f32 %v736, %v737
    %v739 = vrot.slane %v726, 4
    %v740 = vmax.f32 %v726, %v739
    %v741 = vrot.slane %v740, 2
    %v742 = vmax.f32 %v740, %v741
    %v743 = vrot.slane %v742, 1
    %v744 = vmax.f32 %v742, %v743
    %v745 = vrot.slane %v727, 4
    %v746 = vmax.f32 %v727, %v745
    %v747 = vrot.slane %v746, 2
    %v748 = vmax.f32 %v746, %v747
    %v749 = vrot.slane %v748, 1
    %v750 = vmax.f32 %v748, %v749
    %v751 = vrot.slane %v728, 4
    %v752 = vmax.f32 %v728, %v751
    %v753 = vrot.slane %v752, 2
    %v754 = vmax.f32 %v752, %v753
    %v755 = vrot.slane %v754, 1
    %v756 = vmax.f32 %v754, %v755
    %v757 = vrot.slane %v729, 4
    %v758 = vmax.f32 %v729, %v757
    %v759 = vrot.slane %v758, 2
    %v760 = vmax.f32 %v758, %v759
    %v761 = vrot.slane %v760, 1
    %v762 = vmax.f32 %v760, %v761
    %v763 = vrot.slane %v730, 4
    %v764 = vmax.f32 %v730, %v763
    %v765 = vrot.slane %v764, 2
    %v766 = vmax.f32 %v764, %v765
    %v767 = vrot.slane %v766, 1
    %v768 = vmax.f32 %v766, %v767
    %v769 = vrot.slane %v731, 4
    %v770 = vmax.f32 %v731, %v769
    %v771 = vrot.slane %v770, 2
    %v772 = vmax.f32 %v770, %v771
    %v773 = vrot.slane %v772, 1
    %v774 = vmax.f32 %v772, %v773
    %v775 = vrot.slane %v732, 4
    %v776 = vmax.f32 %v732, %v775
    %v777 = vrot.slane %v776, 2
    %v778 = vmax.f32 %v776, %v777
    %v779 = vrot.slane %v778, 1
    %v780 = vmax.f32 %v778, %v779
    %vm781 = vcmp.ge.f32.partialorder %v725, %v738
    %vm782 = vcmp.ge.f32.partialorder %v726, %v744
    %vm783 = vcmp.ge.f32.partialorder %v727, %v750
    %vm784 = vcmp.ge.f32.partialorder %v728, %v756
    %vm785 = vcmp.ge.f32.partialorder %v729, %v762
    %vm786 = vcmp.ge.f32.partialorder %v730, %v768
    %vm787 = vcmp.ge.f32.partialorder %v731, %v774
    %vm788 = vcmp.ge.f32.partialorder %v732, %v780
    %v789 = vsel %vm781, %v105, 8
    %v790 = vsel %vm782, %v105, 8
    %v791 = vsel %vm783, %v105, 8
    %v792 = vsel %vm784, %v105, 8
    %v793 = vsel %vm785, %v105, 8
    %v794 = vsel %vm786, %v105, 8
    %v795 = vsel %vm787, %v105, 8
    %v796 = vsel %vm788, %v105, 8
    %v797 = vrot.slane %v789, 4
    %vm798 = vcmp.lt.s32.totalorder %v789, %v797
    %v799 = vsel %vm798, %v789, %v797
    %v800 = vrot.slane %v799, 2
    %vm801 = vcmp.lt.s32.totalorder %v799, %v800
    %v802 = vsel %vm801, %v799, %v800
    %v803 = vrot.slane %v802, 1
    %vm804 = vcmp.lt.s32.totalorder %v802, %v803
    %v805 = vsel %vm804, %v802, %v803
    %v806 = vrot.slane %v790, 4
    %vm807 = vcmp.lt.s32.totalorder %v790, %v806
    %v808 = vsel %vm807, %v790, %v806
    %v809 = vrot.slane %v808, 2
    %vm810 = vcmp.lt.s32.totalorder %v808, %v809
    %v811 = vsel %vm810, %v808, %v809
    %v812 = vrot.slane %v811, 1
    %vm813 = vcmp.lt.s32.totalorder %v811, %v812
    %v814 = vsel %vm813, %v811, %v812
    %v815 = vrot.slane %v791, 4
    %vm816 = vcmp.lt.s32.totalorder %v791, %v815
    %v817 = vsel %vm816, %v791, %v815
    %v818 = vrot.slane %v817, 2
    %vm819 = vcmp.lt.s32.totalorder %v817, %v818
    %v820 = vsel %vm819, %v817, %v818
    %v821 = vrot.slane %v820, 1
    %vm822 = vcmp.lt.s32.totalorder %v820, %v821
    %v823 = vsel %vm822, %v820, %v821
    %v824 = vrot.slane %v792, 4
    %vm825 = vcmp.lt.s32.totalorder %v792, %v824
    %v826 = vsel %vm825, %v792, %v824
    %v827 = vrot.slane %v826, 2
    %vm828 = vcmp.lt.s32.totalorder %v826, %v827
    %v829 = vsel %vm828, %v826, %v827
    %v830 = vrot.slane %v829, 1
    %vm831 = vcmp.lt.s32.totalorder %v829, %v830
    %v832 = vsel %vm831, %v829, %v830
    %v833 = vrot.slane %v793, 4
    %vm834 = vcmp.lt.s32.totalorder %v793, %v833
    %v835 = vsel %vm834, %v793, %v833
    %v836 = vrot.slane %v835, 2
    %vm837 = vcmp.lt.s32.totalorder %v835, %v836
    %v838 = vsel %vm837, %v835, %v836
    %v839 = vrot.slane %v838, 1
    %vm840 = vcmp.lt.s32.totalorder %v838, %v839
    %v841 = vsel %vm840, %v838, %v839
    %v842 = vrot.slane %v794, 4
    %vm843 = vcmp.lt.s32.totalorder %v794, %v842
    %v844 = vsel %vm843, %v794, %v842
    %v845 = vrot.slane %v844, 2
    %vm846 = vcmp.lt.s32.totalorder %v844, %v845
    %v847 = vsel %vm846, %v844, %v845
    %v848 = vrot.slane %v847, 1
    %vm849 = vcmp.lt.s32.totalorder %v847, %v848
    %v850 = vsel %vm849, %v847, %v848
    %v851 = vrot.slane %v795, 4
    %vm852 = vcmp.lt.s32.totalorder %v795, %v851
    %v853 = vsel %vm852, %v795, %v851
    %v854 = vrot.slane %v853, 2
    %vm855 = vcmp.lt.s32.totalorder %v853, %v854
    %v856 = vsel %vm855, %v853, %v854
    %v857 = vrot.slane %v856, 1
    %vm858 = vcmp.lt.s32.totalorder %v856, %v857
    %v859 = vsel %vm858, %v856, %v857
    %v860 = vrot.slane %v796, 4
    %vm861 = vcmp.lt.s32.totalorder %v796, %v860
    %v862 = vsel %vm861, %v796, %v860
    %v863 = vrot.slane %v862, 2
    %vm864 = vcmp.lt.s32.totalorder %v862, %v863
    %v865 = vsel %vm864, %v862, %v863
    %v866 = vrot.slane %v865, 1
    %vm867 = vcmp.lt.s32.totalorder %v865, %v866
    %v868 = vsel %vm867, %v865, %v866
    %v869 = vsel %vm473, %v814, %v805
    %v870 = vsel %vm475, %v823, %v869
    %v871 = vsel %vm477, %v832, %v870
    %v872 = vsel %vm479, %v841, %v871
    %v873 = vsel %vm481, %v850, %v872
    %v874 = vsel %vm483, %v859, %v873
    %v875 = vsel %vm485, %v868, %v874
    %s876 = scalar_lea.vmem [#allocation2], 16
    %877 = vst [vmem:[%s876] sm:$0xff] %v875
    %s878 = scalar_lea.vmem [#allocation3], 32
    %v879 = vld [vmem:[%s878] sm:$0xff]
    %v880 = vld [vmem:[%s878 + $0x8] sm:$0xff]
    %v881 = vmul.f32 %v879, %v879
    %v882 = vmul.f32 %v880, %v880
    %883 = vmatprep.subr.mxu0 0.0
    %884 = vmatpush1.msra.mxu0 %v879
    %885 = vmatprep.subr.mxu0 0.0
    %886 = vmatpush1.msra.mxu0 %v880
    %887 = vmatprep.subr.mxu0 0.0
    %888 = vmatpush1.msra.mxu0 0.0
    %889 = vmatprep.subr.mxu0 0.0
    %890 = vmatpush1.msra.mxu0 0.0
    %891 = vmatprep.subr.mxu0 0.0
    %892 = vmatpush1.msra.mxu0 0.0
    %893 = vmatprep.subr.mxu0 0.0
    %894 = vmatpush1.msra.mxu0 0.0
    %895 = vmatprep.subr.mxu0 0.0
    %896 = vmatpush1.msra.mxu0 0.0
    %897 = vmatprep.subr.mxu0 0.0
    %898 = vmatpush1.msra.mxu0 0.0
    %899 = vmatprep.subr.mxu0 0.0
    %900 = vmatpush1.msra.mxu0 0.0
    %901 = vmatprep.subr.mxu0 0.0
    %902 = vmatpush1.msra.mxu0 0.0
    %903 = vmatprep.subr.mxu0 0.0
    %904 = vmatpush1.msra.mxu0 0.0
    %905 = vmatprep.subr.mxu0 0.0
    %906 = vmatpush1.msra.mxu0 0.0
    %907 = vmatprep.subr.mxu0 0.0
    %908 = vmatpush1.msra.mxu0 0.0
    %909 = vmatprep.subr.mxu0 0.0
    %910 = vmatpush1.msra.mxu0 0.0
    %911 = vmatprep.subr.mxu0 0.0
    %912 = vmatpush1.msra.mxu0 0.0
    %913 = vmatprep.subr.mxu0 0.0
    %914 = vmatpush1.msra.mxu0 0.0
    %915 = vmatprep.subr.mxu0 0.0
    %916 = vmatpush1.msra.mxu0 0.0
    %917 = vmatprep.subr.mxu0 0.0
    %918 = vmatpush1.msra.mxu0 0.0
    %919 = vmatprep.subr.mxu0 0.0
    %920 = vmatpush1.msra.mxu0 0.0
    %921 = vmatprep.subr.mxu0 0.0
    %922 = vmatpush1.msra.mxu0 0.0
    %923 = vmatprep.subr.mxu0 0.0
    %924 = vmatpush1.msra.mxu0 0.0
    %925 = vmatprep.subr.mxu0 0.0
    %926 = vmatpush1.msra.mxu0 0.0
    %927 = vmatprep.subr.mxu0 0.0
    %928 = vmatpush1.msra.mxu0 0.0
    %929 = vmatprep.subr.mxu0 0.0
    %930 = vmatpush1.msra.mxu0 0.0
    %931 = vmatprep.subr.mxu0 0.0
    %932 = vmatpush1.msra.mxu0 0.0
    %933 = vmatprep.subr.mxu0 0.0
    %934 = vmatpush1.msra.mxu0 0.0
    %935 = vmatprep.subr.mxu0 0.0
    %936 = vmatpush1.msra.mxu0 0.0
    %937 = vmatprep.subr.mxu0 0.0
    %938 = vmatpush1.msra.mxu0 0.0
    %939 = vmatprep.subr.mxu0 0.0
    %940 = vmatpush1.msra.mxu0 0.0
    %941 = vmatprep.subr.mxu0 0.0
    %942 = vmatpush1.msra.mxu0 0.0
    %943 = vmatprep.subr.mxu0 0.0
    %944 = vmatpush1.msra.mxu0 0.0
    %945 = vmatprep.subr.mxu0 0.0
    %946 = vmatpush1.msra.mxu0 0.0
    %947 = vmatprep.mubr.f32.mxu0 0.0
    %948 = vmatmul.mubr.f32.gmra.mrb[0].mxu0 %v112
    %v949 = vpop.f32.mrb[0].mxu0
    %v950 = vadd.f32 0.0, %v949
    %v951 = vpop.f32.mrb[0].mxu0
    %952 = vmatprep.mubr.f32.mxu0 0.0
    %953 = vmatmul.mubr.f32.gmra.mrb[0].mxu0 %v115
    %v954 = vpop.f32.mrb[0].mxu0
    %v955 = vadd.f32 0.0, %v954
    %v956 = vpop.f32.mrb[0].mxu0
    %957 = vmatprep.mubr.f32.mxu0 0.0
    %958 = vmatmul.mubr.f32.gmra.mrb[0].mxu0 %v118
    %v959 = vpop.f32.mrb[0].mxu0
    %v960 = vadd.f32 0.0, %v959
    %v961 = vpop.f32.mrb[0].mxu0
    %962 = vdwg.mxu0
    %963 = vmatprep.subr.mxu0 0.0
    %964 = vmatpush1.msra.mxu0 %v881
    %965 = vmatprep.subr.mxu0 0.0
    %966 = vmatpush1.msra.mxu0 %v882
    %967 = vmatprep.subr.mxu0 0.0
    %968 = vmatpush1.msra.mxu0 0.0
    %969 = vmatprep.subr.mxu0 0.0
    %970 = vmatpush1.msra.mxu0 0.0
    %971 = vmatprep.subr.mxu0 0.0
    %972 = vmatpush1.msra.mxu0 0.0
    %973 = vmatprep.subr.mxu0 0.0
    %974 = vmatpush1.msra.mxu0 0.0
    %975 = vmatprep.subr.mxu0 0.0
    %976 = vmatpush1.msra.mxu0 0.0
    %977 = vmatprep.subr.mxu0 0.0
    %978 = vmatpush1.msra.mxu0 0.0
    %979 = vmatprep.subr.mxu0 0.0
    %980 = vmatpush1.msra.mxu0 0.0
    %981 = vmatprep.subr.mxu0 0.0
    %982 = vmatpush1.msra.mxu0 0.0
    %983 = vmatprep.subr.mxu0 0.0
    %984 = vmatpush1.msra.mxu0 0.0
    %985 = vmatprep.subr.mxu0 0.0
    %986 = vmatpush1.msra.mxu0 0.0
    %987 = vmatprep.subr.mxu0 0.0
    %988 = vmatpush1.msra.mxu0 0.0
    %989 = vmatprep.subr.mxu0 0.0
    %990 = vmatpush1.msra.mxu0 0.0
    %991 = vmatprep.subr.mxu0 0.0
    %992 = vmatpush1.msra.mxu0 0.0
    %993 = vmatprep.subr.mxu0 0.0
    %994 = vmatpush1.msra.mxu0 0.0
    %995 = vmatprep.subr.mxu0 0.0
    %996 = vmatpush1.msra.mxu0 0.0
    %997 = vmatprep.subr.mxu0 0.0
    %998 = vmatpush1.msra.mxu0 0.0
    %999 = vmatprep.subr.mxu0 0.0
    %1000 = vmatpush1.msra.mxu0 0.0
    %1001 = vmatprep.subr.mxu0 0.0
    %1002 = vmatpush1.msra.mxu0 0.0
    %1003 = vmatprep.subr.mxu0 0.0
    %1004 = vmatpush1.msra.mxu0 0.0
    %1005 = vmatprep.subr.mxu0 0.0
    %1006 = vmatpush1.msra.mxu0 0.0
    %1007 = vmatprep.subr.mxu0 0.0
    %1008 = vmatpush1.msra.mxu0 0.0
    %1009 = vmatprep.subr.mxu0 0.0
    %1010 = vmatpush1.msra.mxu0 0.0
    %1011 = vmatprep.subr.mxu0 0.0
    %1012 = vmatpush1.msra.mxu0 0.0
    %1013 = vmatprep.subr.mxu0 0.0
    %1014 = vmatpush1.msra.mxu0 0.0
    %1015 = vmatprep.subr.mxu0 0.0
    %1016 = vmatpush1.msra.mxu0 0.0
    %1017 = vmatprep.subr.mxu0 0.0
    %1018 = vmatpush1.msra.mxu0 0.0
    %1019 = vmatprep.subr.mxu0 0.0
    %1020 = vmatpush1.msra.mxu0 0.0
    %1021 = vmatprep.subr.mxu0 0.0
    %1022 = vmatpush1.msra.mxu0 0.0
    %1023 = vmatprep.subr.mxu0 0.0
    %1024 = vmatpush1.msra.mxu0 0.0
    %1025 = vmatprep.subr.mxu0 0.0
    %1026 = vmatpush1.msra.mxu0 0.0
    %1027 = vmatprep.mubr.f32.mxu0 0.0
    %1028 = vmatmul.mubr.f32.gmra.mrb[0].mxu0 %v201
    %v1029 = vpop.f32.mrb[0].mxu0
    %v1030 = vadd.f32 %v950, %v1029
    %v1031 = vpop.f32.mrb[0].mxu0
    %1032 = vmatprep.mubr.f32.mxu0 0.0
    %1033 = vmatmul.mubr.f32.gmra.mrb[0].mxu0 %v204
    %v1034 = vpop.f32.mrb[0].mxu0
    %v1035 = vadd.f32 %v955, %v1034
    %v1036 = vpop.f32.mrb[0].mxu0
    %1037 = vmatprep.mubr.f32.mxu0 0.0
    %1038 = vmatmul.mubr.f32.gmra.mrb[0].mxu0 %v207
    %v1039 = vpop.f32.mrb[0].mxu0
    %v1040 = vadd.f32 %v960, %v1039
    %v1041 = vpop.f32.mrb[0].mxu0
    %1042 = vdwg.mxu0
    %v1043 = vadd.f32 %v1030, %v292
    %v1044 = vadd.f32 %v1035, %v297
    %v1045 = vadd.f32 %v1040, %v302
    %v1046 = vmax.f32 %v1043, %v1044
    %v1047 = vmax.f32 %v1046, %v1045
    %v1048 = vand.u32 2147483647, %v1047
    %vm1049 = vcmp.eq.f32.partialorder %v1048, inf
    %v1050 = vsel %vm1049, 0.0, %v1047
    %v1051 = vsub.f32 %v1043, %v1050
    %v1052 = vmul.f32 %v1051, 1.442695
    %v1053 = vpow.pop %v1052
    %v1054 = vadd.f32 %v1053, 0.0
    %v1055 = vsub.f32 %v1044, %v1050
    %v1056 = vmul.f32 %v1055, 1.442695
    %v1057 = vpow.pop %v1056
    %v1058 = vadd.f32 %v1054, %v1057
    %v1059 = vsub.f32 %v1045, %v1050
    %v1060 = vmul.f32 %v1059, 1.442695
    %v1061 = vpow.pop %v1060
    %v1062 = vadd.f32 %v1058, %v1061
    %v1063 = vmax.f32 %v1062, 1e-08
    %v1064 = vlog2.pop %v1063
    %v1065 = vmul.f32 %v1064, 0.6931472
    %v1066 = vadd.f32 %v1065, %v1050
    %v1068 = vrot.slane %v1066, 1
    %v1069 = vrot.slane %v1066, 2
    %v1070 = vrot.slane %v1066, 3
    %v1071 = vrot.slane %v1066, 4
    %v1072 = vrot.slane %v1066, 5
    %v1073 = vrot.slane %v1066, 6
    %v1074 = vrot.slane %v1066, 7
    %v1083 = vadd.f32 %v738, %v1066
    %v1084 = vadd.f32 %v744, %v1068
    %v1085 = vadd.f32 %v750, %v1069
    %v1086 = vadd.f32 %v756, %v1070
    %v1087 = vadd.f32 %v762, %v1071
    %v1088 = vadd.f32 %v768, %v1072
    %v1089 = vadd.f32 %v774, %v1073
    %v1090 = vadd.f32 %v780, %v1074
    %v1099 = vrot.slane %v1084, 7
    %v1100 = vsel %vm473, %v1099, %v1083
    %v1101 = vrot.slane %v1085, 6
    %v1102 = vsel %vm475, %v1101, %v1100
    %v1103 = vrot.slane %v1086, 5
    %v1104 = vsel %vm477, %v1103, %v1102
    %v1105 = vrot.slane %v1087, 4
    %v1106 = vsel %vm479, %v1105, %v1104
    %v1107 = vrot.slane %v1088, 3
    %v1108 = vsel %vm481, %v1107, %v1106
    %v1109 = vrot.slane %v1089, 2
    %v1110 = vsel %vm483, %v1109, %v1108
    %v1111 = vrot.slane %v1090, 1
    %v1112 = vsel %vm485, %v1111, %v1110
    %v1114 = vadd.f32 %v54, %v1112
    %v1115 = vadd.f32 %v61, %v1112
    %v1116 = vadd.f32 %v68, %v1112
    %v1117 = vadd.f32 %v75, %v1112
    %v1118 = vadd.f32 %v82, %v1112
    %v1119 = vadd.f32 %v89, %v1112
    %v1120 = vadd.f32 %v96, %v1112
    %v1121 = vadd.f32 %v103, %v1112
    %v1122 = vrot.slane %v1114, 4
    %v1123 = vmax.f32 %v1114, %v1122
    %v1124 = vrot.slane %v1123, 2
    %v1125 = vmax.f32 %v1123, %v1124
    %v1126 = vrot.slane %v1125, 1
    %v1127 = vmax.f32 %v1125, %v1126
    %v1128 = vrot.slane %v1115, 4
    %v1129 = vmax.f32 %v1115, %v1128
    %v1130 = vrot.slane %v1129, 2
    %v1131 = vmax.f32 %v1129, %v1130
    %v1132 = vrot.slane %v1131, 1
    %v1133 = vmax.f32 %v1131, %v1132
    %v1134 = vrot.slane %v1116, 4
    %v1135 = vmax.f32 %v1116, %v1134
    %v1136 = vrot.slane %v1135, 2
    %v1137 = vmax.f32 %v1135, %v1136
    %v1138 = vrot.slane %v1137, 1
    %v1139 = vmax.f32 %v1137, %v1138
    %v1140 = vrot.slane %v1117, 4
    %v1141 = vmax.f32 %v1117, %v1140
    %v1142 = vrot.slane %v1141, 2
    %v1143 = vmax.f32 %v1141, %v1142
    %v1144 = vrot.slane %v1143, 1
    %v1145 = vmax.f32 %v1143, %v1144
    %v1146 = vrot.slane %v1118, 4
    %v1147 = vmax.f32 %v1118, %v1146
    %v1148 = vrot.slane %v1147, 2
    %v1149 = vmax.f32 %v1147, %v1148
    %v1150 = vrot.slane %v1149, 1
    %v1151 = vmax.f32 %v1149, %v1150
    %v1152 = vrot.slane %v1119, 4
    %v1153 = vmax.f32 %v1119, %v1152
    %v1154 = vrot.slane %v1153, 2
    %v1155 = vmax.f32 %v1153, %v1154
    %v1156 = vrot.slane %v1155, 1
    %v1157 = vmax.f32 %v1155, %v1156
    %v1158 = vrot.slane %v1120, 4
    %v1159 = vmax.f32 %v1120, %v1158
    %v1160 = vrot.slane %v1159, 2
    %v1161 = vmax.f32 %v1159, %v1160
    %v1162 = vrot.slane %v1161, 1
    %v1163 = vmax.f32 %v1161, %v1162
    %v1164 = vrot.slane %v1121, 4
    %v1165 = vmax.f32 %v1121, %v1164
    %v1166 = vrot.slane %v1165, 2
    %v1167 = vmax.f32 %v1165, %v1166
    %v1168 = vrot.slane %v1167, 1
    %v1169 = vmax.f32 %v1167, %v1168
    %vm1170 = vcmp.ge.f32.partialorder %v1114, %v1127
    %vm1171 = vcmp.ge.f32.partialorder %v1115, %v1133
    %vm1172 = vcmp.ge.f32.partialorder %v1116, %v1139
    %vm1173 = vcmp.ge.f32.partialorder %v1117, %v1145
    %vm1174 = vcmp.ge.f32.partialorder %v1118, %v1151
    %vm1175 = vcmp.ge.f32.partialorder %v1119, %v1157
    %vm1176 = vcmp.ge.f32.partialorder %v1120, %v1163
    %vm1177 = vcmp.ge.f32.partialorder %v1121, %v1169
    %v1178 = vsel %vm1170, %v105, 8
    %v1179 = vsel %vm1171, %v105, 8
    %v1180 = vsel %vm1172, %v105, 8
    %v1181 = vsel %vm1173, %v105, 8
    %v1182 = vsel %vm1174, %v105, 8
    %v1183 = vsel %vm1175, %v105, 8
    %v1184 = vsel %vm1176, %v105, 8
    %v1185 = vsel %vm1177, %v105, 8
    %v1186 = vrot.slane %v1178, 4
    %vm1187 = vcmp.lt.s32.totalorder %v1178, %v1186
    %v1188 = vsel %vm1187, %v1178, %v1186
    %v1189 = vrot.slane %v1188, 2
    %vm1190 = vcmp.lt.s32.totalorder %v1188, %v1189
    %v1191 = vsel %vm1190, %v1188, %v1189
    %v1192 = vrot.slane %v1191, 1
    %vm1193 = vcmp.lt.s32.totalorder %v1191, %v1192
    %v1194 = vsel %vm1193, %v1191, %v1192
    %v1195 = vrot.slane %v1179, 4
    %vm1196 = vcmp.lt.s32.totalorder %v1179, %v1195
    %v1197 = vsel %vm1196, %v1179, %v1195
    %v1198 = vrot.slane %v1197, 2
    %vm1199 = vcmp.lt.s32.totalorder %v1197, %v1198
    %v1200 = vsel %vm1199, %v1197, %v1198
    %v1201 = vrot.slane %v1200, 1
    %vm1202 = vcmp.lt.s32.totalorder %v1200, %v1201
    %v1203 = vsel %vm1202, %v1200, %v1201
    %v1204 = vrot.slane %v1180, 4
    %vm1205 = vcmp.lt.s32.totalorder %v1180, %v1204
    %v1206 = vsel %vm1205, %v1180, %v1204
    %v1207 = vrot.slane %v1206, 2
    %vm1208 = vcmp.lt.s32.totalorder %v1206, %v1207
    %v1209 = vsel %vm1208, %v1206, %v1207
    %v1210 = vrot.slane %v1209, 1
    %vm1211 = vcmp.lt.s32.totalorder %v1209, %v1210
    %v1212 = vsel %vm1211, %v1209, %v1210
    %v1213 = vrot.slane %v1181, 4
    %vm1214 = vcmp.lt.s32.totalorder %v1181, %v1213
    %v1215 = vsel %vm1214, %v1181, %v1213
    %v1216 = vrot.slane %v1215, 2
    %vm1217 = vcmp.lt.s32.totalorder %v1215, %v1216
    %v1218 = vsel %vm1217, %v1215, %v1216
    %v1219 = vrot.slane %v1218, 1
    %vm1220 = vcmp.lt.s32.totalorder %v1218, %v1219
    %v1221 = vsel %vm1220, %v1218, %v1219
    %v1222 = vrot.slane %v1182, 4
    %vm1223 = vcmp.lt.s32.totalorder %v1182, %v1222
    %v1224 = vsel %vm1223, %v1182, %v1222
    %v1225 = vrot.slane %v1224, 2
    %vm1226 = vcmp.lt.s32.totalorder %v1224, %v1225
    %v1227 = vsel %vm1226, %v1224, %v1225
    %v1228 = vrot.slane %v1227, 1
    %vm1229 = vcmp.lt.s32.totalorder %v1227, %v1228
    %v1230 = vsel %vm1229, %v1227, %v1228
    %v1231 = vrot.slane %v1183, 4
    %vm1232 = vcmp.lt.s32.totalorder %v1183, %v1231
    %v1233 = vsel %vm1232, %v1183, %v1231
    %v1234 = vrot.slane %v1233, 2
    %vm1235 = vcmp.lt.s32.totalorder %v1233, %v1234
    %v1236 = vsel %vm1235, %v1233, %v1234
    %v1237 = vrot.slane %v1236, 1
    %vm1238 = vcmp.lt.s32.totalorder %v1236, %v1237
    %v1239 = vsel %vm1238, %v1236, %v1237
    %v1240 = vrot.slane %v1184, 4
    %vm1241 = vcmp.lt.s32.totalorder %v1184, %v1240
    %v1242 = vsel %vm1241, %v1184, %v1240
    %v1243 = vrot.slane %v1242, 2
    %vm1244 = vcmp.lt.s32.totalorder %v1242, %v1243
    %v1245 = vsel %vm1244, %v1242, %v1243
    %v1246 = vrot.slane %v1245, 1
    %vm1247 = vcmp.lt.s32.totalorder %v1245, %v1246
    %v1248 = vsel %vm1247, %v1245, %v1246
    %v1249 = vrot.slane %v1185, 4
    %vm1250 = vcmp.lt.s32.totalorder %v1185, %v1249
    %v1251 = vsel %vm1250, %v1185, %v1249
    %v1252 = vrot.slane %v1251, 2
    %vm1253 = vcmp.lt.s32.totalorder %v1251, %v1252
    %v1254 = vsel %vm1253, %v1251, %v1252
    %v1255 = vrot.slane %v1254, 1
    %vm1256 = vcmp.lt.s32.totalorder %v1254, %v1255
    %v1257 = vsel %vm1256, %v1254, %v1255
    %v1258 = vsel %vm473, %v1203, %v1194
    %v1259 = vsel %vm475, %v1212, %v1258
    %v1260 = vsel %vm477, %v1221, %v1259
    %v1261 = vsel %vm479, %v1230, %v1260
    %v1262 = vsel %vm481, %v1239, %v1261
    %v1263 = vsel %vm483, %v1248, %v1262
    %v1264 = vsel %vm485, %v1257, %v1263
    %s1265 = scalar_lea.vmem [#allocation2], 24
    %1266 = vst [vmem:[%s1265] sm:$0xff] %v1264
    %s1267 = scalar_lea.vmem [#allocation3], 48
    %v1268 = vld [vmem:[%s1267] sm:$0xff]
    %v1269 = vld [vmem:[%s1267 + $0x8] sm:$0xff]
    %v1270 = vmul.f32 %v1268, %v1268
    %v1271 = vmul.f32 %v1269, %v1269
    %1272 = vmatprep.subr.mxu0 0.0
    %1273 = vmatpush1.msra.mxu0 %v1268
    %1274 = vmatprep.subr.mxu0 0.0
    %1275 = vmatpush1.msra.mxu0 %v1269
    %1276 = vmatprep.subr.mxu0 0.0
    %1277 = vmatpush1.msra.mxu0 0.0
    %1278 = vmatprep.subr.mxu0 0.0
    %1279 = vmatpush1.msra.mxu0 0.0
    %1280 = vmatprep.subr.mxu0 0.0
    %1281 = vmatpush1.msra.mxu0 0.0
    %1282 = vmatprep.subr.mxu0 0.0
    %1283 = vmatpush1.msra.mxu0 0.0
    %1284 = vmatprep.subr.mxu0 0.0
    %1285 = vmatpush1.msra.mxu0 0.0
    %1286 = vmatprep.subr.mxu0 0.0
    %1287 = vmatpush1.msra.mxu0 0.0
    %1288 = vmatprep.subr.mxu0 0.0
    %1289 = vmatpush1.msra.mxu0 0.0
    %1290 = vmatprep.subr.mxu0 0.0
    %1291 = vmatpush1.msra.mxu0 0.0
    %1292 = vmatprep.subr.mxu0 0.0
    %1293 = vmatpush1.msra.mxu0 0.0
    %1294 = vmatprep.subr.mxu0 0.0
    %1295 = vmatpush1.msra.mxu0 0.0
    %1296 = vmatprep.subr.mxu0 0.0
    %1297 = vmatpush1.msra.mxu0 0.0
    %1298 = vmatprep.subr.mxu0 0.0
    %1299 = vmatpush1.msra.mxu0 0.0
    %1300 = vmatprep.subr.mxu0 0.0
    %1301 = vmatpush1.msra.mxu0 0.0
    %1302 = vmatprep.subr.mxu0 0.0
    %1303 = vmatpush1.msra.mxu0 0.0
    %1304 = vmatprep.subr.mxu0 0.0
    %1305 = vmatpush1.msra.mxu0 0.0
    %1306 = vmatprep.subr.mxu0 0.0
    %1307 = vmatpush1.msra.mxu0 0.0
    %1308 = vmatprep.subr.mxu0 0.0
    %1309 = vmatpush1.msra.mxu0 0.0
    %1310 = vmatprep.subr.mxu0 0.0
    %1311 = vmatpush1.msra.mxu0 0.0
    %1312 = vmatprep.subr.mxu0 0.0
    %1313 = vmatpush1.msra.mxu0 0.0
    %1314 = vmatprep.subr.mxu0 0.0
    %1315 = vmatpush1.msra.mxu0 0.0
    %1316 = vmatprep.subr.mxu0 0.0
    %1317 = vmatpush1.msra.mxu0 0.0
    %1318 = vmatprep.subr.mxu0 0.0
    %1319 = vmatpush1.msra.mxu0 0.0
    %1320 = vmatprep.subr.mxu0 0.0
    %1321 = vmatpush1.msra.mxu0 0.0
    %1322 = vmatprep.subr.mxu0 0.0
    %1323 = vmatpush1.msra.mxu0 0.0
    %1324 = vmatprep.subr.mxu0 0.0
    %1325 = vmatpush1.msra.mxu0 0.0
    %1326 = vmatprep.subr.mxu0 0.0
    %1327 = vmatpush1.msra.mxu0 0.0
    %1328 = vmatprep.subr.mxu0 0.0
    %1329 = vmatpush1.msra.mxu0 0.0
    %1330 = vmatprep.subr.mxu0 0.0
    %1331 = vmatpush1.msra.mxu0 0.0
    %1332 = vmatprep.subr.mxu0 0.0
    %1333 = vmatpush1.msra.mxu0 0.0
    %1334 = vmatprep.subr.mxu0 0.0
    %1335 = vmatpush1.msra.mxu0 0.0
    %1336 = vmatprep.mubr.f32.mxu0 0.0
    %1337 = vmatmul.mubr.f32.gmra.mrb[0].mxu0 %v112
    %v1338 = vpop.f32.mrb[0].mxu0
    %v1339 = vadd.f32 0.0, %v1338
    %v1340 = vpop.f32.mrb[0].mxu0
    %1341 = vmatprep.mubr.f32.mxu0 0.0
    %1342 = vmatmul.mubr.f32.gmra.mrb[0].mxu0 %v115
    %v1343 = vpop.f32.mrb[0].mxu0
    %v1344 = vadd.f32 0.0, %v1343
    %v1345 = vpop.f32.mrb[0].mxu0
    %1346 = vmatprep.mubr.f32.mxu0 0.0
    %1347 = vmatmul.mubr.f32.gmra.mrb[0].mxu0 %v118
    %v1348 = vpop.f32.mrb[0].mxu0
    %v1349 = vadd.f32 0.0, %v1348
    %v1350 = vpop.f32.mrb[0].mxu0
    %1351 = vdwg.mxu0
    %1352 = vmatprep.subr.mxu0 0.0
    %1353 = vmatpush1.msra.mxu0 %v1270
    %1354 = vmatprep.subr.mxu0 0.0
    %1355 = vmatpush1.msra.mxu0 %v1271
    %1356 = vmatprep.subr.mxu0 0.0
    %1357 = vmatpush1.msra.mxu0 0.0
    %1358 = vmatprep.subr.mxu0 0.0
    %1359 = vmatpush1.msra.mxu0 0.0
    %1360 = vmatprep.subr.mxu0 0.0
    %1361 = vmatpush1.msra.mxu0 0.0
    %1362 = vmatprep.subr.mxu0 0.0
    %1363 = vmatpush1.msra.mxu0 0.0
    %1364 = vmatprep.subr.mxu0 0.0
    %1365 = vmatpush1.msra.mxu0 0.0
    %1366 = vmatprep.subr.mxu0 0.0
    %1367 = vmatpush1.msra.mxu0 0.0
    %1368 = vmatprep.subr.mxu0 0.0
    %1369 = vmatpush1.msra.mxu0 0.0
    %1370 = vmatprep.subr.mxu0 0.0
    %1371 = vmatpush1.msra.mxu0 0.0
    %1372 = vmatprep.subr.mxu0 0.0
    %1373 = vmatpush1.msra.mxu0 0.0
    %1374 = vmatprep.subr.mxu0 0.0
    %1375 = vmatpush1.msra.mxu0 0.0
    %1376 = vmatprep.subr.mxu0 0.0
    %1377 = vmatpush1.msra.mxu0 0.0
    %1378 = vmatprep.subr.mxu0 0.0
    %1379 = vmatpush1.msra.mxu0 0.0
    %1380 = vmatprep.subr.mxu0 0.0
    %1381 = vmatpush1.msra.mxu0 0.0
    %1382 = vmatprep.subr.mxu0 0.0
    %1383 = vmatpush1.msra.mxu0 0.0
    %1384 = vmatprep.subr.mxu0 0.0
    %1385 = vmatpush1.msra.mxu0 0.0
    %1386 = vmatprep.subr.mxu0 0.0
    %1387 = vmatpush1.msra.mxu0 0.0
    %1388 = vmatprep.subr.mxu0 0.0
    %1389 = vmatpush1.msra.mxu0 0.0
    %1390 = vmatprep.subr.mxu0 0.0
    %1391 = vmatpush1.msra.mxu0 0.0
    %1392 = vmatprep.subr.mxu0 0.0
    %1393 = vmatpush1.msra.mxu0 0.0
    %1394 = vmatprep.subr.mxu0 0.0
    %1395 = vmatpush1.msra.mxu0 0.0
    %1396 = vmatprep.subr.mxu0 0.0
    %1397 = vmatpush1.msra.mxu0 0.0
    %1398 = vmatprep.subr.mxu0 0.0
    %1399 = vmatpush1.msra.mxu0 0.0
    %1400 = vmatprep.subr.mxu0 0.0
    %1401 = vmatpush1.msra.mxu0 0.0
    %1402 = vmatprep.subr.mxu0 0.0
    %1403 = vmatpush1.msra.mxu0 0.0
    %1404 = vmatprep.subr.mxu0 0.0
    %1405 = vmatpush1.msra.mxu0 0.0
    %1406 = vmatprep.subr.mxu0 0.0
    %1407 = vmatpush1.msra.mxu0 0.0
    %1408 = vmatprep.subr.mxu0 0.0
    %1409 = vmatpush1.msra.mxu0 0.0
    %1410 = vmatprep.subr.mxu0 0.0
    %1411 = vmatpush1.msra.mxu0 0.0
    %1412 = vmatprep.subr.mxu0 0.0
    %1413 = vmatpush1.msra.mxu0 0.0
    %1414 = vmatprep.subr.mxu0 0.0
    %1415 = vmatpush1.msra.mxu0 0.0
    %1416 = vmatprep.mubr.f32.mxu0 0.0
    %1417 = vmatmul.mubr.f32.gmra.mrb[0].mxu0 %v201
    %v1418 = vpop.f32.mrb[0].mxu0
    %v1419 = vadd.f32 %v1339, %v1418
    %v1420 = vpop.f32.mrb[0].mxu0
    %1421 = vmatprep.mubr.f32.mxu0 0.0
    %1422 = vmatmul.mubr.f32.gmra.mrb[0].mxu0 %v204
    %v1423 = vpop.f32.mrb[0].mxu0
    %v1424 = vadd.f32 %v1344, %v1423
    %v1425 = vpop.f32.mrb[0].mxu0
    %1426 = vmatprep.mubr.f32.mxu0 0.0
    %1427 = vmatmul.mubr.f32.gmra.mrb[0].mxu0 %v207
    %v1428 = vpop.f32.mrb[0].mxu0
    %v1429 = vadd.f32 %v1349, %v1428
    %v1430 = vpop.f32.mrb[0].mxu0
    %1431 = vdwg.mxu0
    %v1432 = vadd.f32 %v1419, %v292
    %v1433 = vadd.f32 %v1424, %v297
    %v1434 = vadd.f32 %v1429, %v302
    %v1435 = vmax.f32 %v1432, %v1433
    %v1436 = vmax.f32 %v1435, %v1434
    %v1437 = vand.u32 2147483647, %v1436
    %vm1438 = vcmp.eq.f32.partialorder %v1437, inf
    %v1439 = vsel %vm1438, 0.0, %v1436
    %v1440 = vsub.f32 %v1432, %v1439
    %v1441 = vmul.f32 %v1440, 1.442695
    %v1442 = vpow.pop %v1441
    %v1443 = vadd.f32 %v1442, 0.0
    %v1444 = vsub.f32 %v1433, %v1439
    %v1445 = vmul.f32 %v1444, 1.442695
    %v1446 = vpow.pop %v1445
    %v1447 = vadd.f32 %v1443, %v1446
    %v1448 = vsub.f32 %v1434, %v1439
    %v1449 = vmul.f32 %v1448, 1.442695
    %v1450 = vpow.pop %v1449
    %v1451 = vadd.f32 %v1447, %v1450
    %v1452 = vmax.f32 %v1451, 1e-08
    %v1453 = vlog2.pop %v1452
    %v1454 = vmul.f32 %v1453, 0.6931472
    %v1455 = vadd.f32 %v1454, %v1439
    %v1457 = vrot.slane %v1455, 1
    %v1458 = vrot.slane %v1455, 2
    %v1459 = vrot.slane %v1455, 3
    %v1460 = vrot.slane %v1455, 4
    %v1461 = vrot.slane %v1455, 5
    %v1462 = vrot.slane %v1455, 6
    %v1463 = vrot.slane %v1455, 7
    %v1472 = vadd.f32 %v1127, %v1455
    %v1473 = vadd.f32 %v1133, %v1457
    %v1474 = vadd.f32 %v1139, %v1458
    %v1475 = vadd.f32 %v1145, %v1459
    %v1476 = vadd.f32 %v1151, %v1460
    %v1477 = vadd.f32 %v1157, %v1461
    %v1478 = vadd.f32 %v1163, %v1462
    %v1479 = vadd.f32 %v1169, %v1463
    %v1488 = vrot.slane %v1473, 7
    %v1489 = vsel %vm473, %v1488, %v1472
    %v1490 = vrot.slane %v1474, 6
    %v1491 = vsel %vm475, %v1490, %v1489
    %v1492 = vrot.slane %v1475, 5
    %v1493 = vsel %vm477, %v1492, %v1491
    %v1494 = vrot.slane %v1476, 4
    %v1495 = vsel %vm479, %v1494, %v1493
    %v1496 = vrot.slane %v1477, 3
    %v1497 = vsel %vm481, %v1496, %v1495
    %v1498 = vrot.slane %v1478, 2
    %v1499 = vsel %vm483, %v1498, %v1497
    %v1500 = vrot.slane %v1479, 1
    %v1501 = vsel %vm485, %v1500, %v1499
    %v1503 = vadd.f32 %v54, %v1501
    %v1504 = vadd.f32 %v61, %v1501
    %v1505 = vadd.f32 %v68, %v1501
    %v1506 = vadd.f32 %v75, %v1501
    %v1507 = vadd.f32 %v82, %v1501
    %v1508 = vadd.f32 %v89, %v1501
    %v1509 = vadd.f32 %v96, %v1501
    %v1510 = vadd.f32 %v103, %v1501
    %v1511 = vrot.slane %v1503, 4
    %v1512 = vmax.f32 %v1503, %v1511
    %v1513 = vrot.slane %v1512, 2
    %v1514 = vmax.f32 %v1512, %v1513
    %v1515 = vrot.slane %v1514, 1
    %v1516 = vmax.f32 %v1514, %v1515
    %v1517 = vrot.slane %v1504, 4
    %v1518 = vmax.f32 %v1504, %v1517
    %v1519 = vrot.slane %v1518, 2
    %v1520 = vmax.f32 %v1518, %v1519
    %v1521 = vrot.slane %v1520, 1
    %v1522 = vmax.f32 %v1520, %v1521
    %v1523 = vrot.slane %v1505, 4
    %v1524 = vmax.f32 %v1505, %v1523
    %v1525 = vrot.slane %v1524, 2
    %v1526 = vmax.f32 %v1524, %v1525
    %v1527 = vrot.slane %v1526, 1
    %v1528 = vmax.f32 %v1526, %v1527
    %v1529 = vrot.slane %v1506, 4
    %v1530 = vmax.f32 %v1506, %v1529
    %v1531 = vrot.slane %v1530, 2
    %v1532 = vmax.f32 %v1530, %v1531
    %v1533 = vrot.slane %v1532, 1
    %v1534 = vmax.f32 %v1532, %v1533
    %v1535 = vrot.slane %v1507, 4
    %v1536 = vmax.f32 %v1507, %v1535
    %v1537 = vrot.slane %v1536, 2
    %v1538 = vmax.f32 %v1536, %v1537
    %v1539 = vrot.slane %v1538, 1
    %v1540 = vmax.f32 %v1538, %v1539
    %v1541 = vrot.slane %v1508, 4
    %v1542 = vmax.f32 %v1508, %v1541
    %v1543 = vrot.slane %v1542, 2
    %v1544 = vmax.f32 %v1542, %v1543
    %v1545 = vrot.slane %v1544, 1
    %v1546 = vmax.f32 %v1544, %v1545
    %v1547 = vrot.slane %v1509, 4
    %v1548 = vmax.f32 %v1509, %v1547
    %v1549 = vrot.slane %v1548, 2
    %v1550 = vmax.f32 %v1548, %v1549
    %v1551 = vrot.slane %v1550, 1
    %v1552 = vmax.f32 %v1550, %v1551
    %v1553 = vrot.slane %v1510, 4
    %v1554 = vmax.f32 %v1510, %v1553
    %v1555 = vrot.slane %v1554, 2
    %v1556 = vmax.f32 %v1554, %v1555
    %v1557 = vrot.slane %v1556, 1
    %v1558 = vmax.f32 %v1556, %v1557
    %vm1559 = vcmp.ge.f32.partialorder %v1503, %v1516
    %vm1560 = vcmp.ge.f32.partialorder %v1504, %v1522
    %vm1561 = vcmp.ge.f32.partialorder %v1505, %v1528
    %vm1562 = vcmp.ge.f32.partialorder %v1506, %v1534
    %vm1563 = vcmp.ge.f32.partialorder %v1507, %v1540
    %vm1564 = vcmp.ge.f32.partialorder %v1508, %v1546
    %vm1565 = vcmp.ge.f32.partialorder %v1509, %v1552
    %vm1566 = vcmp.ge.f32.partialorder %v1510, %v1558
    %v1567 = vsel %vm1559, %v105, 8
    %v1568 = vsel %vm1560, %v105, 8
    %v1569 = vsel %vm1561, %v105, 8
    %v1570 = vsel %vm1562, %v105, 8
    %v1571 = vsel %vm1563, %v105, 8
    %v1572 = vsel %vm1564, %v105, 8
    %v1573 = vsel %vm1565, %v105, 8
    %v1574 = vsel %vm1566, %v105, 8
    %v1575 = vrot.slane %v1567, 4
    %vm1576 = vcmp.lt.s32.totalorder %v1567, %v1575
    %v1577 = vsel %vm1576, %v1567, %v1575
    %v1578 = vrot.slane %v1577, 2
    %vm1579 = vcmp.lt.s32.totalorder %v1577, %v1578
    %v1580 = vsel %vm1579, %v1577, %v1578
    %v1581 = vrot.slane %v1580, 1
    %vm1582 = vcmp.lt.s32.totalorder %v1580, %v1581
    %v1583 = vsel %vm1582, %v1580, %v1581
    %v1584 = vrot.slane %v1568, 4
    %vm1585 = vcmp.lt.s32.totalorder %v1568, %v1584
    %v1586 = vsel %vm1585, %v1568, %v1584
    %v1587 = vrot.slane %v1586, 2
    %vm1588 = vcmp.lt.s32.totalorder %v1586, %v1587
    %v1589 = vsel %vm1588, %v1586, %v1587
    %v1590 = vrot.slane %v1589, 1
    %vm1591 = vcmp.lt.s32.totalorder %v1589, %v1590
    %v1592 = vsel %vm1591, %v1589, %v1590
    %v1593 = vrot.slane %v1569, 4
    %vm1594 = vcmp.lt.s32.totalorder %v1569, %v1593
    %v1595 = vsel %vm1594, %v1569, %v1593
    %v1596 = vrot.slane %v1595, 2
    %vm1597 = vcmp.lt.s32.totalorder %v1595, %v1596
    %v1598 = vsel %vm1597, %v1595, %v1596
    %v1599 = vrot.slane %v1598, 1
    %vm1600 = vcmp.lt.s32.totalorder %v1598, %v1599
    %v1601 = vsel %vm1600, %v1598, %v1599
    %v1602 = vrot.slane %v1570, 4
    %vm1603 = vcmp.lt.s32.totalorder %v1570, %v1602
    %v1604 = vsel %vm1603, %v1570, %v1602
    %v1605 = vrot.slane %v1604, 2
    %vm1606 = vcmp.lt.s32.totalorder %v1604, %v1605
    %v1607 = vsel %vm1606, %v1604, %v1605
    %v1608 = vrot.slane %v1607, 1
    %vm1609 = vcmp.lt.s32.totalorder %v1607, %v1608
    %v1610 = vsel %vm1609, %v1607, %v1608
    %v1611 = vrot.slane %v1571, 4
    %vm1612 = vcmp.lt.s32.totalorder %v1571, %v1611
    %v1613 = vsel %vm1612, %v1571, %v1611
    %v1614 = vrot.slane %v1613, 2
    %vm1615 = vcmp.lt.s32.totalorder %v1613, %v1614
    %v1616 = vsel %vm1615, %v1613, %v1614
    %v1617 = vrot.slane %v1616, 1
    %vm1618 = vcmp.lt.s32.totalorder %v1616, %v1617
    %v1619 = vsel %vm1618, %v1616, %v1617
    %v1620 = vrot.slane %v1572, 4
    %vm1621 = vcmp.lt.s32.totalorder %v1572, %v1620
    %v1622 = vsel %vm1621, %v1572, %v1620
    %v1623 = vrot.slane %v1622, 2
    %vm1624 = vcmp.lt.s32.totalorder %v1622, %v1623
    %v1625 = vsel %vm1624, %v1622, %v1623
    %v1626 = vrot.slane %v1625, 1
    %vm1627 = vcmp.lt.s32.totalorder %v1625, %v1626
    %v1628 = vsel %vm1627, %v1625, %v1626
    %v1629 = vrot.slane %v1573, 4
    %vm1630 = vcmp.lt.s32.totalorder %v1573, %v1629
    %v1631 = vsel %vm1630, %v1573, %v1629
    %v1632 = vrot.slane %v1631, 2
    %vm1633 = vcmp.lt.s32.totalorder %v1631, %v1632
    %v1634 = vsel %vm1633, %v1631, %v1632
    %v1635 = vrot.slane %v1634, 1
    %vm1636 = vcmp.lt.s32.totalorder %v1634, %v1635
    %v1637 = vsel %vm1636, %v1634, %v1635
    %v1638 = vrot.slane %v1574, 4
    %vm1639 = vcmp.lt.s32.totalorder %v1574, %v1638
    %v1640 = vsel %vm1639, %v1574, %v1638
    %v1641 = vrot.slane %v1640, 2
    %vm1642 = vcmp.lt.s32.totalorder %v1640, %v1641
    %v1643 = vsel %vm1642, %v1640, %v1641
    %v1644 = vrot.slane %v1643, 1
    %vm1645 = vcmp.lt.s32.totalorder %v1643, %v1644
    %v1646 = vsel %vm1645, %v1643, %v1644
    %v1647 = vsel %vm473, %v1592, %v1583
    %v1648 = vsel %vm475, %v1601, %v1647
    %v1649 = vsel %vm477, %v1610, %v1648
    %v1650 = vsel %vm479, %v1619, %v1649
    %v1651 = vsel %vm481, %v1628, %v1650
    %v1652 = vsel %vm483, %v1637, %v1651
    %v1653 = vsel %vm485, %v1646, %v1652
    %s1654 = scalar_lea.vmem [#allocation2], 32
    %1655 = vst [vmem:[%s1654] sm:$0xff] %v1653
    %s1656 = scalar_lea.vmem [#allocation3], 64
    %v1657 = vld [vmem:[%s1656] sm:$0xff]
    %v1658 = vld [vmem:[%s1656 + $0x8] sm:$0xff]
    %v1659 = vmul.f32 %v1657, %v1657
    %v1660 = vmul.f32 %v1658, %v1658
    %1661 = vmatprep.subr.mxu0 0.0
    %1662 = vmatpush1.msra.mxu0 %v1657
    %1663 = vmatprep.subr.mxu0 0.0
    %1664 = vmatpush1.msra.mxu0 %v1658
    %1665 = vmatprep.subr.mxu0 0.0
    %1666 = vmatpush1.msra.mxu0 0.0
    %1667 = vmatprep.subr.mxu0 0.0
    %1668 = vmatpush1.msra.mxu0 0.0
    %1669 = vmatprep.subr.mxu0 0.0
    %1670 = vmatpush1.msra.mxu0 0.0
    %1671 = vmatprep.subr.mxu0 0.0
    %1672 = vmatpush1.msra.mxu0 0.0
    %1673 = vmatprep.subr.mxu0 0.0
    %1674 = vmatpush1.msra.mxu0 0.0
    %1675 = vmatprep.subr.mxu0 0.0
    %1676 = vmatpush1.msra.mxu0 0.0
    %1677 = vmatprep.subr.mxu0 0.0
    %1678 = vmatpush1.msra.mxu0 0.0
    %1679 = vmatprep.subr.mxu0 0.0
    %1680 = vmatpush1.msra.mxu0 0.0
    %1681 = vmatprep.subr.mxu0 0.0
    %1682 = vmatpush1.msra.mxu0 0.0
    %1683 = vmatprep.subr.mxu0 0.0
    %1684 = vmatpush1.msra.mxu0 0.0
    %1685 = vmatprep.subr.mxu0 0.0
    %1686 = vmatpush1.msra.mxu0 0.0
    %1687 = vmatprep.subr.mxu0 0.0
    %1688 = vmatpush1.msra.mxu0 0.0
    %1689 = vmatprep.subr.mxu0 0.0
    %1690 = vmatpush1.msra.mxu0 0.0
    %1691 = vmatprep.subr.mxu0 0.0
    %1692 = vmatpush1.msra.mxu0 0.0
    %1693 = vmatprep.subr.mxu0 0.0
    %1694 = vmatpush1.msra.mxu0 0.0
    %1695 = vmatprep.subr.mxu0 0.0
    %1696 = vmatpush1.msra.mxu0 0.0
    %1697 = vmatprep.subr.mxu0 0.0
    %1698 = vmatpush1.msra.mxu0 0.0
    %1699 = vmatprep.subr.mxu0 0.0
    %1700 = vmatpush1.msra.mxu0 0.0
    %1701 = vmatprep.subr.mxu0 0.0
    %1702 = vmatpush1.msra.mxu0 0.0
    %1703 = vmatprep.subr.mxu0 0.0
    %1704 = vmatpush1.msra.mxu0 0.0
    %1705 = vmatprep.subr.mxu0 0.0
    %1706 = vmatpush1.msra.mxu0 0.0
    %1707 = vmatprep.subr.mxu0 0.0
    %1708 = vmatpush1.msra.mxu0 0.0
    %1709 = vmatprep.subr.mxu0 0.0
    %1710 = vmatpush1.msra.mxu0 0.0
    %1711 = vmatprep.subr.mxu0 0.0
    %1712 = vmatpush1.msra.mxu0 0.0
    %1713 = vmatprep.subr.mxu0 0.0
    %1714 = vmatpush1.msra.mxu0 0.0
    %1715 = vmatprep.subr.mxu0 0.0
    %1716 = vmatpush1.msra.mxu0 0.0
    %1717 = vmatprep.subr.mxu0 0.0
    %1718 = vmatpush1.msra.mxu0 0.0
    %1719 = vmatprep.subr.mxu0 0.0
    %1720 = vmatpush1.msra.mxu0 0.0
    %1721 = vmatprep.subr.mxu0 0.0
    %1722 = vmatpush1.msra.mxu0 0.0
    %1723 = vmatprep.subr.mxu0 0.0
    %1724 = vmatpush1.msra.mxu0 0.0
    %1725 = vmatprep.mubr.f32.mxu0 0.0
    %1726 = vmatmul.mubr.f32.gmra.mrb[0].mxu0 %v112
    %v1727 = vpop.f32.mrb[0].mxu0
    %v1728 = vadd.f32 0.0, %v1727
    %v1729 = vpop.f32.mrb[0].mxu0
    %1730 = vmatprep.mubr.f32.mxu0 0.0
    %1731 = vmatmul.mubr.f32.gmra.mrb[0].mxu0 %v115
    %v1732 = vpop.f32.mrb[0].mxu0
    %v1733 = vadd.f32 0.0, %v1732
    %v1734 = vpop.f32.mrb[0].mxu0
    %1735 = vmatprep.mubr.f32.mxu0 0.0
    %1736 = vmatmul.mubr.f32.gmra.mrb[0].mxu0 %v118
    %v1737 = vpop.f32.mrb[0].mxu0
    %v1738 = vadd.f32 0.0, %v1737
    %v1739 = vpop.f32.mrb[0].mxu0
    %1740 = vdwg.mxu0
    %1741 = vmatprep.subr.mxu0 0.0
    %1742 = vmatpush1.msra.mxu0 %v1659
    %1743 = vmatprep.subr.mxu0 0.0
    %1744 = vmatpush1.msra.mxu0 %v1660
    %1745 = vmatprep.subr.mxu0 0.0
    %1746 = vmatpush1.msra.mxu0 0.0
    %1747 = vmatprep.subr.mxu0 0.0
    %1748 = vmatpush1.msra.mxu0 0.0
    %1749 = vmatprep.subr.mxu0 0.0
    %1750 = vmatpush1.msra.mxu0 0.0
    %1751 = vmatprep.subr.mxu0 0.0
    %1752 = vmatpush1.msra.mxu0 0.0
    %1753 = vmatprep.subr.mxu0 0.0
    %1754 = vmatpush1.msra.mxu0 0.0
    %1755 = vmatprep.subr.mxu0 0.0
    %1756 = vmatpush1.msra.mxu0 0.0
    %1757 = vmatprep.subr.mxu0 0.0
    %1758 = vmatpush1.msra.mxu0 0.0
    %1759 = vmatprep.subr.mxu0 0.0
    %1760 = vmatpush1.msra.mxu0 0.0
    %1761 = vmatprep.subr.mxu0 0.0
    %1762 = vmatpush1.msra.mxu0 0.0
    %1763 = vmatprep.subr.mxu0 0.0
    %1764 = vmatpush1.msra.mxu0 0.0
    %1765 = vmatprep.subr.mxu0 0.0
    %1766 = vmatpush1.msra.mxu0 0.0
    %1767 = vmatprep.subr.mxu0 0.0
    %1768 = vmatpush1.msra.mxu0 0.0
    %1769 = vmatprep.subr.mxu0 0.0
    %1770 = vmatpush1.msra.mxu0 0.0
    %1771 = vmatprep.subr.mxu0 0.0
    %1772 = vmatpush1.msra.mxu0 0.0
    %1773 = vmatprep.subr.mxu0 0.0
    %1774 = vmatpush1.msra.mxu0 0.0
    %1775 = vmatprep.subr.mxu0 0.0
    %1776 = vmatpush1.msra.mxu0 0.0
    %1777 = vmatprep.subr.mxu0 0.0
    %1778 = vmatpush1.msra.mxu0 0.0
    %1779 = vmatprep.subr.mxu0 0.0
    %1780 = vmatpush1.msra.mxu0 0.0
    %1781 = vmatprep.subr.mxu0 0.0
    %1782 = vmatpush1.msra.mxu0 0.0
    %1783 = vmatprep.subr.mxu0 0.0
    %1784 = vmatpush1.msra.mxu0 0.0
    %1785 = vmatprep.subr.mxu0 0.0
    %1786 = vmatpush1.msra.mxu0 0.0
    %1787 = vmatprep.subr.mxu0 0.0
    %1788 = vmatpush1.msra.mxu0 0.0
    %1789 = vmatprep.subr.mxu0 0.0
    %1790 = vmatpush1.msra.mxu0 0.0
    %1791 = vmatprep.subr.mxu0 0.0
    %1792 = vmatpush1.msra.mxu0 0.0
    %1793 = vmatprep.subr.mxu0 0.0
    %1794 = vmatpush1.msra.mxu0 0.0
    %1795 = vmatprep.subr.mxu0 0.0
    %1796 = vmatpush1.msra.mxu0 0.0
    %1797 = vmatprep.subr.mxu0 0.0
    %1798 = vmatpush1.msra.mxu0 0.0
    %1799 = vmatprep.subr.mxu0 0.0
    %1800 = vmatpush1.msra.mxu0 0.0
    %1801 = vmatprep.subr.mxu0 0.0
    %1802 = vmatpush1.msra.mxu0 0.0
    %1803 = vmatprep.subr.mxu0 0.0
    %1804 = vmatpush1.msra.mxu0 0.0
    %1805 = vmatprep.mubr.f32.mxu0 0.0
    %1806 = vmatmul.mubr.f32.gmra.mrb[0].mxu0 %v201
    %v1807 = vpop.f32.mrb[0].mxu0
    %v1808 = vadd.f32 %v1728, %v1807
    %v1809 = vpop.f32.mrb[0].mxu0
    %1810 = vmatprep.mubr.f32.mxu0 0.0
    %1811 = vmatmul.mubr.f32.gmra.mrb[0].mxu0 %v204
    %v1812 = vpop.f32.mrb[0].mxu0
    %v1813 = vadd.f32 %v1733, %v1812
    %v1814 = vpop.f32.mrb[0].mxu0
    %1815 = vmatprep.mubr.f32.mxu0 0.0
    %1816 = vmatmul.mubr.f32.gmra.mrb[0].mxu0 %v207
    %v1817 = vpop.f32.mrb[0].mxu0
    %v1818 = vadd.f32 %v1738, %v1817
    %v1819 = vpop.f32.mrb[0].mxu0
    %1820 = vdwg.mxu0
    %v1821 = vadd.f32 %v1808, %v292
    %v1822 = vadd.f32 %v1813, %v297
    %v1823 = vadd.f32 %v1818, %v302
    %v1824 = vmax.f32 %v1821, %v1822
    %v1825 = vmax.f32 %v1824, %v1823
    %v1826 = vand.u32 2147483647, %v1825
    %vm1827 = vcmp.eq.f32.partialorder %v1826, inf
    %v1828 = vsel %vm1827, 0.0, %v1825
    %v1829 = vsub.f32 %v1821, %v1828
    %v1830 = vmul.f32 %v1829, 1.442695
    %v1831 = vpow.pop %v1830
    %v1832 = vadd.f32 %v1831, 0.0
    %v1833 = vsub.f32 %v1822, %v1828
    %v1834 = vmul.f32 %v1833, 1.442695
    %v1835 = vpow.pop %v1834
    %v1836 = vadd.f32 %v1832, %v1835
    %v1837 = vsub.f32 %v1823, %v1828
    %v1838 = vmul.f32 %v1837, 1.442695
    %v1839 = vpow.pop %v1838
    %v1840 = vadd.f32 %v1836, %v1839
    %v1841 = vmax.f32 %v1840, 1e-08
    %v1842 = vlog2.pop %v1841
    %v1843 = vmul.f32 %v1842, 0.6931472
    %v1844 = vadd.f32 %v1843, %v1828
    %v1846 = vrot.slane %v1844, 1
    %v1847 = vrot.slane %v1844, 2
    %v1848 = vrot.slane %v1844, 3
    %v1849 = vrot.slane %v1844, 4
    %v1850 = vrot.slane %v1844, 5
    %v1851 = vrot.slane %v1844, 6
    %v1852 = vrot.slane %v1844, 7
    %v1861 = vadd.f32 %v1516, %v1844
    %v1862 = vadd.f32 %v1522, %v1846
    %v1863 = vadd.f32 %v1528, %v1847
    %v1864 = vadd.f32 %v1534, %v1848
    %v1865 = vadd.f32 %v1540, %v1849
    %v1866 = vadd.f32 %v1546, %v1850
    %v1867 = vadd.f32 %v1552, %v1851
    %v1868 = vadd.f32 %v1558, %v1852
    %v1877 = vrot.slane %v1862, 7
    %v1878 = vsel %vm473, %v1877, %v1861
    %v1879 = vrot.slane %v1863, 6
    %v1880 = vsel %vm475, %v1879, %v1878
    %v1881 = vrot.slane %v1864, 5
    %v1882 = vsel %vm477, %v1881, %v1880
    %v1883 = vrot.slane %v1865, 4
    %v1884 = vsel %vm479, %v1883, %v1882
    %v1885 = vrot.slane %v1866, 3
    %v1886 = vsel %vm481, %v1885, %v1884
    %v1887 = vrot.slane %v1867, 2
    %v1888 = vsel %vm483, %v1887, %v1886
    %v1889 = vrot.slane %v1868, 1
    %v1890 = vsel %vm485, %v1889, %v1888
    %v1892 = vadd.f32 %v54, %v1890
    %v1893 = vadd.f32 %v61, %v1890
    %v1894 = vadd.f32 %v68, %v1890
    %v1895 = vadd.f32 %v75, %v1890
    %v1896 = vadd.f32 %v82, %v1890
    %v1897 = vadd.f32 %v89, %v1890
    %v1898 = vadd.f32 %v96, %v1890
    %v1899 = vadd.f32 %v103, %v1890
    %v1900 = vrot.slane %v1892, 4
    %v1901 = vmax.f32 %v1892, %v1900
    %v1902 = vrot.slane %v1901, 2
    %v1903 = vmax.f32 %v1901, %v1902
    %v1904 = vrot.slane %v1903, 1
    %v1905 = vmax.f32 %v1903, %v1904
    %v1906 = vrot.slane %v1893, 4
    %v1907 = vmax.f32 %v1893, %v1906
    %v1908 = vrot.slane %v1907, 2
    %v1909 = vmax.f32 %v1907, %v1908
    %v1910 = vrot.slane %v1909, 1
    %v1911 = vmax.f32 %v1909, %v1910
    %v1912 = vrot.slane %v1894, 4
    %v1913 = vmax.f32 %v1894, %v1912
    %v1914 = vrot.slane %v1913, 2
    %v1915 = vmax.f32 %v1913, %v1914
    %v1916 = vrot.slane %v1915, 1
    %v1917 = vmax.f32 %v1915, %v1916
    %v1918 = vrot.slane %v1895, 4
    %v1919 = vmax.f32 %v1895, %v1918
    %v1920 = vrot.slane %v1919, 2
    %v1921 = vmax.f32 %v1919, %v1920
    %v1922 = vrot.slane %v1921, 1
    %v1923 = vmax.f32 %v1921, %v1922
    %v1924 = vrot.slane %v1896, 4
    %v1925 = vmax.f32 %v1896, %v1924
    %v1926 = vrot.slane %v1925, 2
    %v1927 = vmax.f32 %v1925, %v1926
    %v1928 = vrot.slane %v1927, 1
    %v1929 = vmax.f32 %v1927, %v1928
    %v1930 = vrot.slane %v1897, 4
    %v1931 = vmax.f32 %v1897, %v1930
    %v1932 = vrot.slane %v1931, 2
    %v1933 = vmax.f32 %v1931, %v1932
    %v1934 = vrot.slane %v1933, 1
    %v1935 = vmax.f32 %v1933, %v1934
    %v1936 = vrot.slane %v1898, 4
    %v1937 = vmax.f32 %v1898, %v1936
    %v1938 = vrot.slane %v1937, 2
    %v1939 = vmax.f32 %v1937, %v1938
    %v1940 = vrot.slane %v1939, 1
    %v1941 = vmax.f32 %v1939, %v1940
    %v1942 = vrot.slane %v1899, 4
    %v1943 = vmax.f32 %v1899, %v1942
    %v1944 = vrot.slane %v1943, 2
    %v1945 = vmax.f32 %v1943, %v1944
    %v1946 = vrot.slane %v1945, 1
    %v1947 = vmax.f32 %v1945, %v1946
    %vm1948 = vcmp.ge.f32.partialorder %v1892, %v1905
    %vm1949 = vcmp.ge.f32.partialorder %v1893, %v1911
    %vm1950 = vcmp.ge.f32.partialorder %v1894, %v1917
    %vm1951 = vcmp.ge.f32.partialorder %v1895, %v1923
    %vm1952 = vcmp.ge.f32.partialorder %v1896, %v1929
    %vm1953 = vcmp.ge.f32.partialorder %v1897, %v1935
    %vm1954 = vcmp.ge.f32.partialorder %v1898, %v1941
    %vm1955 = vcmp.ge.f32.partialorder %v1899, %v1947
    %v1956 = vsel %vm1948, %v105, 8
    %v1957 = vsel %vm1949, %v105, 8
    %v1958 = vsel %vm1950, %v105, 8
    %v1959 = vsel %vm1951, %v105, 8
    %v1960 = vsel %vm1952, %v105, 8
    %v1961 = vsel %vm1953, %v105, 8
    %v1962 = vsel %vm1954, %v105, 8
    %v1963 = vsel %vm1955, %v105, 8
    %v1964 = vrot.slane %v1956, 4
    %vm1965 = vcmp.lt.s32.totalorder %v1956, %v1964
    %v1966 = vsel %vm1965, %v1956, %v1964
    %v1967 = vrot.slane %v1966, 2
    %vm1968 = vcmp.lt.s32.totalorder %v1966, %v1967
    %v1969 = vsel %vm1968, %v1966, %v1967
    %v1970 = vrot.slane %v1969, 1
    %vm1971 = vcmp.lt.s32.totalorder %v1969, %v1970
    %v1972 = vsel %vm1971, %v1969, %v1970
    %v1973 = vrot.slane %v1957, 4
    %vm1974 = vcmp.lt.s32.totalorder %v1957, %v1973
    %v1975 = vsel %vm1974, %v1957, %v1973
    %v1976 = vrot.slane %v1975, 2
    %vm1977 = vcmp.lt.s32.totalorder %v1975, %v1976
    %v1978 = vsel %vm1977, %v1975, %v1976
    %v1979 = vrot.slane %v1978, 1
    %vm1980 = vcmp.lt.s32.totalorder %v1978, %v1979
    %v1981 = vsel %vm1980, %v1978, %v1979
    %v1982 = vrot.slane %v1958, 4
    %vm1983 = vcmp.lt.s32.totalorder %v1958, %v1982
    %v1984 = vsel %vm1983, %v1958, %v1982
    %v1985 = vrot.slane %v1984, 2
    %vm1986 = vcmp.lt.s32.totalorder %v1984, %v1985
    %v1987 = vsel %vm1986, %v1984, %v1985
    %v1988 = vrot.slane %v1987, 1
    %vm1989 = vcmp.lt.s32.totalorder %v1987, %v1988
    %v1990 = vsel %vm1989, %v1987, %v1988
    %v1991 = vrot.slane %v1959, 4
    %vm1992 = vcmp.lt.s32.totalorder %v1959, %v1991
    %v1993 = vsel %vm1992, %v1959, %v1991
    %v1994 = vrot.slane %v1993, 2
    %vm1995 = vcmp.lt.s32.totalorder %v1993, %v1994
    %v1996 = vsel %vm1995, %v1993, %v1994
    %v1997 = vrot.slane %v1996, 1
    %vm1998 = vcmp.lt.s32.totalorder %v1996, %v1997
    %v1999 = vsel %vm1998, %v1996, %v1997
    %v2000 = vrot.slane %v1960, 4
    %vm2001 = vcmp.lt.s32.totalorder %v1960, %v2000
    %v2002 = vsel %vm2001, %v1960, %v2000
    %v2003 = vrot.slane %v2002, 2
    %vm2004 = vcmp.lt.s32.totalorder %v2002, %v2003
    %v2005 = vsel %vm2004, %v2002, %v2003
    %v2006 = vrot.slane %v2005, 1
    %vm2007 = vcmp.lt.s32.totalorder %v2005, %v2006
    %v2008 = vsel %vm2007, %v2005, %v2006
    %v2009 = vrot.slane %v1961, 4
    %vm2010 = vcmp.lt.s32.totalorder %v1961, %v2009
    %v2011 = vsel %vm2010, %v1961, %v2009
    %v2012 = vrot.slane %v2011, 2
    %vm2013 = vcmp.lt.s32.totalorder %v2011, %v2012
    %v2014 = vsel %vm2013, %v2011, %v2012
    %v2015 = vrot.slane %v2014, 1
    %vm2016 = vcmp.lt.s32.totalorder %v2014, %v2015
    %v2017 = vsel %vm2016, %v2014, %v2015
    %v2018 = vrot.slane %v1962, 4
    %vm2019 = vcmp.lt.s32.totalorder %v1962, %v2018
    %v2020 = vsel %vm2019, %v1962, %v2018
    %v2021 = vrot.slane %v2020, 2
    %vm2022 = vcmp.lt.s32.totalorder %v2020, %v2021
    %v2023 = vsel %vm2022, %v2020, %v2021
    %v2024 = vrot.slane %v2023, 1
    %vm2025 = vcmp.lt.s32.totalorder %v2023, %v2024
    %v2026 = vsel %vm2025, %v2023, %v2024
    %v2027 = vrot.slane %v1963, 4
    %vm2028 = vcmp.lt.s32.totalorder %v1963, %v2027
    %v2029 = vsel %vm2028, %v1963, %v2027
    %v2030 = vrot.slane %v2029, 2
    %vm2031 = vcmp.lt.s32.totalorder %v2029, %v2030
    %v2032 = vsel %vm2031, %v2029, %v2030
    %v2033 = vrot.slane %v2032, 1
    %vm2034 = vcmp.lt.s32.totalorder %v2032, %v2033
    %v2035 = vsel %vm2034, %v2032, %v2033
    %v2036 = vsel %vm473, %v1981, %v1972
    %v2037 = vsel %vm475, %v1990, %v2036
    %v2038 = vsel %vm477, %v1999, %v2037
    %v2039 = vsel %vm479, %v2008, %v2038
    %v2040 = vsel %vm481, %v2017, %v2039
    %v2041 = vsel %vm483, %v2026, %v2040
    %v2042 = vsel %vm485, %v2035, %v2041
    %s2043 = scalar_lea.vmem [#allocation2], 40
    %2044 = vst [vmem:[%s2043] sm:$0xff] %v2042
    %s2045 = scalar_lea.vmem [#allocation3], 80
    %v2046 = vld [vmem:[%s2045] sm:$0xff]
    %v2047 = vld [vmem:[%s2045 + $0x8] sm:$0xff]
    %v2048 = vmul.f32 %v2046, %v2046
    %v2049 = vmul.f32 %v2047, %v2047
    %2050 = vmatprep.subr.mxu0 0.0
    %2051 = vmatpush1.msra.mxu0 %v2046
    %2052 = vmatprep.subr.mxu0 0.0
    %2053 = vmatpush1.msra.mxu0 %v2047
    %2054 = vmatprep.subr.mxu0 0.0
    %2055 = vmatpush1.msra.mxu0 0.0
    %2056 = vmatprep.subr.mxu0 0.0
    %2057 = vmatpush1.msra.mxu0 0.0
    %2058 = vmatprep.subr.mxu0 0.0
    %2059 = vmatpush1.msra.mxu0 0.0
    %2060 = vmatprep.subr.mxu0 0.0
    %2061 = vmatpush1.msra.mxu0 0.0
    %2062 = vmatprep.subr.mxu0 0.0
    %2063 = vmatpush1.msra.mxu0 0.0
    %2064 = vmatprep.subr.mxu0 0.0
    %2065 = vmatpush1.msra.mxu0 0.0
    %2066 = vmatprep.subr.mxu0 0.0
    %2067 = vmatpush1.msra.mxu0 0.0
    %2068 = vmatprep.subr.mxu0 0.0
    %2069 = vmatpush1.msra.mxu0 0.0
    %2070 = vmatprep.subr.mxu0 0.0
    %2071 = vmatpush1.msra.mxu0 0.0
    %2072 = vmatprep.subr.mxu0 0.0
    %2073 = vmatpush1.msra.mxu0 0.0
    %2074 = vmatprep.subr.mxu0 0.0
    %2075 = vmatpush1.msra.mxu0 0.0
    %2076 = vmatprep.subr.mxu0 0.0
    %2077 = vmatpush1.msra.mxu0 0.0
    %2078 = vmatprep.subr.mxu0 0.0
    %2079 = vmatpush1.msra.mxu0 0.0
    %2080 = vmatprep.subr.mxu0 0.0
    %2081 = vmatpush1.msra.mxu0 0.0
    %2082 = vmatprep.subr.mxu0 0.0
    %2083 = vmatpush1.msra.mxu0 0.0
    %2084 = vmatprep.subr.mxu0 0.0
    %2085 = vmatpush1.msra.mxu0 0.0
    %2086 = vmatprep.subr.mxu0 0.0
    %2087 = vmatpush1.msra.mxu0 0.0
    %2088 = vmatprep.subr.mxu0 0.0
    %2089 = vmatpush1.msra.mxu0 0.0
    %2090 = vmatprep.subr.mxu0 0.0
    %2091 = vmatpush1.msra.mxu0 0.0
    %2092 = vmatprep.subr.mxu0 0.0
    %2093 = vmatpush1.msra.mxu0 0.0
    %2094 = vmatprep.subr.mxu0 0.0
    %2095 = vmatpush1.msra.mxu0 0.0
    %2096 = vmatprep.subr.mxu0 0.0
    %2097 = vmatpush1.msra.mxu0 0.0
    %2098 = vmatprep.subr.mxu0 0.0
    %2099 = vmatpush1.msra.mxu0 0.0
    %2100 = vmatprep.subr.mxu0 0.0
    %2101 = vmatpush1.msra.mxu0 0.0
    %2102 = vmatprep.subr.mxu0 0.0
    %2103 = vmatpush1.msra.mxu0 0.0
    %2104 = vmatprep.subr.mxu0 0.0
    %2105 = vmatpush1.msra.mxu0 0.0
    %2106 = vmatprep.subr.mxu0 0.0
    %2107 = vmatpush1.msra.mxu0 0.0
    %2108 = vmatprep.subr.mxu0 0.0
    %2109 = vmatpush1.msra.mxu0 0.0
    %2110 = vmatprep.subr.mxu0 0.0
    %2111 = vmatpush1.msra.mxu0 0.0
    %2112 = vmatprep.subr.mxu0 0.0
    %2113 = vmatpush1.msra.mxu0 0.0
    %2114 = vmatprep.mubr.f32.mxu0 0.0
    %2115 = vmatmul.mubr.f32.gmra.mrb[0].mxu0 %v112
    %v2116 = vpop.f32.mrb[0].mxu0
    %v2117 = vadd.f32 0.0, %v2116
    %v2118 = vpop.f32.mrb[0].mxu0
    %2119 = vmatprep.mubr.f32.mxu0 0.0
    %2120 = vmatmul.mubr.f32.gmra.mrb[0].mxu0 %v115
    %v2121 = vpop.f32.mrb[0].mxu0
    %v2122 = vadd.f32 0.0, %v2121
    %v2123 = vpop.f32.mrb[0].mxu0
    %2124 = vmatprep.mubr.f32.mxu0 0.0
    %2125 = vmatmul.mubr.f32.gmra.mrb[0].mxu0 %v118
    %v2126 = vpop.f32.mrb[0].mxu0
    %v2127 = vadd.f32 0.0, %v2126
    %v2128 = vpop.f32.mrb[0].mxu0
    %2129 = vdwg.mxu0
    %2130 = vmatprep.subr.mxu0 0.0
    %2131 = vmatpush1.msra.mxu0 %v2048
    %2132 = vmatprep.subr.mxu0 0.0
    %2133 = vmatpush1.msra.mxu0 %v2049
    %2134 = vmatprep.subr.mxu0 0.0
    %2135 = vmatpush1.msra.mxu0 0.0
    %2136 = vmatprep.subr.mxu0 0.0
    %2137 = vmatpush1.msra.mxu0 0.0
    %2138 = vmatprep.subr.mxu0 0.0
    %2139 = vmatpush1.msra.mxu0 0.0
    %2140 = vmatprep.subr.mxu0 0.0
    %2141 = vmatpush1.msra.mxu0 0.0
    %2142 = vmatprep.subr.mxu0 0.0
    %2143 = vmatpush1.msra.mxu0 0.0
    %2144 = vmatprep.subr.mxu0 0.0
    %2145 = vmatpush1.msra.mxu0 0.0
    %2146 = vmatprep.subr.mxu0 0.0
    %2147 = vmatpush1.msra.mxu0 0.0
    %2148 = vmatprep.subr.mxu0 0.0
    %2149 = vmatpush1.msra.mxu0 0.0
    %2150 = vmatprep.subr.mxu0 0.0
    %2151 = vmatpush1.msra.mxu0 0.0
    %2152 = vmatprep.subr.mxu0 0.0
    %2153 = vmatpush1.msra.mxu0 0.0
    %2154 = vmatprep.subr.mxu0 0.0
    %2155 = vmatpush1.msra.mxu0 0.0
    %2156 = vmatprep.subr.mxu0 0.0
    %2157 = vmatpush1.msra.mxu0 0.0
    %2158 = vmatprep.subr.mxu0 0.0
    %2159 = vmatpush1.msra.mxu0 0.0
    %2160 = vmatprep.subr.mxu0 0.0
    %2161 = vmatpush1.msra.mxu0 0.0
    %2162 = vmatprep.subr.mxu0 0.0
    %2163 = vmatpush1.msra.mxu0 0.0
    %2164 = vmatprep.subr.mxu0 0.0
    %2165 = vmatpush1.msra.mxu0 0.0
    %2166 = vmatprep.subr.mxu0 0.0
    %2167 = vmatpush1.msra.mxu0 0.0
    %2168 = vmatprep.subr.mxu0 0.0
    %2169 = vmatpush1.msra.mxu0 0.0
    %2170 = vmatprep.subr.mxu0 0.0
    %2171 = vmatpush1.msra.mxu0 0.0
    %2172 = vmatprep.subr.mxu0 0.0
    %2173 = vmatpush1.msra.mxu0 0.0
    %2174 = vmatprep.subr.mxu0 0.0
    %2175 = vmatpush1.msra.mxu0 0.0
    %2176 = vmatprep.subr.mxu0 0.0
    %2177 = vmatpush1.msra.mxu0 0.0
    %2178 = vmatprep.subr.mxu0 0.0
    %2179 = vmatpush1.msra.mxu0 0.0
    %2180 = vmatprep.subr.mxu0 0.0
    %2181 = vmatpush1.msra.mxu0 0.0
    %2182 = vmatprep.subr.mxu0 0.0
    %2183 = vmatpush1.msra.mxu0 0.0
    %2184 = vmatprep.subr.mxu0 0.0
    %2185 = vmatpush1.msra.mxu0 0.0
    %2186 = vmatprep.subr.mxu0 0.0
    %2187 = vmatpush1.msra.mxu0 0.0
    %2188 = vmatprep.subr.mxu0 0.0
    %2189 = vmatpush1.msra.mxu0 0.0
    %2190 = vmatprep.subr.mxu0 0.0
    %2191 = vmatpush1.msra.mxu0 0.0
    %2192 = vmatprep.subr.mxu0 0.0
    %2193 = vmatpush1.msra.mxu0 0.0
    %2194 = vmatprep.mubr.f32.mxu0 0.0
    %2195 = vmatmul.mubr.f32.gmra.mrb[0].mxu0 %v201
    %v2196 = vpop.f32.mrb[0].mxu0
    %v2197 = vadd.f32 %v2117, %v2196
    %v2198 = vpop.f32.mrb[0].mxu0
    %2199 = vmatprep.mubr.f32.mxu0 0.0
    %2200 = vmatmul.mubr.f32.gmra.mrb[0].mxu0 %v204
    %v2201 = vpop.f32.mrb[0].mxu0
    %v2202 = vadd.f32 %v2122, %v2201
    %v2203 = vpop.f32.mrb[0].mxu0
    %2204 = vmatprep.mubr.f32.mxu0 0.0
    %2205 = vmatmul.mubr.f32.gmra.mrb[0].mxu0 %v207
    %v2206 = vpop.f32.mrb[0].mxu0
    %v2207 = vadd.f32 %v2127, %v2206
    %v2208 = vpop.f32.mrb[0].mxu0
    %2209 = vdwg.mxu0
    %v2210 = vadd.f32 %v2197, %v292
    %v2211 = vadd.f32 %v2202, %v297
    %v2212 = vadd.f32 %v2207, %v302
    %v2213 = vmax.f32 %v2210, %v2211
    %v2214 = vmax.f32 %v2213, %v2212
    %v2215 = vand.u32 2147483647, %v2214
    %vm2216 = vcmp.eq.f32.partialorder %v2215, inf
    %v2217 = vsel %vm2216, 0.0, %v2214
    %v2218 = vsub.f32 %v2210, %v2217
    %v2219 = vmul.f32 %v2218, 1.442695
    %v2220 = vpow.pop %v2219
    %v2221 = vadd.f32 %v2220, 0.0
    %v2222 = vsub.f32 %v2211, %v2217
    %v2223 = vmul.f32 %v2222, 1.442695
    %v2224 = vpow.pop %v2223
    %v2225 = vadd.f32 %v2221, %v2224
    %v2226 = vsub.f32 %v2212, %v2217
    %v2227 = vmul.f32 %v2226, 1.442695
    %v2228 = vpow.pop %v2227
    %v2229 = vadd.f32 %v2225, %v2228
    %v2230 = vmax.f32 %v2229, 1e-08
    %v2231 = vlog2.pop %v2230
    %v2232 = vmul.f32 %v2231, 0.6931472
    %v2233 = vadd.f32 %v2232, %v2217
    %v2235 = vrot.slane %v2233, 1
    %v2236 = vrot.slane %v2233, 2
    %v2237 = vrot.slane %v2233, 3
    %v2238 = vrot.slane %v2233, 4
    %v2239 = vrot.slane %v2233, 5
    %v2240 = vrot.slane %v2233, 6
    %v2241 = vrot.slane %v2233, 7
    %v2250 = vadd.f32 %v1905, %v2233
    %v2251 = vadd.f32 %v1911, %v2235
    %v2252 = vadd.f32 %v1917, %v2236
    %v2253 = vadd.f32 %v1923, %v2237
    %v2254 = vadd.f32 %v1929, %v2238
    %v2255 = vadd.f32 %v1935, %v2239
    %v2256 = vadd.f32 %v1941, %v2240
    %v2257 = vadd.f32 %v1947, %v2241
    %v2266 = vrot.slane %v2251, 7
    %v2267 = vsel %vm473, %v2266, %v2250
    %v2268 = vrot.slane %v2252, 6
    %v2269 = vsel %vm475, %v2268, %v2267
    %v2270 = vrot.slane %v2253, 5
    %v2271 = vsel %vm477, %v2270, %v2269
    %v2272 = vrot.slane %v2254, 4
    %v2273 = vsel %vm479, %v2272, %v2271
    %v2274 = vrot.slane %v2255, 3
    %v2275 = vsel %vm481, %v2274, %v2273
    %v2276 = vrot.slane %v2256, 2
    %v2277 = vsel %vm483, %v2276, %v2275
    %v2278 = vrot.slane %v2257, 1
    %v2279 = vsel %vm485, %v2278, %v2277
    %v2281 = vadd.f32 %v54, %v2279
    %v2282 = vadd.f32 %v61, %v2279
    %v2283 = vadd.f32 %v68, %v2279
    %v2284 = vadd.f32 %v75, %v2279
    %v2285 = vadd.f32 %v82, %v2279
    %v2286 = vadd.f32 %v89, %v2279
    %v2287 = vadd.f32 %v96, %v2279
    %v2288 = vadd.f32 %v103, %v2279
    %v2289 = vrot.slane %v2281, 4
    %v2290 = vmax.f32 %v2281, %v2289
    %v2291 = vrot.slane %v2290, 2
    %v2292 = vmax.f32 %v2290, %v2291
    %v2293 = vrot.slane %v2292, 1
    %v2294 = vmax.f32 %v2292, %v2293
    %v2295 = vrot.slane %v2282, 4
    %v2296 = vmax.f32 %v2282, %v2295
    %v2297 = vrot.slane %v2296, 2
    %v2298 = vmax.f32 %v2296, %v2297
    %v2299 = vrot.slane %v2298, 1
    %v2300 = vmax.f32 %v2298, %v2299
    %v2301 = vrot.slane %v2283, 4
    %v2302 = vmax.f32 %v2283, %v2301
    %v2303 = vrot.slane %v2302, 2
    %v2304 = vmax.f32 %v2302, %v2303
    %v2305 = vrot.slane %v2304, 1
    %v2306 = vmax.f32 %v2304, %v2305
    %v2307 = vrot.slane %v2284, 4
    %v2308 = vmax.f32 %v2284, %v2307
    %v2309 = vrot.slane %v2308, 2
    %v2310 = vmax.f32 %v2308, %v2309
    %v2311 = vrot.slane %v2310, 1
    %v2312 = vmax.f32 %v2310, %v2311
    %v2313 = vrot.slane %v2285, 4
    %v2314 = vmax.f32 %v2285, %v2313
    %v2315 = vrot.slane %v2314, 2
    %v2316 = vmax.f32 %v2314, %v2315
    %v2317 = vrot.slane %v2316, 1
    %v2318 = vmax.f32 %v2316, %v2317
    %v2319 = vrot.slane %v2286, 4
    %v2320 = vmax.f32 %v2286, %v2319
    %v2321 = vrot.slane %v2320, 2
    %v2322 = vmax.f32 %v2320, %v2321
    %v2323 = vrot.slane %v2322, 1
    %v2324 = vmax.f32 %v2322, %v2323
    %v2325 = vrot.slane %v2287, 4
    %v2326 = vmax.f32 %v2287, %v2325
    %v2327 = vrot.slane %v2326, 2
    %v2328 = vmax.f32 %v2326, %v2327
    %v2329 = vrot.slane %v2328, 1
    %v2330 = vmax.f32 %v2328, %v2329
    %v2331 = vrot.slane %v2288, 4
    %v2332 = vmax.f32 %v2288, %v2331
    %v2333 = vrot.slane %v2332, 2
    %v2334 = vmax.f32 %v2332, %v2333
    %v2335 = vrot.slane %v2334, 1
    %v2336 = vmax.f32 %v2334, %v2335
    %vm2337 = vcmp.ge.f32.partialorder %v2281, %v2294
    %vm2338 = vcmp.ge.f32.partialorder %v2282, %v2300
    %vm2339 = vcmp.ge.f32.partialorder %v2283, %v2306
    %vm2340 = vcmp.ge.f32.partialorder %v2284, %v2312
    %vm2341 = vcmp.ge.f32.partialorder %v2285, %v2318
    %vm2342 = vcmp.ge.f32.partialorder %v2286, %v2324
    %vm2343 = vcmp.ge.f32.partialorder %v2287, %v2330
    %vm2344 = vcmp.ge.f32.partialorder %v2288, %v2336
    %v2345 = vsel %vm2337, %v105, 8
    %v2346 = vsel %vm2338, %v105, 8
    %v2347 = vsel %vm2339, %v105, 8
    %v2348 = vsel %vm2340, %v105, 8
    %v2349 = vsel %vm2341, %v105, 8
    %v2350 = vsel %vm2342, %v105, 8
    %v2351 = vsel %vm2343, %v105, 8
    %v2352 = vsel %vm2344, %v105, 8
    %v2353 = vrot.slane %v2345, 4
    %vm2354 = vcmp.lt.s32.totalorder %v2345, %v2353
    %v2355 = vsel %vm2354, %v2345, %v2353
    %v2356 = vrot.slane %v2355, 2
    %vm2357 = vcmp.lt.s32.totalorder %v2355, %v2356
    %v2358 = vsel %vm2357, %v2355, %v2356
    %v2359 = vrot.slane %v2358, 1
    %vm2360 = vcmp.lt.s32.totalorder %v2358, %v2359
    %v2361 = vsel %vm2360, %v2358, %v2359
    %v2362 = vrot.slane %v2346, 4
    %vm2363 = vcmp.lt.s32.totalorder %v2346, %v2362
    %v2364 = vsel %vm2363, %v2346, %v2362
    %v2365 = vrot.slane %v2364, 2
    %vm2366 = vcmp.lt.s32.totalorder %v2364, %v2365
    %v2367 = vsel %vm2366, %v2364, %v2365
    %v2368 = vrot.slane %v2367, 1
    %vm2369 = vcmp.lt.s32.totalorder %v2367, %v2368
    %v2370 = vsel %vm2369, %v2367, %v2368
    %v2371 = vrot.slane %v2347, 4
    %vm2372 = vcmp.lt.s32.totalorder %v2347, %v2371
    %v2373 = vsel %vm2372, %v2347, %v2371
    %v2374 = vrot.slane %v2373, 2
    %vm2375 = vcmp.lt.s32.totalorder %v2373, %v2374
    %v2376 = vsel %vm2375, %v2373, %v2374
    %v2377 = vrot.slane %v2376, 1
    %vm2378 = vcmp.lt.s32.totalorder %v2376, %v2377
    %v2379 = vsel %vm2378, %v2376, %v2377
    %v2380 = vrot.slane %v2348, 4
    %vm2381 = vcmp.lt.s32.totalorder %v2348, %v2380
    %v2382 = vsel %vm2381, %v2348, %v2380
    %v2383 = vrot.slane %v2382, 2
    %vm2384 = vcmp.lt.s32.totalorder %v2382, %v2383
    %v2385 = vsel %vm2384, %v2382, %v2383
    %v2386 = vrot.slane %v2385, 1
    %vm2387 = vcmp.lt.s32.totalorder %v2385, %v2386
    %v2388 = vsel %vm2387, %v2385, %v2386
    %v2389 = vrot.slane %v2349, 4
    %vm2390 = vcmp.lt.s32.totalorder %v2349, %v2389
    %v2391 = vsel %vm2390, %v2349, %v2389
    %v2392 = vrot.slane %v2391, 2
    %vm2393 = vcmp.lt.s32.totalorder %v2391, %v2392
    %v2394 = vsel %vm2393, %v2391, %v2392
    %v2395 = vrot.slane %v2394, 1
    %vm2396 = vcmp.lt.s32.totalorder %v2394, %v2395
    %v2397 = vsel %vm2396, %v2394, %v2395
    %v2398 = vrot.slane %v2350, 4
    %vm2399 = vcmp.lt.s32.totalorder %v2350, %v2398
    %v2400 = vsel %vm2399, %v2350, %v2398
    %v2401 = vrot.slane %v2400, 2
    %vm2402 = vcmp.lt.s32.totalorder %v2400, %v2401
    %v2403 = vsel %vm2402, %v2400, %v2401
    %v2404 = vrot.slane %v2403, 1
    %vm2405 = vcmp.lt.s32.totalorder %v2403, %v2404
    %v2406 = vsel %vm2405, %v2403, %v2404
    %v2407 = vrot.slane %v2351, 4
    %vm2408 = vcmp.lt.s32.totalorder %v2351, %v2407
    %v2409 = vsel %vm2408, %v2351, %v2407
    %v2410 = vrot.slane %v2409, 2
    %vm2411 = vcmp.lt.s32.totalorder %v2409, %v2410
    %v2412 = vsel %vm2411, %v2409, %v2410
    %v2413 = vrot.slane %v2412, 1
    %vm2414 = vcmp.lt.s32.totalorder %v2412, %v2413
    %v2415 = vsel %vm2414, %v2412, %v2413
    %v2416 = vrot.slane %v2352, 4
    %vm2417 = vcmp.lt.s32.totalorder %v2352, %v2416
    %v2418 = vsel %vm2417, %v2352, %v2416
    %v2419 = vrot.slane %v2418, 2
    %vm2420 = vcmp.lt.s32.totalorder %v2418, %v2419
    %v2421 = vsel %vm2420, %v2418, %v2419
    %v2422 = vrot.slane %v2421, 1
    %vm2423 = vcmp.lt.s32.totalorder %v2421, %v2422
    %v2424 = vsel %vm2423, %v2421, %v2422
    %v2425 = vsel %vm473, %v2370, %v2361
    %v2426 = vsel %vm475, %v2379, %v2425
    %v2427 = vsel %vm477, %v2388, %v2426
    %v2428 = vsel %vm479, %v2397, %v2427
    %v2429 = vsel %vm481, %v2406, %v2428
    %v2430 = vsel %vm483, %v2415, %v2429
    %v2431 = vsel %vm485, %v2424, %v2430
    %s2432 = scalar_lea.vmem [#allocation2], 48
    %2433 = vst [vmem:[%s2432] sm:$0xff] %v2431
    %s2434 = scalar_lea.vmem [#allocation3], 96
    %v2435 = vld [vmem:[%s2434] sm:$0xff]
    %v2436 = vld [vmem:[%s2434 + $0x8] sm:$0xff]
    %v2437 = vmul.f32 %v2435, %v2435
    %v2438 = vmul.f32 %v2436, %v2436
    %2439 = vmatprep.subr.mxu0 0.0
    %2440 = vmatpush1.msra.mxu0 %v2435
    %2441 = vmatprep.subr.mxu0 0.0
    %2442 = vmatpush1.msra.mxu0 %v2436
    %2443 = vmatprep.subr.mxu0 0.0
    %2444 = vmatpush1.msra.mxu0 0.0
    %2445 = vmatprep.subr.mxu0 0.0
    %2446 = vmatpush1.msra.mxu0 0.0
    %2447 = vmatprep.subr.mxu0 0.0
    %2448 = vmatpush1.msra.mxu0 0.0
    %2449 = vmatprep.subr.mxu0 0.0
    %2450 = vmatpush1.msra.mxu0 0.0
    %2451 = vmatprep.subr.mxu0 0.0
    %2452 = vmatpush1.msra.mxu0 0.0
    %2453 = vmatprep.subr.mxu0 0.0
    %2454 = vmatpush1.msra.mxu0 0.0
    %2455 = vmatprep.subr.mxu0 0.0
    %2456 = vmatpush1.msra.mxu0 0.0
    %2457 = vmatprep.subr.mxu0 0.0
    %2458 = vmatpush1.msra.mxu0 0.0
    %2459 = vmatprep.subr.mxu0 0.0
    %2460 = vmatpush1.msra.mxu0 0.0
    %2461 = vmatprep.subr.mxu0 0.0
    %2462 = vmatpush1.msra.mxu0 0.0
    %2463 = vmatprep.subr.mxu0 0.0
    %2464 = vmatpush1.msra.mxu0 0.0
    %2465 = vmatprep.subr.mxu0 0.0
    %2466 = vmatpush1.msra.mxu0 0.0
    %2467 = vmatprep.subr.mxu0 0.0
    %2468 = vmatpush1.msra.mxu0 0.0
    %2469 = vmatprep.subr.mxu0 0.0
    %2470 = vmatpush1.msra.mxu0 0.0
    %2471 = vmatprep.subr.mxu0 0.0
    %2472 = vmatpush1.msra.mxu0 0.0
    %2473 = vmatprep.subr.mxu0 0.0
    %2474 = vmatpush1.msra.mxu0 0.0
    %2475 = vmatprep.subr.mxu0 0.0
    %2476 = vmatpush1.msra.mxu0 0.0
    %2477 = vmatprep.subr.mxu0 0.0
    %2478 = vmatpush1.msra.mxu0 0.0
    %2479 = vmatprep.subr.mxu0 0.0
    %2480 = vmatpush1.msra.mxu0 0.0
    %2481 = vmatprep.subr.mxu0 0.0
    %2482 = vmatpush1.msra.mxu0 0.0
    %2483 = vmatprep.subr.mxu0 0.0
    %2484 = vmatpush1.msra.mxu0 0.0
    %2485 = vmatprep.subr.mxu0 0.0
    %2486 = vmatpush1.msra.mxu0 0.0
    %2487 = vmatprep.subr.mxu0 0.0
    %2488 = vmatpush1.msra.mxu0 0.0
    %2489 = vmatprep.subr.mxu0 0.0
    %2490 = vmatpush1.msra.mxu0 0.0
    %2491 = vmatprep.subr.mxu0 0.0
    %2492 = vmatpush1.msra.mxu0 0.0
    %2493 = vmatprep.subr.mxu0 0.0
    %2494 = vmatpush1.msra.mxu0 0.0
    %2495 = vmatprep.subr.mxu0 0.0
    %2496 = vmatpush1.msra.mxu0 0.0
    %2497 = vmatprep.subr.mxu0 0.0
    %2498 = vmatpush1.msra.mxu0 0.0
    %2499 = vmatprep.subr.mxu0 0.0
    %2500 = vmatpush1.msra.mxu0 0.0
    %2501 = vmatprep.subr.mxu0 0.0
    %2502 = vmatpush1.msra.mxu0 0.0
    %2503 = vmatprep.mubr.f32.mxu0 0.0
    %2504 = vmatmul.mubr.f32.gmra.mrb[0].mxu0 %v112
    %v2505 = vpop.f32.mrb[0].mxu0
    %v2506 = vadd.f32 0.0, %v2505
    %v2507 = vpop.f32.mrb[0].mxu0
    %2508 = vmatprep.mubr.f32.mxu0 0.0
    %2509 = vmatmul.mubr.f32.gmra.mrb[0].mxu0 %v115
    %v2510 = vpop.f32.mrb[0].mxu0
    %v2511 = vadd.f32 0.0, %v2510
    %v2512 = vpop.f32.mrb[0].mxu0
    %2513 = vmatprep.mubr.f32.mxu0 0.0
    %2514 = vmatmul.mubr.f32.gmra.mrb[0].mxu0 %v118
    %v2515 = vpop.f32.mrb[0].mxu0
    %v2516 = vadd.f32 0.0, %v2515
    %v2517 = vpop.f32.mrb[0].mxu0
    %2518 = vdwg.mxu0
    %2519 = vmatprep.subr.mxu0 0.0
    %2520 = vmatpush1.msra.mxu0 %v2437
    %2521 = vmatprep.subr.mxu0 0.0
    %2522 = vmatpush1.msra.mxu0 %v2438
    %2523 = vmatprep.subr.mxu0 0.0
    %2524 = vmatpush1.msra.mxu0 0.0
    %2525 = vmatprep.subr.mxu0 0.0
    %2526 = vmatpush1.msra.mxu0 0.0
    %2527 = vmatprep.subr.mxu0 0.0
    %2528 = vmatpush1.msra.mxu0 0.0
    %2529 = vmatprep.subr.mxu0 0.0
    %2530 = vmatpush1.msra.mxu0 0.0
    %2531 = vmatprep.subr.mxu0 0.0
    %2532 = vmatpush1.msra.mxu0 0.0
    %2533 = vmatprep.subr.mxu0 0.0
    %2534 = vmatpush1.msra.mxu0 0.0
    %2535 = vmatprep.subr.mxu0 0.0
    %2536 = vmatpush1.msra.mxu0 0.0
    %2537 = vmatprep.subr.mxu0 0.0
    %2538 = vmatpush1.msra.mxu0 0.0
    %2539 = vmatprep.subr.mxu0 0.0
    %2540 = vmatpush1.msra.mxu0 0.0
    %2541 = vmatprep.subr.mxu0 0.0
    %2542 = vmatpush1.msra.mxu0 0.0
    %2543 = vmatprep.subr.mxu0 0.0
    %2544 = vmatpush1.msra.mxu0 0.0
    %2545 = vmatprep.subr.mxu0 0.0
    %2546 = vmatpush1.msra.mxu0 0.0
    %2547 = vmatprep.subr.mxu0 0.0
    %2548 = vmatpush1.msra.mxu0 0.0
    %2549 = vmatprep.subr.mxu0 0.0
    %2550 = vmatpush1.msra.mxu0 0.0
    %2551 = vmatprep.subr.mxu0 0.0
    %2552 = vmatpush1.msra.mxu0 0.0
    %2553 = vmatprep.subr.mxu0 0.0
    %2554 = vmatpush1.msra.mxu0 0.0
    %2555 = vmatprep.subr.mxu0 0.0
    %2556 = vmatpush1.msra.mxu0 0.0
    %2557 = vmatprep.subr.mxu0 0.0
    %2558 = vmatpush1.msra.mxu0 0.0
    %2559 = vmatprep.subr.mxu0 0.0
    %2560 = vmatpush1.msra.mxu0 0.0
    %2561 = vmatprep.subr.mxu0 0.0
    %2562 = vmatpush1.msra.mxu0 0.0
    %2563 = vmatprep.subr.mxu0 0.0
    %2564 = vmatpush1.msra.mxu0 0.0
    %2565 = vmatprep.subr.mxu0 0.0
    %2566 = vmatpush1.msra.mxu0 0.0
    %2567 = vmatprep.subr.mxu0 0.0
    %2568 = vmatpush1.msra.mxu0 0.0
    %2569 = vmatprep.subr.mxu0 0.0
    %2570 = vmatpush1.msra.mxu0 0.0
    %2571 = vmatprep.subr.mxu0 0.0
    %2572 = vmatpush1.msra.mxu0 0.0
    %2573 = vmatprep.subr.mxu0 0.0
    %2574 = vmatpush1.msra.mxu0 0.0
    %2575 = vmatprep.subr.mxu0 0.0
    %2576 = vmatpush1.msra.mxu0 0.0
    %2577 = vmatprep.subr.mxu0 0.0
    %2578 = vmatpush1.msra.mxu0 0.0
    %2579 = vmatprep.subr.mxu0 0.0
    %2580 = vmatpush1.msra.mxu0 0.0
    %2581 = vmatprep.subr.mxu0 0.0
    %2582 = vmatpush1.msra.mxu0 0.0
    %2583 = vmatprep.mubr.f32.mxu0 0.0
    %2584 = vmatmul.mubr.f32.gmra.mrb[0].mxu0 %v201
    %v2585 = vpop.f32.mrb[0].mxu0
    %v2586 = vadd.f32 %v2506, %v2585
    %v2587 = vpop.f32.mrb[0].mxu0
    %2588 = vmatprep.mubr.f32.mxu0 0.0
    %2589 = vmatmul.mubr.f32.gmra.mrb[0].mxu0 %v204
    %v2590 = vpop.f32.mrb[0].mxu0
    %v2591 = vadd.f32 %v2511, %v2590
    %v2592 = vpop.f32.mrb[0].mxu0
    %2593 = vmatprep.mubr.f32.mxu0 0.0
    %2594 = vmatmul.mubr.f32.gmra.mrb[0].mxu0 %v207
    %v2595 = vpop.f32.mrb[0].mxu0
    %v2596 = vadd.f32 %v2516, %v2595
    %v2597 = vpop.f32.mrb[0].mxu0
    %2598 = vdwg.mxu0
    %v2599 = vadd.f32 %v2586, %v292
    %v2600 = vadd.f32 %v2591, %v297
    %v2601 = vadd.f32 %v2596, %v302
    %v2602 = vmax.f32 %v2599, %v2600
    %v2603 = vmax.f32 %v2602, %v2601
    %v2604 = vand.u32 2147483647, %v2603
    %vm2605 = vcmp.eq.f32.partialorder %v2604, inf
    %v2606 = vsel %vm2605, 0.0, %v2603
    %v2607 = vsub.f32 %v2599, %v2606
    %v2608 = vmul.f32 %v2607, 1.442695
    %v2609 = vpow.pop %v2608
    %v2610 = vadd.f32 %v2609, 0.0
    %v2611 = vsub.f32 %v2600, %v2606
    %v2612 = vmul.f32 %v2611, 1.442695
    %v2613 = vpow.pop %v2612
    %v2614 = vadd.f32 %v2610, %v2613
    %v2615 = vsub.f32 %v2601, %v2606
    %v2616 = vmul.f32 %v2615, 1.442695
    %v2617 = vpow.pop %v2616
    %v2618 = vadd.f32 %v2614, %v2617
    %v2619 = vmax.f32 %v2618, 1e-08
    %v2620 = vlog2.pop %v2619
    %v2621 = vmul.f32 %v2620, 0.6931472
    %v2622 = vadd.f32 %v2621, %v2606
    %v2624 = vrot.slane %v2622, 1
    %v2625 = vrot.slane %v2622, 2
    %v2626 = vrot.slane %v2622, 3
    %v2627 = vrot.slane %v2622, 4
    %v2628 = vrot.slane %v2622, 5
    %v2629 = vrot.slane %v2622, 6
    %v2630 = vrot.slane %v2622, 7
    %v2639 = vadd.f32 %v2294, %v2622
    %v2640 = vadd.f32 %v2300, %v2624
    %v2641 = vadd.f32 %v2306, %v2625
    %v2642 = vadd.f32 %v2312, %v2626
    %v2643 = vadd.f32 %v2318, %v2627
    %v2644 = vadd.f32 %v2324, %v2628
    %v2645 = vadd.f32 %v2330, %v2629
    %v2646 = vadd.f32 %v2336, %v2630
    %v2655 = vrot.slane %v2640, 7
    %v2656 = vsel %vm473, %v2655, %v2639
    %v2657 = vrot.slane %v2641, 6
    %v2658 = vsel %vm475, %v2657, %v2656
    %v2659 = vrot.slane %v2642, 5
    %v2660 = vsel %vm477, %v2659, %v2658
    %v2661 = vrot.slane %v2643, 4
    %v2662 = vsel %vm479, %v2661, %v2660
    %v2663 = vrot.slane %v2644, 3
    %v2664 = vsel %vm481, %v2663, %v2662
    %v2665 = vrot.slane %v2645, 2
    %v2666 = vsel %vm483, %v2665, %v2664
    %v2667 = vrot.slane %v2646, 1
    %v2668 = vsel %vm485, %v2667, %v2666
    %v2670 = vadd.f32 %v54, %v2668
    %v2671 = vadd.f32 %v61, %v2668
    %v2672 = vadd.f32 %v68, %v2668
    %v2673 = vadd.f32 %v75, %v2668
    %v2674 = vadd.f32 %v82, %v2668
    %v2675 = vadd.f32 %v89, %v2668
    %v2676 = vadd.f32 %v96, %v2668
    %v2677 = vadd.f32 %v103, %v2668
    %v2678 = vrot.slane %v2670, 4
    %v2679 = vmax.f32 %v2670, %v2678
    %v2680 = vrot.slane %v2679, 2
    %v2681 = vmax.f32 %v2679, %v2680
    %v2682 = vrot.slane %v2681, 1
    %v2683 = vmax.f32 %v2681, %v2682
    %v2684 = vrot.slane %v2671, 4
    %v2685 = vmax.f32 %v2671, %v2684
    %v2686 = vrot.slane %v2685, 2
    %v2687 = vmax.f32 %v2685, %v2686
    %v2688 = vrot.slane %v2687, 1
    %v2689 = vmax.f32 %v2687, %v2688
    %v2690 = vrot.slane %v2672, 4
    %v2691 = vmax.f32 %v2672, %v2690
    %v2692 = vrot.slane %v2691, 2
    %v2693 = vmax.f32 %v2691, %v2692
    %v2694 = vrot.slane %v2693, 1
    %v2695 = vmax.f32 %v2693, %v2694
    %v2696 = vrot.slane %v2673, 4
    %v2697 = vmax.f32 %v2673, %v2696
    %v2698 = vrot.slane %v2697, 2
    %v2699 = vmax.f32 %v2697, %v2698
    %v2700 = vrot.slane %v2699, 1
    %v2701 = vmax.f32 %v2699, %v2700
    %v2702 = vrot.slane %v2674, 4
    %v2703 = vmax.f32 %v2674, %v2702
    %v2704 = vrot.slane %v2703, 2
    %v2705 = vmax.f32 %v2703, %v2704
    %v2706 = vrot.slane %v2705, 1
    %v2707 = vmax.f32 %v2705, %v2706
    %v2708 = vrot.slane %v2675, 4
    %v2709 = vmax.f32 %v2675, %v2708
    %v2710 = vrot.slane %v2709, 2
    %v2711 = vmax.f32 %v2709, %v2710
    %v2712 = vrot.slane %v2711, 1
    %v2713 = vmax.f32 %v2711, %v2712
    %v2714 = vrot.slane %v2676, 4
    %v2715 = vmax.f32 %v2676, %v2714
    %v2716 = vrot.slane %v2715, 2
    %v2717 = vmax.f32 %v2715, %v2716
    %v2718 = vrot.slane %v2717, 1
    %v2719 = vmax.f32 %v2717, %v2718
    %v2720 = vrot.slane %v2677, 4
    %v2721 = vmax.f32 %v2677, %v2720
    %v2722 = vrot.slane %v2721, 2
    %v2723 = vmax.f32 %v2721, %v2722
    %v2724 = vrot.slane %v2723, 1
    %v2725 = vmax.f32 %v2723, %v2724
    %vm2726 = vcmp.ge.f32.partialorder %v2670, %v2683
    %vm2727 = vcmp.ge.f32.partialorder %v2671, %v2689
    %vm2728 = vcmp.ge.f32.partialorder %v2672, %v2695
    %vm2729 = vcmp.ge.f32.partialorder %v2673, %v2701
    %vm2730 = vcmp.ge.f32.partialorder %v2674, %v2707
    %vm2731 = vcmp.ge.f32.partialorder %v2675, %v2713
    %vm2732 = vcmp.ge.f32.partialorder %v2676, %v2719
    %vm2733 = vcmp.ge.f32.partialorder %v2677, %v2725
    %v2734 = vsel %vm2726, %v105, 8
    %v2735 = vsel %vm2727, %v105, 8
    %v2736 = vsel %vm2728, %v105, 8
    %v2737 = vsel %vm2729, %v105, 8
    %v2738 = vsel %vm2730, %v105, 8
    %v2739 = vsel %vm2731, %v105, 8
    %v2740 = vsel %vm2732, %v105, 8
    %v2741 = vsel %vm2733, %v105, 8
    %v2742 = vrot.slane %v2734, 4
    %vm2743 = vcmp.lt.s32.totalorder %v2734, %v2742
    %v2744 = vsel %vm2743, %v2734, %v2742
    %v2745 = vrot.slane %v2744, 2
    %vm2746 = vcmp.lt.s32.totalorder %v2744, %v2745
    %v2747 = vsel %vm2746, %v2744, %v2745
    %v2748 = vrot.slane %v2747, 1
    %vm2749 = vcmp.lt.s32.totalorder %v2747, %v2748
    %v2750 = vsel %vm2749, %v2747, %v2748
    %v2751 = vrot.slane %v2735, 4
    %vm2752 = vcmp.lt.s32.totalorder %v2735, %v2751
    %v2753 = vsel %vm2752, %v2735, %v2751
    %v2754 = vrot.slane %v2753, 2
    %vm2755 = vcmp.lt.s32.totalorder %v2753, %v2754
    %v2756 = vsel %vm2755, %v2753, %v2754
    %v2757 = vrot.slane %v2756, 1
    %vm2758 = vcmp.lt.s32.totalorder %v2756, %v2757
    %v2759 = vsel %vm2758, %v2756, %v2757
    %v2760 = vrot.slane %v2736, 4
    %vm2761 = vcmp.lt.s32.totalorder %v2736, %v2760
    %v2762 = vsel %vm2761, %v2736, %v2760
    %v2763 = vrot.slane %v2762, 2
    %vm2764 = vcmp.lt.s32.totalorder %v2762, %v2763
    %v2765 = vsel %vm2764, %v2762, %v2763
    %v2766 = vrot.slane %v2765, 1
    %vm2767 = vcmp.lt.s32.totalorder %v2765, %v2766
    %v2768 = vsel %vm2767, %v2765, %v2766
    %v2769 = vrot.slane %v2737, 4
    %vm2770 = vcmp.lt.s32.totalorder %v2737, %v2769
    %v2771 = vsel %vm2770, %v2737, %v2769
    %v2772 = vrot.slane %v2771, 2
    %vm2773 = vcmp.lt.s32.totalorder %v2771, %v2772
    %v2774 = vsel %vm2773, %v2771, %v2772
    %v2775 = vrot.slane %v2774, 1
    %vm2776 = vcmp.lt.s32.totalorder %v2774, %v2775
    %v2777 = vsel %vm2776, %v2774, %v2775
    %v2778 = vrot.slane %v2738, 4
    %vm2779 = vcmp.lt.s32.totalorder %v2738, %v2778
    %v2780 = vsel %vm2779, %v2738, %v2778
    %v2781 = vrot.slane %v2780, 2
    %vm2782 = vcmp.lt.s32.totalorder %v2780, %v2781
    %v2783 = vsel %vm2782, %v2780, %v2781
    %v2784 = vrot.slane %v2783, 1
    %vm2785 = vcmp.lt.s32.totalorder %v2783, %v2784
    %v2786 = vsel %vm2785, %v2783, %v2784
    %v2787 = vrot.slane %v2739, 4
    %vm2788 = vcmp.lt.s32.totalorder %v2739, %v2787
    %v2789 = vsel %vm2788, %v2739, %v2787
    %v2790 = vrot.slane %v2789, 2
    %vm2791 = vcmp.lt.s32.totalorder %v2789, %v2790
    %v2792 = vsel %vm2791, %v2789, %v2790
    %v2793 = vrot.slane %v2792, 1
    %vm2794 = vcmp.lt.s32.totalorder %v2792, %v2793
    %v2795 = vsel %vm2794, %v2792, %v2793
    %v2796 = vrot.slane %v2740, 4
    %vm2797 = vcmp.lt.s32.totalorder %v2740, %v2796
    %v2798 = vsel %vm2797, %v2740, %v2796
    %v2799 = vrot.slane %v2798, 2
    %vm2800 = vcmp.lt.s32.totalorder %v2798, %v2799
    %v2801 = vsel %vm2800, %v2798, %v2799
    %v2802 = vrot.slane %v2801, 1
    %vm2803 = vcmp.lt.s32.totalorder %v2801, %v2802
    %v2804 = vsel %vm2803, %v2801, %v2802
    %v2805 = vrot.slane %v2741, 4
    %vm2806 = vcmp.lt.s32.totalorder %v2741, %v2805
    %v2807 = vsel %vm2806, %v2741, %v2805
    %v2808 = vrot.slane %v2807, 2
    %vm2809 = vcmp.lt.s32.totalorder %v2807, %v2808
    %v2810 = vsel %vm2809, %v2807, %v2808
    %v2811 = vrot.slane %v2810, 1
    %vm2812 = vcmp.lt.s32.totalorder %v2810, %v2811
    %v2813 = vsel %vm2812, %v2810, %v2811
    %v2814 = vsel %vm473, %v2759, %v2750
    %v2815 = vsel %vm475, %v2768, %v2814
    %v2816 = vsel %vm477, %v2777, %v2815
    %v2817 = vsel %vm479, %v2786, %v2816
    %v2818 = vsel %vm481, %v2795, %v2817
    %v2819 = vsel %vm483, %v2804, %v2818
    %v2820 = vsel %vm485, %v2813, %v2819
    %s2821 = scalar_lea.vmem [#allocation2], 56
    %2822 = vst [vmem:[%s2821] sm:$0xff] %v2820
    %s2823 = scalar_lea.vmem [#allocation3], 112
    %v2824 = vld [vmem:[%s2823] sm:$0xff]
    %v2825 = vld [vmem:[%s2823 + $0x8] sm:$0xff]
    %v2826 = vmul.f32 %v2824, %v2824
    %v2827 = vmul.f32 %v2825, %v2825
    %2828 = vmatprep.subr.mxu0 0.0
    %2829 = vmatpush1.msra.mxu0 %v2824
    %2830 = vmatprep.subr.mxu0 0.0
    %2831 = vmatpush1.msra.mxu0 %v2825
    %2832 = vmatprep.subr.mxu0 0.0
    %2833 = vmatpush1.msra.mxu0 0.0
    %2834 = vmatprep.subr.mxu0 0.0
    %2835 = vmatpush1.msra.mxu0 0.0
    %2836 = vmatprep.subr.mxu0 0.0
    %2837 = vmatpush1.msra.mxu0 0.0
    %2838 = vmatprep.subr.mxu0 0.0
    %2839 = vmatpush1.msra.mxu0 0.0
    %2840 = vmatprep.subr.mxu0 0.0
    %2841 = vmatpush1.msra.mxu0 0.0
    %2842 = vmatprep.subr.mxu0 0.0
    %2843 = vmatpush1.msra.mxu0 0.0
    %2844 = vmatprep.subr.mxu0 0.0
    %2845 = vmatpush1.msra.mxu0 0.0
    %2846 = vmatprep.subr.mxu0 0.0
    %2847 = vmatpush1.msra.mxu0 0.0
    %2848 = vmatprep.subr.mxu0 0.0
    %2849 = vmatpush1.msra.mxu0 0.0
    %2850 = vmatprep.subr.mxu0 0.0
    %2851 = vmatpush1.msra.mxu0 0.0
    %2852 = vmatprep.subr.mxu0 0.0
    %2853 = vmatpush1.msra.mxu0 0.0
    %2854 = vmatprep.subr.mxu0 0.0
    %2855 = vmatpush1.msra.mxu0 0.0
    %2856 = vmatprep.subr.mxu0 0.0
    %2857 = vmatpush1.msra.mxu0 0.0
    %2858 = vmatprep.subr.mxu0 0.0
    %2859 = vmatpush1.msra.mxu0 0.0
    %2860 = vmatprep.subr.mxu0 0.0
    %2861 = vmatpush1.msra.mxu0 0.0
    %2862 = vmatprep.subr.mxu0 0.0
    %2863 = vmatpush1.msra.mxu0 0.0
    %2864 = vmatprep.subr.mxu0 0.0
    %2865 = vmatpush1.msra.mxu0 0.0
    %2866 = vmatprep.subr.mxu0 0.0
    %2867 = vmatpush1.msra.mxu0 0.0
    %2868 = vmatprep.subr.mxu0 0.0
    %2869 = vmatpush1.msra.mxu0 0.0
    %2870 = vmatprep.subr.mxu0 0.0
    %2871 = vmatpush1.msra.mxu0 0.0
    %2872 = vmatprep.subr.mxu0 0.0
    %2873 = vmatpush1.msra.mxu0 0.0
    %2874 = vmatprep.subr.mxu0 0.0
    %2875 = vmatpush1.msra.mxu0 0.0
    %2876 = vmatprep.subr.mxu0 0.0
    %2877 = vmatpush1.msra.mxu0 0.0
    %2878 = vmatprep.subr.mxu0 0.0
    %2879 = vmatpush1.msra.mxu0 0.0
    %2880 = vmatprep.subr.mxu0 0.0
    %2881 = vmatpush1.msra.mxu0 0.0
    %2882 = vmatprep.subr.mxu0 0.0
    %2883 = vmatpush1.msra.mxu0 0.0
    %2884 = vmatprep.subr.mxu0 0.0
    %2885 = vmatpush1.msra.mxu0 0.0
    %2886 = vmatprep.subr.mxu0 0.0
    %2887 = vmatpush1.msra.mxu0 0.0
    %2888 = vmatprep.subr.mxu0 0.0
    %2889 = vmatpush1.msra.mxu0 0.0
    %2890 = vmatprep.subr.mxu0 0.0
    %2891 = vmatpush1.msra.mxu0 0.0
    %2892 = vmatprep.mubr.f32.mxu0 0.0
    %2893 = vmatmul.mubr.f32.gmra.mrb[0].mxu0 %v112
    %v2894 = vpop.f32.mrb[0].mxu0
    %v2895 = vadd.f32 0.0, %v2894
    %v2896 = vpop.f32.mrb[0].mxu0
    %2897 = vmatprep.mubr.f32.mxu0 0.0
    %2898 = vmatmul.mubr.f32.gmra.mrb[0].mxu0 %v115
    %v2899 = vpop.f32.mrb[0].mxu0
    %v2900 = vadd.f32 0.0, %v2899
    %v2901 = vpop.f32.mrb[0].mxu0
    %2902 = vmatprep.mubr.f32.mxu0 0.0
    %2903 = vmatmul.mubr.f32.gmra.mrb[0].mxu0 %v118
    %v2904 = vpop.f32.mrb[0].mxu0
    %v2905 = vadd.f32 0.0, %v2904
    %v2906 = vpop.f32.mrb[0].mxu0
    %2907 = vdwg.mxu0
    %2908 = vmatprep.subr.mxu0 0.0
    %2909 = vmatpush1.msra.mxu0 %v2826
    %2910 = vmatprep.subr.mxu0 0.0
    %2911 = vmatpush1.msra.mxu0 %v2827
    %2912 = vmatprep.subr.mxu0 0.0
    %2913 = vmatpush1.msra.mxu0 0.0
    %2914 = vmatprep.subr.mxu0 0.0
    %2915 = vmatpush1.msra.mxu0 0.0
    %2916 = vmatprep.subr.mxu0 0.0
    %2917 = vmatpush1.msra.mxu0 0.0
    %2918 = vmatprep.subr.mxu0 0.0
    %2919 = vmatpush1.msra.mxu0 0.0
    %2920 = vmatprep.subr.mxu0 0.0
    %2921 = vmatpush1.msra.mxu0 0.0
    %2922 = vmatprep.subr.mxu0 0.0
    %2923 = vmatpush1.msra.mxu0 0.0
    %2924 = vmatprep.subr.mxu0 0.0
    %2925 = vmatpush1.msra.mxu0 0.0
    %2926 = vmatprep.subr.mxu0 0.0
    %2927 = vmatpush1.msra.mxu0 0.0
    %2928 = vmatprep.subr.mxu0 0.0
    %2929 = vmatpush1.msra.mxu0 0.0
    %2930 = vmatprep.subr.mxu0 0.0
    %2931 = vmatpush1.msra.mxu0 0.0
    %2932 = vmatprep.subr.mxu0 0.0
    %2933 = vmatpush1.msra.mxu0 0.0
    %2934 = vmatprep.subr.mxu0 0.0
    %2935 = vmatpush1.msra.mxu0 0.0
    %2936 = vmatprep.subr.mxu0 0.0
    %2937 = vmatpush1.msra.mxu0 0.0
    %2938 = vmatprep.subr.mxu0 0.0
    %2939 = vmatpush1.msra.mxu0 0.0
    %2940 = vmatprep.subr.mxu0 0.0
    %2941 = vmatpush1.msra.mxu0 0.0
    %2942 = vmatprep.subr.mxu0 0.0
    %2943 = vmatpush1.msra.mxu0 0.0
    %2944 = vmatprep.subr.mxu0 0.0
    %2945 = vmatpush1.msra.mxu0 0.0
    %2946 = vmatprep.subr.mxu0 0.0
    %2947 = vmatpush1.msra.mxu0 0.0
    %2948 = vmatprep.subr.mxu0 0.0
    %2949 = vmatpush1.msra.mxu0 0.0
    %2950 = vmatprep.subr.mxu0 0.0
    %2951 = vmatpush1.msra.mxu0 0.0
    %2952 = vmatprep.subr.mxu0 0.0
    %2953 = vmatpush1.msra.mxu0 0.0
    %2954 = vmatprep.subr.mxu0 0.0
    %2955 = vmatpush1.msra.mxu0 0.0
    %2956 = vmatprep.subr.mxu0 0.0
    %2957 = vmatpush1.msra.mxu0 0.0
    %2958 = vmatprep.subr.mxu0 0.0
    %2959 = vmatpush1.msra.mxu0 0.0
    %2960 = vmatprep.subr.mxu0 0.0
    %2961 = vmatpush1.msra.mxu0 0.0
    %2962 = vmatprep.subr.mxu0 0.0
    %2963 = vmatpush1.msra.mxu0 0.0
    %2964 = vmatprep.subr.mxu0 0.0
    %2965 = vmatpush1.msra.mxu0 0.0
    %2966 = vmatprep.subr.mxu0 0.0
    %2967 = vmatpush1.msra.mxu0 0.0
    %2968 = vmatprep.subr.mxu0 0.0
    %2969 = vmatpush1.msra.mxu0 0.0
    %2970 = vmatprep.subr.mxu0 0.0
    %2971 = vmatpush1.msra.mxu0 0.0
    %2972 = vmatprep.mubr.f32.mxu0 0.0
    %2973 = vmatmul.mubr.f32.gmra.mrb[0].mxu0 %v201
    %v2974 = vpop.f32.mrb[0].mxu0
    %v2975 = vadd.f32 %v2895, %v2974
    %v2976 = vpop.f32.mrb[0].mxu0
    %2977 = vmatprep.mubr.f32.mxu0 0.0
    %2978 = vmatmul.mubr.f32.gmra.mrb[0].mxu0 %v204
    %v2979 = vpop.f32.mrb[0].mxu0
    %v2980 = vadd.f32 %v2900, %v2979
    %v2981 = vpop.f32.mrb[0].mxu0
    %2982 = vmatprep.mubr.f32.mxu0 0.0
    %2983 = vmatmul.mubr.f32.gmra.mrb[0].mxu0 %v207
    %v2984 = vpop.f32.mrb[0].mxu0
    %v2985 = vadd.f32 %v2905, %v2984
    %v2986 = vpop.f32.mrb[0].mxu0
    %2987 = vdwg.mxu0
    %v2988 = vadd.f32 %v2975, %v292
    %v2989 = vadd.f32 %v2980, %v297
    %v2990 = vadd.f32 %v2985, %v302
    %v2991 = vmax.f32 %v2988, %v2989
    %v2992 = vmax.f32 %v2991, %v2990
    %v2993 = vand.u32 2147483647, %v2992
    %vm2994 = vcmp.eq.f32.partialorder %v2993, inf
    %v2995 = vsel %vm2994, 0.0, %v2992
    %v2996 = vsub.f32 %v2988, %v2995
    %v2997 = vmul.f32 %v2996, 1.442695
    %v2998 = vpow.pop %v2997
    %v2999 = vadd.f32 %v2998, 0.0
    %v3000 = vsub.f32 %v2989, %v2995
    %v3001 = vmul.f32 %v3000, 1.442695
    %v3002 = vpow.pop %v3001
    %v3003 = vadd.f32 %v2999, %v3002
    %v3004 = vsub.f32 %v2990, %v2995
    %v3005 = vmul.f32 %v3004, 1.442695
    %v3006 = vpow.pop %v3005
    %v3007 = vadd.f32 %v3003, %v3006
    %v3008 = vmax.f32 %v3007, 1e-08
    %v3009 = vlog2.pop %v3008
    %v3010 = vmul.f32 %v3009, 0.6931472
    %v3011 = vadd.f32 %v3010, %v2995
    %v3013 = vrot.slane %v3011, 1
    %v3014 = vrot.slane %v3011, 2
    %v3015 = vrot.slane %v3011, 3
    %v3016 = vrot.slane %v3011, 4
    %v3017 = vrot.slane %v3011, 5
    %v3018 = vrot.slane %v3011, 6
    %v3019 = vrot.slane %v3011, 7
    %v3028 = vadd.f32 %v2683, %v3011
    %v3029 = vadd.f32 %v2689, %v3013
    %v3030 = vadd.f32 %v2695, %v3014
    %v3031 = vadd.f32 %v2701, %v3015
    %v3032 = vadd.f32 %v2707, %v3016
    %v3033 = vadd.f32 %v2713, %v3017
    %v3034 = vadd.f32 %v2719, %v3018
    %v3035 = vadd.f32 %v2725, %v3019
    %vm3036 = vcmask 1040384
    %v3037 = vsel %vm3036, %v3028, -inf
    %v3038 = vsel %vm3036, %v3029, -inf
    %v3039 = vsel %vm3036, %v3030, -inf
    %v3040 = vsel %vm3036, %v3031, -inf
    %v3041 = vsel %vm3036, %v3032, -inf
    %v3042 = vmax.f32 %v3037, %v3041
    %v3043 = vsel %vm3036, %v3033, -inf
    %v3044 = vmax.f32 %v3038, %v3043
    %v3045 = vsel %vm3036, %v3034, -inf
    %v3046 = vmax.f32 %v3039, %v3045
    %v3047 = vsel %vm3036, %v3035, -inf
    %v3048 = vmax.f32 %v3040, %v3047
    %v3049 = vmax.f32 %v3042, %v3044
    %v3050 = vmax.f32 %v3046, %v3048
    %v3051 = vmax.f32 %v3049, %v3050
    %v3052 = vlaneseq
    %v3053 = vshrl.u32 %v3052, 7
    %v3054 = vsub.s32 0, %v3053
    %v3055 = vrot.slane %v3051, %v3054
    %vm3056 = vcmp.ge.f32.partialorder %v3028, %v3055
    %vm3057 = vcmp.ge.f32.partialorder %v3029, %v3055
    %vm3058 = vcmp.ge.f32.partialorder %v3030, %v3055
    %vm3059 = vcmp.ge.f32.partialorder %v3031, %v3055
    %vm3060 = vcmp.ge.f32.partialorder %v3032, %v3055
    %vm3061 = vcmp.ge.f32.partialorder %v3033, %v3055
    %vm3062 = vcmp.ge.f32.partialorder %v3034, %v3055
    %vm3063 = vcmp.ge.f32.partialorder %v3035, %v3055
    %v3064 = vrot.slane %v105, 1
    %v3065 = vrot.slane %v105, 2
    %v3066 = vrot.slane %v105, 3
    %v3067 = vrot.slane %v105, 4
    %v3068 = vrot.slane %v105, 5
    %v3069 = vrot.slane %v105, 6
    %v3070 = vrot.slane %v105, 7
    %v3071 = vsel %vm3056, %v105, 8
    %v3072 = vsel %vm3057, %v3064, 8
    %v3073 = vsel %vm3058, %v3065, 8
    %v3074 = vsel %vm3059, %v3066, 8
    %v3075 = vsel %vm3060, %v3067, 8
    %v3076 = vsel %vm3061, %v3068, 8
    %v3077 = vsel %vm3062, %v3069, 8
    %v3078 = vsel %vm3063, %v3070, 8
    %v3079 = vsel %vm3036, %v3071, 2147483647
    %v3080 = vsel %vm3036, %v3072, 2147483647
    %v3081 = vsel %vm3036, %v3073, 2147483647
    %v3082 = vsel %vm3036, %v3074, 2147483647
    %v3083 = vsel %vm3036, %v3075, 2147483647
    %vm3084 = vcmp.lt.s32.totalorder %v3079, %v3083
    %v3085 = vsel %vm3084, %v3079, %v3083
    %v3086 = vsel %vm3036, %v3076, 2147483647
    %vm3087 = vcmp.lt.s32.totalorder %v3080, %v3086
    %v3088 = vsel %vm3087, %v3080, %v3086
    %v3089 = vsel %vm3036, %v3077, 2147483647
    %vm3090 = vcmp.lt.s32.totalorder %v3081, %v3089
    %v3091 = vsel %vm3090, %v3081, %v3089
    %v3092 = vsel %vm3036, %v3078, 2147483647
    %vm3093 = vcmp.lt.s32.totalorder %v3082, %v3092
    %v3094 = vsel %vm3093, %v3082, %v3092
    %vm3095 = vcmp.lt.s32.totalorder %v3085, %v3088
    %v3096 = vsel %vm3095, %v3085, %v3088
    %vm3097 = vcmp.lt.s32.totalorder %v3091, %v3094
    %v3098 = vsel %vm3097, %v3091, %v3094
    %vm3099 = vcmp.lt.s32.totalorder %v3096, %v3098
    %v3100 = vsel %vm3099, %v3096, %v3098
    %3101 = vst [vmem:[#allocation7] sm:$0x1] %v3051
    %3102 = vst [vmem:[#allocation6 + $0x7] sm:$0x1] %v3100
    %v3103 = vld [vmem:[%s2821] sm:$0xff]
    %v3104 = vlaneseq
    %v3105 = vshrl.u32 %v3104, 7
    %v3106 = vsub.s32 0, %v3105
    %v3107 = vrot.slane %v3100, %v3106
    %vm3108 = vcmp.eq.s32.totalorder %v105, %v3107
    %v3109 = vsel %vm3108, %v3103, 0
    %v3110 = vrot.slane %v3109, 4
    %v3111 = vadd.s32 %v3109, %v3110
    %v3112 = vrot.slane %v3111, 2
    %v3113 = vadd.s32 %v3111, %v3112
    %v3114 = vrot.slane %v3113, 1
    %v3115 = vadd.s32 %v3113, %v3114
    %3116 = vst [vmem:[#allocation6 + $0x6] sm:$0x1] %v3115
    %v3117 = vld [vmem:[%s2432] sm:$0xff]
    %vm3118 = vcmp.eq.s32.totalorder %v105, %v3115
    %v3119 = vsel %vm3118, %v3117, 0
    %v3120 = vrot.slane %v3119, 4
    %v3121 = vadd.s32 %v3119, %v3120
    %v3122 = vrot.slane %v3121, 2
    %v3123 = vadd.s32 %v3121, %v3122
    %v3124 = vrot.slane %v3123, 1
    %v3125 = vadd.s32 %v3123, %v3124
    %3126 = vst [vmem:[#allocation6 + $0x5] sm:$0x1] %v3125
    %v3127 = vld [vmem:[%s2043] sm:$0xff]
    %vm3128 = vcmp.eq.s32.totalorder %v105, %v3125
    %v3129 = vsel %vm3128, %v3127, 0
    %v3130 = vrot.slane %v3129, 4
    %v3131 = vadd.s32 %v3129, %v3130
    %v3132 = vrot.slane %v3131, 2
    %v3133 = vadd.s32 %v3131, %v3132
    %v3134 = vrot.slane %v3133, 1
    %v3135 = vadd.s32 %v3133, %v3134
    %3136 = vst [vmem:[#allocation6 + $0x4] sm:$0x1] %v3135
    %v3137 = vld [vmem:[%s1654] sm:$0xff]
    %vm3138 = vcmp.eq.s32.totalorder %v105, %v3135
    %v3139 = vsel %vm3138, %v3137, 0
    %v3140 = vrot.slane %v3139, 4
    %v3141 = vadd.s32 %v3139, %v3140
    %v3142 = vrot.slane %v3141, 2
    %v3143 = vadd.s32 %v3141, %v3142
    %v3144 = vrot.slane %v3143, 1
    %v3145 = vadd.s32 %v3143, %v3144
    %3146 = vst [vmem:[#allocation6 + $0x3] sm:$0x1] %v3145
    %v3147 = vld [vmem:[%s1265] sm:$0xff]
    %vm3148 = vcmp.eq.s32.totalorder %v105, %v3145
    %v3149 = vsel %vm3148, %v3147, 0
    %v3150 = vrot.slane %v3149, 4
    %v3151 = vadd.s32 %v3149, %v3150
    %v3152 = vrot.slane %v3151, 2
    %v3153 = vadd.s32 %v3151, %v3152
    %v3154 = vrot.slane %v3153, 1
    %v3155 = vadd.s32 %v3153, %v3154
    %3156 = vst [vmem:[#allocation6 + $0x2] sm:$0x1] %v3155
    %v3157 = vld [vmem:[%s876] sm:$0xff]
    %vm3158 = vcmp.eq.s32.totalorder %v105, %v3155
    %v3159 = vsel %vm3158, %v3157, 0
    %v3160 = vrot.slane %v3159, 4
    %v3161 = vadd.s32 %v3159, %v3160
    %v3162 = vrot.slane %v3161, 2
    %v3163 = vadd.s32 %v3161, %v3162
    %v3164 = vrot.slane %v3163, 1
    %v3165 = vadd.s32 %v3163, %v3164
    %3166 = vst [vmem:[#allocation6 + $0x1] sm:$0x1] %v3165
    %v3167 = vld [vmem:[%s487] sm:$0xff]
    %vm3168 = vcmp.eq.s32.totalorder %v105, %v3165
    %v3169 = vsel %vm3168, %v3167, 0
    %v3170 = vrot.slane %v3169, 4
    %v3171 = vadd.s32 %v3169, %v3170
    %v3172 = vrot.slane %v3171, 2
    %v3173 = vadd.s32 %v3171, %v3172
    %v3174 = vrot.slane %v3173, 1
    %v3175 = vadd.s32 %v3173, %v3174
    %3176 = vst [vmem:[#allocation6] sm:$0x1] %v3175
    // Predicated region
    $region26: #{tpu_custom_call.1} parent=1 // pred_check
      _
    $region27: #{tpu_custom_call.1} parent=1 // pred_check_branch
      %3178 = sbr.rel (0) target = $region29
    $region28: #{tpu_custom_call.1} parent=1 // pred_region
      %s3180 = ssub.s32 128, 128
      %3181 = vsyncadd [#allocation5], %s3180
      %s3183 = sshll.u32 [#allocation6], 4
      %s3184 = int_to_ptr.vmem [resolvable:$true] %s3183
      %3186 = dma.vmem_to_hbm [thread:$0]  %s3184, 128, %s5, [#allocation5]
    $region29: #{tpu_custom_call.1} parent=1 // pred_fallthru
      _
    // Predicated region
    $region30: #{tpu_custom_call.1} parent=1 // pred_check
      _
    $region31: #{tpu_custom_call.1} parent=1 // pred_check_branch
      %3188 = sbr.rel (0) target = $region33
    $region32: #{tpu_custom_call.1} parent=1 // pred_region
      %s3190 = ssub.s32 16, 16
      %3191 = vsyncadd [#allocation8], %s3190
      %s3193 = sshll.u32 [#allocation7], 4
      %s3194 = int_to_ptr.vmem [resolvable:$true] %s3193
      %3196 = dma.vmem_to_hbm [thread:$0]  %s3194, 16, %s6, [#allocation8]
    $region33: #{tpu_custom_call.1} parent=1 // pred_fallthru
      _
    // Predicated region
    $region34: #{tpu_custom_call.1} parent=1 // pred_check
      _
    $region35: #{tpu_custom_call.1} parent=1 // pred_check_branch
      %3198 = sbr.rel (0) target = $region37
    $region36: #{tpu_custom_call.1} parent=1 // pred_region
      %3199 = dma.done [#allocation5], 128
    $region37: #{tpu_custom_call.1} parent=1 // pred_fallthru
      _
    // Predicated region
    $region38: #{tpu_custom_call.1} parent=1 // pred_check
      _
    $region39: #{tpu_custom_call.1} parent=1 // pred_check_branch
      %3201 = sbr.rel (0) target = $region41
    $region40: #{tpu_custom_call.1} parent=1 // pred_region
      %3202 = dma.done [#allocation8], 16
    $region41: #{tpu_custom_call.1} parent=1 // pred_fallthru
      _
    %3203 = vsyncpa [#allocation4], 1
    %3204 = vsyncpa [#allocation5], 1
    %3205 = vsyncpa [#allocation8], 1

</llo_original>
